<compile_context>
chip_gen: v5e
topology: v5e:2x2
jax: 0.10.0
libtpu: 0.0.40
codegen_flags: <defaults>
</compile_context>

<pallas_src>
import jax
import jax.numpy as jnp
from jax.experimental import pallas as pl
from jax.experimental.pallas import tpu as pltpu

_KW = 5          # conv kernel size
_LANE_PAD = 8    # extra zero lanes so the banded shifts are static, in-bounds slices


# ----------------------------------------------------------------------------
# Host-side (XLA) weight preprocessing helpers — all tiny, weight-only.
# ----------------------------------------------------------------------------
def _half_pool(n_out, n_in):
    """(n_out, n_in) matrix H with H[p, q] = 0.5 iff q in {2p, 2p+1}."""
    p = jnp.arange(n_out)[:, None]
    q = jnp.arange(n_in)[None, :]
    return jnp.where((q == 2 * p) | (q == 2 * p + 1), 0.5, 0.0).astype(jnp.float32)


def _banded(w, h_in):
    """Torch conv weight (O,C,KH,KW) -> (KW, O*H_out, C*H_in) banded slabs.

    M[k][o*Ho + i, c*Hi + h] = w[o, c, h - i, k] for 0 <= h - i < KH.
    """
    o, c, kh, kw = w.shape
    h_out = h_in - kh + 1
    eye_k = jnp.stack([jnp.eye(h_out, h_in, k=k, dtype=w.dtype) for k in range(kh)])
    m = jnp.einsum("ocky,kih->yoich", w, eye_k)            # (KW, O, Ho, C, Hi)
    return m.reshape(kw, o * h_out, c * h_in)


# ----------------------------------------------------------------------------
# Fused kernel: conv1+relu+pool1+conv2+relu+pool2+fc1+relu+fc2+relu+fc3.
# One grid step = one block of B samples; batch lives on the lane axis of the
# conv slabs and on the sublane axis of the MLP / output.
# ----------------------------------------------------------------------------
def _lenet_fused_kernel(x_ref, m1_ref, b1_ref, m2_ref, b2_ref, a1_ref, a2_ref,
                        v1_ref, c1_ref, w2_ref, c2_ref, w3_ref, c3_ref, out_ref):
    """
    x_ref : (32, 32*B + 8)    padded images, lane = b*32 + j  (+ zero pad lanes)
    m1_ref: (168, 160)        conv1 banded weights, cols = kw*32 + h
    b1_ref: (168, 1)          conv1 bias repeated per output row
    m2_ref: (160, 840)        conv2 banded weights with pool-1 row-avg folded in
    b2_ref: (160, 1)
    a1_ref: (32*B, 14*B + 8)  pool-1 column-average (block-diag over batch)
    a2_ref: (5, 14*B, B)      per-jj pool-2 column-average + batch de-interleave
    v1_ref: (5, 128, 160)     fc1^T with pool-2 row-avg folded in, one per col jj
    c1_ref: (128, 1)          fc1 bias (zero padded)
    w2_ref: (128, 128), c2_ref: (1, 128)   fc2 (zero padded)
    w3_ref: (128, OP),  c3_ref: (1, OP)    fc3 (zero padded)
    out_ref: (B, OP)          logits, lane-dense
    """
    bsz = out_ref.shape[0]
    wc1 = 32 * bsz                     # conv1 slab width (valid lanes)
    wc2 = 14 * bsz                     # pooled slab width (valid lanes)

    # conv1: stack 5 shifted copies of the slab along the contraction dim.
    x = x_ref[...]
    p1 = jnp.concatenate([x[:, k:k + wc1] for k in range(_KW)], axis=0)      # (160, 32B)
    r1 = jnp.maximum(
        jnp.dot(m1_ref[...], p1, preferred_element_type=jnp.float32) + b1_ref[...],
        0.0)                                                                  # (168, 32B)

    # pool-1 column average (the row average is folded into m2); trailing pad
    # lanes of q1 are zero so the conv2 band slices stay in bounds.
    q1 = jnp.dot(r1, a1_ref[...], preferred_element_type=jnp.float32)         # (168, 14B+8)

    # conv2 (+ pool-1 row avg) on the column-pooled slab.
    p2 = jnp.concatenate([q1[:, k:k + wc2] for k in range(_KW)], axis=0)      # (840, 14B)
    r2 = jnp.maximum(
        jnp.dot(m2_ref[...], p2, preferred_element_type=jnp.float32) + b2_ref[...],
        0.0)                                                                  # (160, 14B)

    # pool-2 + NCHW flatten + fc1, fused: one tiny matmul pair per pooled col jj.
    nh = v1_ref.shape[1]
    h1t = jnp.zeros((nh, bsz), jnp.float32)
    for jj in range(_KW):
        t = jnp.dot(r2, a2_ref[jj], preferred_element_type=jnp.float32)       # (160, B)
        h1t = h1t + jnp.dot(v1_ref[jj], t, preferred_element_type=jnp.float32)
    h1 = jnp.maximum(h1t + c1_ref[...], 0.0).T                                 # (B, 128)

    # fc2 + relu + fc3; lane-dense (B, OP) logits store.
    h2 = jnp.maximum(
        jnp.dot(h1, w2_ref[...], preferred_element_type=jnp.float32) + c2_ref[...],
        0.0)
    out_ref[...] = (jnp.dot(h2, w3_ref[...], preferred_element_type=jnp.float32)
                    + c3_ref[...])


# ----------------------------------------------------------------------------
# Wrapper: host-side prep + single pallas_call.
# ----------------------------------------------------------------------------
def lenet_forward(params, x, *, block_b=8):
    """x: (N, 28, 28) float32 -> logits (N, num_classes). Mirrors LeNet.forward."""
    n = x.shape[0]
    assert x.shape[1:] == (28, 28), "LeNet fc1 expects 16*5*5 = 400 features"
    bb = block_b
    assert bb % 8 == 0, "per-step batch must be a multiple of 8 (sublane tiling)"
    g = pl.cdiv(n, bb)
    n_pad = g * bb

    w1, b1 = params["conv1_w"], params["conv1_b"]
    w2, b2 = params["conv2_w"], params["conv2_b"]
    fw1, fb1 = params["fc1_w"], params["fc1_b"]
    fw2, fb2 = params["fc2_w"], params["fc2_b"]
    fw3, fb3 = params["fc3_w"], params["fc3_b"]
    nc = fw3.shape[1]
    nh = 128                                    # padded fc hidden width
    op = ((nc + 127) // 128) * 128              # padded (lane-dense) logits width

    # ---- input slab: (G, 32, 32*B + pad), lane index = b*32 + j -------------
    xp = jnp.pad(x, ((0, n_pad - n), (2, 2), (2, 2)))            # conv1 padding=2
    xs = xp.reshape(g, bb, 32, 32).transpose(0, 2, 1, 3).reshape(g, 32, bb * 32)
    xs = jnp.pad(xs, ((0, 0), (0, 0), (0, _LANE_PAD)))

    # ---- conv weights: banded, kw-collapsed, pool-1 rows folded into conv2 --
    m1 = _banded(w1, 32)                                          # (5, 168, 32)
    m1cat = jnp.transpose(m1, (1, 0, 2)).reshape(6 * 28, _KW * 32)        # (168, 160)
    b1rep = jnp.repeat(b1, 28).reshape(-1, 1)                             # (168, 1)

    l1 = jnp.kron(jnp.eye(6, dtype=jnp.float32), _half_pool(14, 28))      # (84, 168)
    m2 = _banded(w2, 14)                                          # (5, 160, 84)
    m2cat = jnp.transpose(jnp.matmul(m2, l1), (1, 0, 2)).reshape(
        16 * 10, _KW * 6 * 28)                                            # (160, 840)
    b2rep = jnp.repeat(b2, 10).reshape(-1, 1)                             # (160, 1)

    # ---- pooling / de-interleave matrices (block-diag over the batch) -------
    a1 = jnp.kron(jnp.eye(bb, dtype=jnp.float32), _half_pool(14, 32).T)   # (32B, 14B)
    a1 = jnp.pad(a1, ((0, 0), (0, _LANE_PAD)))                            # (32B, 14B+8)
    hp2 = _half_pool(5, 14)                                               # (5, 14)
    a2 = jnp.stack([jnp.kron(jnp.eye(bb, dtype=jnp.float32), hp2[j][:, None])
                    for j in range(_KW)])                                 # (5, 14B, B)

    # ---- fc1 fused with pool-2 row average + NCHW flatten -------------------
    l2 = jnp.kron(jnp.eye(16, dtype=jnp.float32), _half_pool(5, 10))      # (80, 160)
    w1r = jnp.transpose(fw1.reshape(16, 5, 5, fw1.shape[1]), (2, 3, 0, 1))
    w1r = w1r.reshape(_KW, fw1.shape[1], 80)                              # (5, 120, 80)
    w1r = jnp.pad(w1r, ((0, 0), (0, nh - fw1.shape[1]), (0, 0)))          # (5, 128, 80)
    v1 = jnp.matmul(w1r, l2)                                              # (5, 128, 160)
    c1 = jnp.pad(fb1, (0, nh - fb1.shape[0])).reshape(-1, 1)              # (128, 1)

    # ---- fc2 / fc3 padded to lane-dense widths -------------------------------
    w2p = jnp.zeros((nh, nh), jnp.float32).at[:fw2.shape[0], :fw2.shape[1]].set(fw2)
    c2 = jnp.zeros((1, nh), jnp.float32).at[0, :fb2.shape[0]].set(fb2)
    w3p = jnp.zeros((nh, op), jnp.float32).at[:fw3.shape[0], :nc].set(fw3)
    c3 = jnp.zeros((1, op), jnp.float32).at[0, :nc].set(fb3)

    out = pl.pallas_call(
        _lenet_fused_kernel,
        out_shape=jax.ShapeDtypeStruct((n_pad, op), jnp.float32),
        grid=(g,),
        in_specs=[
            pl.BlockSpec((None, 32, bb * 32 + _LANE_PAD), lambda i: (i, 0, 0)),
            pl.BlockSpec(m1cat.shape, lambda i: (0, 0)),
            pl.BlockSpec(b1rep.shape, lambda i: (0, 0)),
            pl.BlockSpec(m2cat.shape, lambda i: (0, 0)),
            pl.BlockSpec(b2rep.shape, lambda i: (0, 0)),
            pl.BlockSpec(a1.shape, lambda i: (0, 0)),
            pl.BlockSpec(a2.shape, lambda i: (0, 0, 0)),
            pl.BlockSpec(v1.shape, lambda i: (0, 0, 0)),
            pl.BlockSpec(c1.shape, lambda i: (0, 0)),
            pl.BlockSpec(w2p.shape, lambda i: (0, 0)),
            pl.BlockSpec(c2.shape, lambda i: (0, 0)),
            pl.BlockSpec(w3p.shape, lambda i: (0, 0)),
            pl.BlockSpec(c3.shape, lambda i: (0, 0)),
        ],
        out_specs=pl.BlockSpec((bb, op), lambda i: (i, 0)),
        compiler_params=pltpu.CompilerParams(dimension_semantics=("parallel",)),
    )(xs, m1cat, b1rep, m2cat, b2rep, a1, a2, v1, c1, w2p, c2, w3p, c3)
    return out[:n, :nc]


# ----------------------------------------------------------------------------
# Parameters (deterministic, PyTorch-style uniform fan-in init)
# ----------------------------------------------------------------------------
def init_params(num_classes, key):
    keys = jax.random.split(key, 10)

    def winit(k, shape, fan_in):
        bound = 1.0 / jnp.sqrt(jnp.float32(fan_in))
        return jax.random.uniform(k, shape, jnp.float32, -bound, bound)

    return {
        "conv1_w": winit(keys[0], (6, 1, 5, 5), 1 * 5 * 5),
        "conv1_b": winit(keys[1], (6,), 1 * 5 * 5),
        "conv2_w": winit(keys[2], (16, 6, 5, 5), 6 * 5 * 5),
        "conv2_b": winit(keys[3], (16,), 6 * 5 * 5),
        "fc1_w": winit(keys[4], (400, 120), 400),
        "fc1_b": winit(keys[5], (120,), 400),
        "fc2_w": winit(keys[6], (120, 84), 120),
        "fc2_b": winit(keys[7], (84,), 120),
        "fc3_w": winit(keys[8], (84, num_classes), 84),
        "fc3_b": winit(keys[9], (84,), 84)[:num_classes] * 0 + winit(keys[9], (num_classes,), 84),
    }


if __name__ == "__main__":
    num_classes = 10
    key = jax.random.PRNGKey(0)
    pkey, xkey = jax.random.split(key)
    params = init_params(num_classes, pkey)
    # 28x28 spatial is required by the module (fc1 in_features = 400 = 16*5*5).
    x = jax.random.normal(xkey, (2, 28, 28), jnp.float32)
    out = jax.jit(lenet_forward)(params, x)
    jax.block_until_ready(out)
    assert out.shape == (2, num_classes)
    print("KERNEL_OK")
</pallas_src>

<mosaic_0001>
module attributes {stable_mosaic.version = 11 : i64} {
  func.func @_lenet_fused_kernel(%arg0: i32, %arg1: memref<1x32x264xf32, #tpu.memory_space<vmem>>, %arg2: memref<168x160xf32, #tpu.memory_space<vmem>>, %arg3: memref<168x1xf32, #tpu.memory_space<vmem>>, %arg4: memref<160x840xf32, #tpu.memory_space<vmem>>, %arg5: memref<160x1xf32, #tpu.memory_space<vmem>>, %arg6: memref<256x120xf32, #tpu.memory_space<vmem>>, %arg7: memref<5x112x8xf32, #tpu.memory_space<vmem>>, %arg8: memref<5x128x160xf32, #tpu.memory_space<vmem>>, %arg9: memref<128x1xf32, #tpu.memory_space<vmem>>, %arg10: memref<128x128xf32, #tpu.memory_space<vmem>>, %arg11: memref<1x128xf32, #tpu.memory_space<vmem>>, %arg12: memref<128x128xf32, #tpu.memory_space<vmem>>, %arg13: memref<1x128xf32, #tpu.memory_space<vmem>>, %arg14: memref<8x128xf32, #tpu.memory_space<vmem>>) attributes {dimension_semantics = [#tpu.dimension_semantics<parallel>], iteration_bounds = array<i64: 1>, scalar_prefetch = 0 : i64, scratch_operands = 0 : i64, tpu.core_type = #tpu.core_type<tc>, window_params = [{transform_indices = @transform_0, window_bounds = array<i64: 1, 32, 264>}, {pipeline_mode = #tpu.pipeline_mode<synchronous>, transform_indices = @transform_1, window_bounds = array<i64: 168, 160>}, {pipeline_mode = #tpu.pipeline_mode<synchronous>, transform_indices = @transform_2, window_bounds = array<i64: 168, 1>}, {pipeline_mode = #tpu.pipeline_mode<synchronous>, transform_indices = @transform_3, window_bounds = array<i64: 160, 840>}, {pipeline_mode = #tpu.pipeline_mode<synchronous>, transform_indices = @transform_4, window_bounds = array<i64: 160, 1>}, {pipeline_mode = #tpu.pipeline_mode<synchronous>, transform_indices = @transform_5, window_bounds = array<i64: 256, 120>}, {pipeline_mode = #tpu.pipeline_mode<synchronous>, transform_indices = @transform_6, window_bounds = array<i64: 5, 112, 8>}, {pipeline_mode = #tpu.pipeline_mode<synchronous>, transform_indices = @transform_7, window_bounds = array<i64: 5, 128, 160>}, {pipeline_mode = #tpu.pipeline_mode<synchronous>, transform_indices = @transform_8, window_bounds = array<i64: 128, 1>}, {pipeline_mode = #tpu.pipeline_mode<synchronous>, transform_indices = @transform_9, window_bounds = array<i64: 128, 128>}, {pipeline_mode = #tpu.pipeline_mode<synchronous>, transform_indices = @transform_10, window_bounds = array<i64: 1, 128>}, {pipeline_mode = #tpu.pipeline_mode<synchronous>, transform_indices = @transform_11, window_bounds = array<i64: 128, 128>}, {pipeline_mode = #tpu.pipeline_mode<synchronous>, transform_indices = @transform_12, window_bounds = array<i64: 1, 128>}, {transform_indices = @transform_13, window_bounds = array<i64: 8, 128>}]} {
    %c0 = arith.constant 0 : index
    %c0_0 = arith.constant 0 : index
    %c0_1 = arith.constant 0 : index
    %0 = vector.load %arg1[%c0, %c0_0, %c0_1] : memref<1x32x264xf32, #tpu.memory_space<vmem>>, vector<1x32x264xf32>
    %1 = vector.shape_cast %0 : vector<1x32x264xf32> to vector<32x264xf32>
    %2 = vector.extract_strided_slice %1 {offsets = [0, 0], sizes = [32, 256], strides = [1, 1]} : vector<32x264xf32> to vector<32x256xf32>
    %3 = vector.extract_strided_slice %1 {offsets = [0, 1], sizes = [32, 256], strides = [1, 1]} : vector<32x264xf32> to vector<32x256xf32>
    %4 = vector.extract_strided_slice %1 {offsets = [0, 2], sizes = [32, 256], strides = [1, 1]} : vector<32x264xf32> to vector<32x256xf32>
    %5 = vector.extract_strided_slice %1 {offsets = [0, 3], sizes = [32, 256], strides = [1, 1]} : vector<32x264xf32> to vector<32x256xf32>
    %6 = vector.extract_strided_slice %1 {offsets = [0, 4], sizes = [32, 256], strides = [1, 1]} : vector<32x264xf32> to vector<32x256xf32>
    %7 = tpu.concatenate %2, %3, %4, %5, %6 in 0 : vector<32x256xf32>, vector<32x256xf32>, vector<32x256xf32>, vector<32x256xf32>, vector<32x256xf32> -> vector<160x256xf32>
    %c0_2 = arith.constant 0 : index
    %c0_3 = arith.constant 0 : index
    %8 = vector.load %arg2[%c0_2, %c0_3] : memref<168x160xf32, #tpu.memory_space<vmem>>, vector<168x160xf32>
    %cst = arith.constant dense<0.000000e+00> : vector<168x256xf32>
    %9 = tpu.matmul %8, %7, %cst {dimension_numbers = #tpu.dot_dimension_numbers<[1], [0], [0], [1], [0, 0, 1, 1], [], []>} : vector<168x160xf32>, vector<160x256xf32>, vector<168x256xf32> -> vector<168x256xf32>
    %c0_4 = arith.constant 0 : index
    %c0_5 = arith.constant 0 : index
    %10 = vector.load %arg3[%c0_4, %c0_5] : memref<168x1xf32, #tpu.memory_space<vmem>>, vector<168x1xf32>
    %11 = vector.broadcast %10 : vector<168x1xf32> to vector<168x256xf32>
    %12 = arith.addf %9, %11 : vector<168x256xf32>
    %cst_6 = arith.constant 0.000000e+00 : f32
    %13 = vector.broadcast %cst_6 : f32 to vector<168x256xf32>
    %14 = arith.maximumf %12, %13 : vector<168x256xf32>
    %c0_7 = arith.constant 0 : index
    %c0_8 = arith.constant 0 : index
    %15 = vector.load %arg6[%c0_7, %c0_8] : memref<256x120xf32, #tpu.memory_space<vmem>>, vector<256x120xf32>
    %cst_9 = arith.constant dense<0.000000e+00> : vector<168x120xf32>
    %16 = tpu.matmul %14, %15, %cst_9 {dimension_numbers = #tpu.dot_dimension_numbers<[1], [0], [0], [1], [0, 0, 1, 1], [], []>} : vector<168x256xf32>, vector<256x120xf32>, vector<168x120xf32> -> vector<168x120xf32>
    %17 = vector.extract_strided_slice %16 {offsets = [0, 0], sizes = [168, 112], strides = [1, 1]} : vector<168x120xf32> to vector<168x112xf32>
    %18 = vector.extract_strided_slice %16 {offsets = [0, 1], sizes = [168, 112], strides = [1, 1]} : vector<168x120xf32> to vector<168x112xf32>
    %19 = vector.extract_strided_slice %16 {offsets = [0, 2], sizes = [168, 112], strides = [1, 1]} : vector<168x120xf32> to vector<168x112xf32>
    %20 = vector.extract_strided_slice %16 {offsets = [0, 3], sizes = [168, 112], strides = [1, 1]} : vector<168x120xf32> to vector<168x112xf32>
    %21 = vector.extract_strided_slice %16 {offsets = [0, 4], sizes = [168, 112], strides = [1, 1]} : vector<168x120xf32> to vector<168x112xf32>
    %22 = tpu.concatenate %17, %18, %19, %20, %21 in 0 : vector<168x112xf32>, vector<168x112xf32>, vector<168x112xf32>, vector<168x112xf32>, vector<168x112xf32> -> vector<840x112xf32>
    %c0_10 = arith.constant 0 : index
    %c0_11 = arith.constant 0 : index
    %23 = vector.load %arg4[%c0_10, %c0_11] : memref<160x840xf32, #tpu.memory_space<vmem>>, vector<160x840xf32>
    %cst_12 = arith.constant dense<0.000000e+00> : vector<160x112xf32>
    %24 = tpu.matmul %23, %22, %cst_12 {dimension_numbers = #tpu.dot_dimension_numbers<[1], [0], [0], [1], [0, 0, 1, 1], [], []>} : vector<160x840xf32>, vector<840x112xf32>, vector<160x112xf32> -> vector<160x112xf32>
    %c0_13 = arith.constant 0 : index
    %c0_14 = arith.constant 0 : index
    %25 = vector.load %arg5[%c0_13, %c0_14] : memref<160x1xf32, #tpu.memory_space<vmem>>, vector<160x1xf32>
    %26 = vector.broadcast %25 : vector<160x1xf32> to vector<160x112xf32>
    %27 = arith.addf %24, %26 : vector<160x112xf32>
    %cst_15 = arith.constant 0.000000e+00 : f32
    %28 = vector.broadcast %cst_15 : f32 to vector<160x112xf32>
    %29 = arith.maximumf %27, %28 : vector<160x112xf32>
    %cst_16 = arith.constant 0.000000e+00 : f32
    %30 = vector.broadcast %cst_16 : f32 to vector<128x8xf32>
    %c0_17 = arith.constant 0 : index
    %c0_18 = arith.constant 0 : index
    %c0_19 = arith.constant 0 : index
    %31 = vector.load %arg7[%c0_17, %c0_18, %c0_19] : memref<5x112x8xf32, #tpu.memory_space<vmem>>, vector<1x112x8xf32>
    %32 = vector.shape_cast %31 : vector<1x112x8xf32> to vector<112x8xf32>
    %cst_20 = arith.constant dense<0.000000e+00> : vector<160x8xf32>
    %33 = tpu.matmul %29, %32, %cst_20 {dimension_numbers = #tpu.dot_dimension_numbers<[1], [0], [0], [1], [0, 0, 1, 1], [], []>} : vector<160x112xf32>, vector<112x8xf32>, vector<160x8xf32> -> vector<160x8xf32>
    %c0_21 = arith.constant 0 : index
    %c0_22 = arith.constant 0 : index
    %c0_23 = arith.constant 0 : index
    %34 = vector.load %arg8[%c0_21, %c0_22, %c0_23] : memref<5x128x160xf32, #tpu.memory_space<vmem>>, vector<1x128x160xf32>
    %35 = vector.shape_cast %34 : vector<1x128x160xf32> to vector<128x160xf32>
    %cst_24 = arith.constant dense<0.000000e+00> : vector<128x8xf32>
    %36 = tpu.matmul %35, %33, %cst_24 {dimension_numbers = #tpu.dot_dimension_numbers<[1], [0], [0], [1], [0, 0, 1, 1], [], []>} : vector<128x160xf32>, vector<160x8xf32>, vector<128x8xf32> -> vector<128x8xf32>
    %37 = arith.addf %30, %36 : vector<128x8xf32>
    %c1 = arith.constant 1 : index
    %c0_25 = arith.constant 0 : index
    %c0_26 = arith.constant 0 : index
    %38 = vector.load %arg7[%c1, %c0_25, %c0_26] : memref<5x112x8xf32, #tpu.memory_space<vmem>>, vector<1x112x8xf32>
    %39 = vector.shape_cast %38 : vector<1x112x8xf32> to vector<112x8xf32>
    %cst_27 = arith.constant dense<0.000000e+00> : vector<160x8xf32>
    %40 = tpu.matmul %29, %39, %cst_27 {dimension_numbers = #tpu.dot_dimension_numbers<[1], [0], [0], [1], [0, 0, 1, 1], [], []>} : vector<160x112xf32>, vector<112x8xf32>, vector<160x8xf32> -> vector<160x8xf32>
    %c1_28 = arith.constant 1 : index
    %c0_29 = arith.constant 0 : index
    %c0_30 = arith.constant 0 : index
    %41 = vector.load %arg8[%c1_28, %c0_29, %c0_30] : memref<5x128x160xf32, #tpu.memory_space<vmem>>, vector<1x128x160xf32>
    %42 = vector.shape_cast %41 : vector<1x128x160xf32> to vector<128x160xf32>
    %cst_31 = arith.constant dense<0.000000e+00> : vector<128x8xf32>
    %43 = tpu.matmul %42, %40, %cst_31 {dimension_numbers = #tpu.dot_dimension_numbers<[1], [0], [0], [1], [0, 0, 1, 1], [], []>} : vector<128x160xf32>, vector<160x8xf32>, vector<128x8xf32> -> vector<128x8xf32>
    %44 = arith.addf %37, %43 : vector<128x8xf32>
    %c2 = arith.constant 2 : index
    %c0_32 = arith.constant 0 : index
    %c0_33 = arith.constant 0 : index
    %45 = vector.load %arg7[%c2, %c0_32, %c0_33] : memref<5x112x8xf32, #tpu.memory_space<vmem>>, vector<1x112x8xf32>
    %46 = vector.shape_cast %45 : vector<1x112x8xf32> to vector<112x8xf32>
    %cst_34 = arith.constant dense<0.000000e+00> : vector<160x8xf32>
    %47 = tpu.matmul %29, %46, %cst_34 {dimension_numbers = #tpu.dot_dimension_numbers<[1], [0], [0], [1], [0, 0, 1, 1], [], []>} : vector<160x112xf32>, vector<112x8xf32>, vector<160x8xf32> -> vector<160x8xf32>
    %c2_35 = arith.constant 2 : index
    %c0_36 = arith.constant 0 : index
    %c0_37 = arith.constant 0 : index
    %48 = vector.load %arg8[%c2_35, %c0_36, %c0_37] : memref<5x128x160xf32, #tpu.memory_space<vmem>>, vector<1x128x160xf32>
    %49 = vector.shape_cast %48 : vector<1x128x160xf32> to vector<128x160xf32>
    %cst_38 = arith.constant dense<0.000000e+00> : vector<128x8xf32>
    %50 = tpu.matmul %49, %47, %cst_38 {dimension_numbers = #tpu.dot_dimension_numbers<[1], [0], [0], [1], [0, 0, 1, 1], [], []>} : vector<128x160xf32>, vector<160x8xf32>, vector<128x8xf32> -> vector<128x8xf32>
    %51 = arith.addf %44, %50 : vector<128x8xf32>
    %c3 = arith.constant 3 : index
    %c0_39 = arith.constant 0 : index
    %c0_40 = arith.constant 0 : index
    %52 = vector.load %arg7[%c3, %c0_39, %c0_40] : memref<5x112x8xf32, #tpu.memory_space<vmem>>, vector<1x112x8xf32>
    %53 = vector.shape_cast %52 : vector<1x112x8xf32> to vector<112x8xf32>
    %cst_41 = arith.constant dense<0.000000e+00> : vector<160x8xf32>
    %54 = tpu.matmul %29, %53, %cst_41 {dimension_numbers = #tpu.dot_dimension_numbers<[1], [0], [0], [1], [0, 0, 1, 1], [], []>} : vector<160x112xf32>, vector<112x8xf32>, vector<160x8xf32> -> vector<160x8xf32>
    %c3_42 = arith.constant 3 : index
    %c0_43 = arith.constant 0 : index
    %c0_44 = arith.constant 0 : index
    %55 = vector.load %arg8[%c3_42, %c0_43, %c0_44] : memref<5x128x160xf32, #tpu.memory_space<vmem>>, vector<1x128x160xf32>
    %56 = vector.shape_cast %55 : vector<1x128x160xf32> to vector<128x160xf32>
    %cst_45 = arith.constant dense<0.000000e+00> : vector<128x8xf32>
    %57 = tpu.matmul %56, %54, %cst_45 {dimension_numbers = #tpu.dot_dimension_numbers<[1], [0], [0], [1], [0, 0, 1, 1], [], []>} : vector<128x160xf32>, vector<160x8xf32>, vector<128x8xf32> -> vector<128x8xf32>
    %58 = arith.addf %51, %57 : vector<128x8xf32>
    %c4 = arith.constant 4 : index
    %c0_46 = arith.constant 0 : index
    %c0_47 = arith.constant 0 : index
    %59 = vector.load %arg7[%c4, %c0_46, %c0_47] : memref<5x112x8xf32, #tpu.memory_space<vmem>>, vector<1x112x8xf32>
    %60 = vector.shape_cast %59 : vector<1x112x8xf32> to vector<112x8xf32>
    %cst_48 = arith.constant dense<0.000000e+00> : vector<160x8xf32>
    %61 = tpu.matmul %29, %60, %cst_48 {dimension_numbers = #tpu.dot_dimension_numbers<[1], [0], [0], [1], [0, 0, 1, 1], [], []>} : vector<160x112xf32>, vector<112x8xf32>, vector<160x8xf32> -> vector<160x8xf32>
    %c4_49 = arith.constant 4 : index
    %c0_50 = arith.constant 0 : index
    %c0_51 = arith.constant 0 : index
    %62 = vector.load %arg8[%c4_49, %c0_50, %c0_51] : memref<5x128x160xf32, #tpu.memory_space<vmem>>, vector<1x128x160xf32>
    %63 = vector.shape_cast %62 : vector<1x128x160xf32> to vector<128x160xf32>
    %cst_52 = arith.constant dense<0.000000e+00> : vector<128x8xf32>
    %64 = tpu.matmul %63, %61, %cst_52 {dimension_numbers = #tpu.dot_dimension_numbers<[1], [0], [0], [1], [0, 0, 1, 1], [], []>} : vector<128x160xf32>, vector<160x8xf32>, vector<128x8xf32> -> vector<128x8xf32>
    %65 = arith.addf %58, %64 : vector<128x8xf32>
    %c0_53 = arith.constant 0 : index
    %c0_54 = arith.constant 0 : index
    %66 = vector.load %arg9[%c0_53, %c0_54] : memref<128x1xf32, #tpu.memory_space<vmem>>, vector<128x1xf32>
    %67 = vector.broadcast %66 : vector<128x1xf32> to vector<128x8xf32>
    %68 = arith.addf %65, %67 : vector<128x8xf32>
    %cst_55 = arith.constant 0.000000e+00 : f32
    %69 = vector.broadcast %cst_55 : f32 to vector<128x8xf32>
    %70 = arith.maximumf %68, %69 : vector<128x8xf32>
    %71 = tpu.transpose %70, [1, 0] : vector<128x8xf32> -> vector<8x128xf32>
    %c0_56 = arith.constant 0 : index
    %c0_57 = arith.constant 0 : index
    %72 = vector.load %arg10[%c0_56, %c0_57] : memref<128x128xf32, #tpu.memory_space<vmem>>, vector<128x128xf32>
    %cst_58 = arith.constant dense<0.000000e+00> : vector<8x128xf32>
    %73 = tpu.matmul %71, %72, %cst_58 {dimension_numbers = #tpu.dot_dimension_numbers<[1], [0], [0], [1], [0, 0, 1, 1], [], []>} : vector<8x128xf32>, vector<128x128xf32>, vector<8x128xf32> -> vector<8x128xf32>
    %c0_59 = arith.constant 0 : index
    %c0_60 = arith.constant 0 : index
    %74 = vector.load %arg11[%c0_59, %c0_60] : memref<1x128xf32, #tpu.memory_space<vmem>>, vector<1x128xf32>
    %75 = vector.broadcast %74 : vector<1x128xf32> to vector<8x128xf32>
    %76 = arith.addf %73, %75 : vector<8x128xf32>
    %cst_61 = arith.constant 0.000000e+00 : f32
    %77 = vector.broadcast %cst_61 : f32 to vector<8x128xf32>
    %78 = arith.maximumf %76, %77 : vector<8x128xf32>
    %c0_62 = arith.constant 0 : index
    %c0_63 = arith.constant 0 : index
    %79 = vector.load %arg12[%c0_62, %c0_63] : memref<128x128xf32, #tpu.memory_space<vmem>>, vector<128x128xf32>
    %cst_64 = arith.constant dense<0.000000e+00> : vector<8x128xf32>
    %80 = tpu.matmul %78, %79, %cst_64 {dimension_numbers = #tpu.dot_dimension_numbers<[1], [0], [0], [1], [0, 0, 1, 1], [], []>} : vector<8x128xf32>, vector<128x128xf32>, vector<8x128xf32> -> vector<8x128xf32>
    %c0_65 = arith.constant 0 : index
    %c0_66 = arith.constant 0 : index
    %81 = vector.load %arg13[%c0_65, %c0_66] : memref<1x128xf32, #tpu.memory_space<vmem>>, vector<1x128xf32>
    %82 = vector.broadcast %81 : vector<1x128xf32> to vector<8x128xf32>
    %83 = arith.addf %80, %82 : vector<8x128xf32>
    %c0_67 = arith.constant 0 : index
    %c0_68 = arith.constant 0 : index
    %84 = vector.load %arg14[%c0_67, %c0_68] : memref<8x128xf32, #tpu.memory_space<vmem>>, vector<8x128xf32>
    tpu.vector_store %arg14[%c0_67, %c0_68], %83 {strides = array<i32>} : memref<8x128xf32, #tpu.memory_space<vmem>>, vector<8x128xf32>,
    return
  }
  func.func @transform_0(%arg0: i32) -> (i32, i32, i32) {
    %c0_i32 = arith.constant 0 : i32
    %c0_i32_0 = arith.constant 0 : i32
    %c0_i32_1 = arith.constant 0 : i32
    return %arg0, %c0_i32, %c0_i32_0 : i32, i32, i32
  }
  func.func @transform_1(%arg0: i32) -> (i32, i32) {
    %c0_i32 = arith.constant 0 : i32
    %c0_i32_0 = arith.constant 0 : i32
    %c0_i32_1 = arith.constant 0 : i32
    return %c0_i32, %c0_i32_0 : i32, i32
  }
  func.func @transform_2(%arg0: i32) -> (i32, i32) {
    %c0_i32 = arith.constant 0 : i32
    %c0_i32_0 = arith.constant 0 : i32
    %c0_i32_1 = arith.constant 0 : i32
    return %c0_i32, %c0_i32_0 : i32, i32
  }
  func.func @transform_3(%arg0: i32) -> (i32, i32) {
    %c0_i32 = arith.constant 0 : i32
    %c0_i32_0 = arith.constant 0 : i32
    %c0_i32_1 = arith.constant 0 : i32
    return %c0_i32, %c0_i32_0 : i32, i32
  }
  func.func @transform_4(%arg0: i32) -> (i32, i32) {
    %c0_i32 = arith.constant 0 : i32
    %c0_i32_0 = arith.constant 0 : i32
    %c0_i32_1 = arith.constant 0 : i32
    return %c0_i32, %c0_i32_0 : i32, i32
  }
  func.func @transform_5(%arg0: i32) -> (i32, i32) {
    %c0_i32 = arith.constant 0 : i32
    %c0_i32_0 = arith.constant 0 : i32
    %c0_i32_1 = arith.constant 0 : i32
    return %c0_i32, %c0_i32_0 : i32, i32
  }
  func.func @transform_6(%arg0: i32) -> (i32, i32, i32) {
    %c0_i32 = arith.constant 0 : i32
    %c0_i32_0 = arith.constant 0 : i32
    %c0_i32_1 = arith.constant 0 : i32
    %c0_i32_2 = arith.constant 0 : i32
    return %c0_i32, %c0_i32_0, %c0_i32_1 : i32, i32, i32
  }
  func.func @transform_7(%arg0: i32) -> (i32, i32, i32) {
    %c0_i32 = arith.constant 0 : i32
    %c0_i32_0 = arith.constant 0 : i32
    %c0_i32_1 = arith.constant 0 : i32
    %c0_i32_2 = arith.constant 0 : i32
    return %c0_i32, %c0_i32_0, %c0_i32_1 : i32, i32, i32
  }
  func.func @transform_8(%arg0: i32) -> (i32, i32) {
    %c0_i32 = arith.constant 0 : i32
    %c0_i32_0 = arith.constant 0 : i32
    %c0_i32_1 = arith.constant 0 : i32
    return %c0_i32, %c0_i32_0 : i32, i32
  }
  func.func @transform_9(%arg0: i32) -> (i32, i32) {
    %c0_i32 = arith.constant 0 : i32
    %c0_i32_0 = arith.constant 0 : i32
    %c0_i32_1 = arith.constant 0 : i32
    return %c0_i32, %c0_i32_0 : i32, i32
  }
  func.func @transform_10(%arg0: i32) -> (i32, i32) {
    %c0_i32 = arith.constant 0 : i32
    %c0_i32_0 = arith.constant 0 : i32
    %c0_i32_1 = arith.constant 0 : i32
    return %c0_i32, %c0_i32_0 : i32, i32
  }
  func.func @transform_11(%arg0: i32) -> (i32, i32) {
    %c0_i32 = arith.constant 0 : i32
    %c0_i32_0 = arith.constant 0 : i32
    %c0_i32_1 = arith.constant 0 : i32
    return %c0_i32, %c0_i32_0 : i32, i32
  }
  func.func @transform_12(%arg0: i32) -> (i32, i32) {
    %c0_i32 = arith.constant 0 : i32
    %c0_i32_0 = arith.constant 0 : i32
    %c0_i32_1 = arith.constant 0 : i32
    return %c0_i32, %c0_i32_0 : i32, i32
  }
  func.func @transform_13(%arg0: i32) -> (i32, i32) {
    %c0_i32 = arith.constant 0 : i32
    %c0_i32_0 = arith.constant 0 : i32
    return %arg0, %c0_i32 : i32, i32
  }
}

</mosaic_0001>

<llo_original>
// kernel: lenet_forward.1
$region0: #{lenet_forward.1}
  #allocation0 [shape = 'u32[]', space=smem, size = 0x4, offset = 0x4, fixed_abs, tag = 'smem constant byte address 0x4 - core index']
  #allocation1 [shape = 'u32[72,128]{1,0:T(1,128)}', space=vmem, size = 0x9000, scoped, tag = 'internal scratch']
  %s0 = inlined_call_operand.vmem [shape: f32[1,32,264], index: 0, kind: input, shape index: {}]
  %s1 = inlined_call_operand.vmem [shape: f32[168,160], index: 1, kind: input, shape index: {}]
  %s2 = inlined_call_operand.vmem [shape: f32[168,1], index: 2, kind: input, shape index: {}]
  %s3 = inlined_call_operand.vmem [shape: f32[160,840], index: 3, kind: input, shape index: {}]
  %s4 = inlined_call_operand.vmem [shape: f32[160,1], index: 4, kind: input, shape index: {}]
  %s5 = inlined_call_operand.vmem [shape: f32[256,120], index: 5, kind: input, shape index: {}]
  %s6 = inlined_call_operand.vmem [shape: f32[5,112,8], index: 6, kind: input, shape index: {}]
  %s7 = inlined_call_operand.vmem [shape: f32[5,128,160], index: 7, kind: input, shape index: {}]
  %s8 = inlined_call_operand.vmem [shape: f32[128,1], index: 8, kind: input, shape index: {}]
  %s9 = inlined_call_operand.vmem [shape: f32[128,128], index: 9, kind: input, shape index: {}]
  %s10 = inlined_call_operand.vmem [shape: f32[1,128], index: 10, kind: input, shape index: {}]
  %s11 = inlined_call_operand.vmem [shape: f32[128,128], index: 11, kind: input, shape index: {}]
  %s12 = inlined_call_operand.vmem [shape: f32[1,128], index: 12, kind: input, shape index: {}]
  %s13 = inlined_call_operand.vmem [shape: f32[8,128], index: 13, kind: output, shape index: {}]
  %s14 = sld [smem:[#allocation0]]
  $region62: #{lenet_forward.1} parent=0
    _
  %s16 = ssub.s32 1, %s14
  %s17 = scalar_select 0, %s16, %s14
  // Predicated region
  $region2: #{lenet_forward.1} parent=0 // pred_check
    _
  $region3: #{lenet_forward.1} parent=0 // pred_check_branch
    %19 = sbr.rel (0) target = $region5
  $region4: #{lenet_forward.1} parent=0 // pred_region
    _
  $region5: #{lenet_forward.1} parent=0 // pred_fallthru
    _
  // Predicated region
  $region6: #{lenet_forward.1} parent=0 // pred_check
    _
  $region7: #{lenet_forward.1} parent=0 // pred_check_branch
    %21 = sbr.rel (0) target = $region9
  $region8: #{lenet_forward.1} parent=0 // pred_region
    _
  $region9: #{lenet_forward.1} parent=0 // pred_fallthru
    _
  // Predicated region
  $region10: #{lenet_forward.1} parent=0 // pred_check
    _
  $region11: #{lenet_forward.1} parent=0 // pred_check_branch
    %23 = sbr.rel (0) target = $region13
  $region12: #{lenet_forward.1} parent=0 // pred_region
    _
  $region13: #{lenet_forward.1} parent=0 // pred_fallthru
    _
  // Predicated region
  $region14: #{lenet_forward.1} parent=0 // pred_check
    _
  $region15: #{lenet_forward.1} parent=0 // pred_check_branch
    %25 = sbr.rel (0) target = $region17
  $region16: #{lenet_forward.1} parent=0 // pred_region
    _
  $region17: #{lenet_forward.1} parent=0 // pred_fallthru
    _
  // Predicated region
  $region18: #{lenet_forward.1} parent=0 // pred_check
    _
  $region19: #{lenet_forward.1} parent=0 // pred_check_branch
    %27 = sbr.rel (0) target = $region21
  $region20: #{lenet_forward.1} parent=0 // pred_region
    _
  $region21: #{lenet_forward.1} parent=0 // pred_fallthru
    _
  // Predicated region
  $region22: #{lenet_forward.1} parent=0 // pred_check
    _
  $region23: #{lenet_forward.1} parent=0 // pred_check_branch
    %29 = sbr.rel (0) target = $region25
  $region24: #{lenet_forward.1} parent=0 // pred_region
    _
  $region25: #{lenet_forward.1} parent=0 // pred_fallthru
    _
  // Predicated region
  $region26: #{lenet_forward.1} parent=0 // pred_check
    _
  $region27: #{lenet_forward.1} parent=0 // pred_check_branch
    %31 = sbr.rel (0) target = $region29
  $region28: #{lenet_forward.1} parent=0 // pred_region
    _
  $region29: #{lenet_forward.1} parent=0 // pred_fallthru
    _
  // Predicated region
  $region30: #{lenet_forward.1} parent=0 // pred_check
    _
  $region31: #{lenet_forward.1} parent=0 // pred_check_branch
    %33 = sbr.rel (0) target = $region33
  $region32: #{lenet_forward.1} parent=0 // pred_region
    _
  $region33: #{lenet_forward.1} parent=0 // pred_fallthru
    _
  // Predicated region
  $region34: #{lenet_forward.1} parent=0 // pred_check
    _
  $region35: #{lenet_forward.1} parent=0 // pred_check_branch
    %35 = sbr.rel (0) target = $region37
  $region36: #{lenet_forward.1} parent=0 // pred_region
    _
  $region37: #{lenet_forward.1} parent=0 // pred_fallthru
    _
  // Predicated region
  $region38: #{lenet_forward.1} parent=0 // pred_check
    _
  $region39: #{lenet_forward.1} parent=0 // pred_check_branch
    %37 = sbr.rel (0) target = $region41
  $region40: #{lenet_forward.1} parent=0 // pred_region
    _
  $region41: #{lenet_forward.1} parent=0 // pred_fallthru
    _
  // Predicated region
  $region42: #{lenet_forward.1} parent=0 // pred_check
    _
  $region43: #{lenet_forward.1} parent=0 // pred_check_branch
    %39 = sbr.rel (0) target = $region45
  $region44: #{lenet_forward.1} parent=0 // pred_region
    _
  $region45: #{lenet_forward.1} parent=0 // pred_fallthru
    _
  // Predicated region
  $region46: #{lenet_forward.1} parent=0 // pred_check
    _
  $region47: #{lenet_forward.1} parent=0 // pred_check_branch
    %41 = sbr.rel (0) target = $region49
  $region48: #{lenet_forward.1} parent=0 // pred_region
    _
  $region49: #{lenet_forward.1} parent=0 // pred_fallthru
    _
  // Predicated region
  $region50: #{lenet_forward.1} parent=0 // pred_check
    _
  $region51: #{lenet_forward.1} parent=0 // pred_check_branch
    %43 = sbr.rel (0) target = $region53
  $region52: #{lenet_forward.1} parent=0 // pred_region
    _
  $region53: #{lenet_forward.1} parent=0 // pred_fallthru
    _
  %v44 = vld [vmem:[%s0] sm:$0xff]
  %v45 = vld [vmem:[%s0 + $0x8] sm:$0xff]
  %v46 = vld [vmem:[%s0 + $0x10] sm:$0xff]
  %v47 = vld [vmem:[%s0 + $0x18] sm:$0xff]
  %v48 = vld [vmem:[%s0 + $0x20] sm:$0xff]
  %v49 = vld [vmem:[%s0 + $0x28] sm:$0xff]
  %v50 = vld [vmem:[%s0 + $0x30] sm:$0xff]
  %v51 = vld [vmem:[%s0 + $0x38] sm:$0xff]
  %v52 = vld [vmem:[%s0 + $0x40] sm:$0xff]
  %v53 = vld [vmem:[%s0 + $0x48] sm:$0xff]
  %v54 = vld [vmem:[%s0 + $0x50] sm:$0xff]
  %v55 = vld [vmem:[%s0 + $0x58] sm:$0xff]
  %68 = vrot.lane.b32.xlu0 %v44, 127
  %v69 = vpop.permute.xlu0 %68
  %70 = vrot.lane.b32.xlu0 %v45, 127
  %v71 = vpop.permute.xlu0 %70
  %72 = vrot.lane.b32.xlu0 %v46, 127
  %v73 = vpop.permute.xlu0 %72
  %74 = vrot.lane.b32.xlu0 %v47, 127
  %v75 = vpop.permute.xlu0 %74
  %76 = vrot.lane.b32.xlu0 %v48, 127
  %v77 = vpop.permute.xlu0 %76
  %78 = vrot.lane.b32.xlu0 %v49, 127
  %v79 = vpop.permute.xlu0 %78
  %80 = vrot.lane.b32.xlu0 %v50, 127
  %v81 = vpop.permute.xlu0 %80
  %82 = vrot.lane.b32.xlu0 %v51, 127
  %v83 = vpop.permute.xlu0 %82
  %84 = vrot.lane.b32.xlu0 %v52, 127
  %v85 = vpop.permute.xlu0 %84
  %86 = vrot.lane.b32.xlu0 %v53, 127
  %v87 = vpop.permute.xlu0 %86
  %88 = vrot.lane.b32.xlu0 %v54, 127
  %v89 = vpop.permute.xlu0 %88
  %90 = vrot.lane.b32.xlu0 %v55, 127
  %v91 = vpop.permute.xlu0 %90
  %vm92 = vcmask 1039360
  %v93 = vsel %vm92, %v69, %v71
  %v94 = vsel %vm92, %v71, %v73
  %v95 = vsel %vm92, %v75, %v77
  %v96 = vsel %vm92, %v77, %v79
  %v97 = vsel %vm92, %v81, %v83
  %v98 = vsel %vm92, %v83, %v85
  %v99 = vsel %vm92, %v87, %v89
  %v100 = vsel %vm92, %v89, %v91
  %109 = vrot.lane.b32.xlu0 %v44, 126
  %v110 = vpop.permute.xlu0 %109
  %111 = vrot.lane.b32.xlu0 %v45, 126
  %v112 = vpop.permute.xlu0 %111
  %113 = vrot.lane.b32.xlu0 %v46, 126
  %v114 = vpop.permute.xlu0 %113
  %115 = vrot.lane.b32.xlu0 %v47, 126
  %v116 = vpop.permute.xlu0 %115
  %117 = vrot.lane.b32.xlu0 %v48, 126
  %v118 = vpop.permute.xlu0 %117
  %119 = vrot.lane.b32.xlu0 %v49, 126
  %v120 = vpop.permute.xlu0 %119
  %121 = vrot.lane.b32.xlu0 %v50, 126
  %v122 = vpop.permute.xlu0 %121
  %123 = vrot.lane.b32.xlu0 %v51, 126
  %v124 = vpop.permute.xlu0 %123
  %125 = vrot.lane.b32.xlu0 %v52, 126
  %v126 = vpop.permute.xlu0 %125
  %127 = vrot.lane.b32.xlu0 %v53, 126
  %v128 = vpop.permute.xlu0 %127
  %129 = vrot.lane.b32.xlu0 %v54, 126
  %v130 = vpop.permute.xlu0 %129
  %131 = vrot.lane.b32.xlu0 %v55, 126
  %v132 = vpop.permute.xlu0 %131
  %vm133 = vcmask 1031168
  %v134 = vsel %vm133, %v110, %v112
  %v135 = vsel %vm133, %v112, %v114
  %v136 = vsel %vm133, %v116, %v118
  %v137 = vsel %vm133, %v118, %v120
  %v138 = vsel %vm133, %v122, %v124
  %v139 = vsel %vm133, %v124, %v126
  %v140 = vsel %vm133, %v128, %v130
  %v141 = vsel %vm133, %v130, %v132
  %150 = vrot.lane.b32.xlu0 %v44, 125
  %v151 = vpop.permute.xlu0 %150
  %152 = vrot.lane.b32.xlu0 %v45, 125
  %v153 = vpop.permute.xlu0 %152
  %154 = vrot.lane.b32.xlu0 %v46, 125
  %v155 = vpop.permute.xlu0 %154
  %156 = vrot.lane.b32.xlu0 %v47, 125
  %v157 = vpop.permute.xlu0 %156
  %158 = vrot.lane.b32.xlu0 %v48, 125
  %v159 = vpop.permute.xlu0 %158
  %160 = vrot.lane.b32.xlu0 %v49, 125
  %v161 = vpop.permute.xlu0 %160
  %162 = vrot.lane.b32.xlu0 %v50, 125
  %v163 = vpop.permute.xlu0 %162
  %164 = vrot.lane.b32.xlu0 %v51, 125
  %v165 = vpop.permute.xlu0 %164
  %166 = vrot.lane.b32.xlu0 %v52, 125
  %v167 = vpop.permute.xlu0 %166
  %168 = vrot.lane.b32.xlu0 %v53, 125
  %v169 = vpop.permute.xlu0 %168
  %170 = vrot.lane.b32.xlu0 %v54, 125
  %v171 = vpop.permute.xlu0 %170
  %172 = vrot.lane.b32.xlu0 %v55, 125
  %v173 = vpop.permute.xlu0 %172
  %vm174 = vcmask 1022976
  %v175 = vsel %vm174, %v151, %v153
  %v176 = vsel %vm174, %v153, %v155
  %v177 = vsel %vm174, %v157, %v159
  %v178 = vsel %vm174, %v159, %v161
  %v179 = vsel %vm174, %v163, %v165
  %v180 = vsel %vm174, %v165, %v167
  %v181 = vsel %vm174, %v169, %v171
  %v182 = vsel %vm174, %v171, %v173
  %191 = vrot.lane.b32.xlu0 %v44, 124
  %v192 = vpop.permute.xlu0 %191
  %193 = vrot.lane.b32.xlu0 %v45, 124
  %v194 = vpop.permute.xlu0 %193
  %195 = vrot.lane.b32.xlu0 %v46, 124
  %v196 = vpop.permute.xlu0 %195
  %197 = vrot.lane.b32.xlu0 %v47, 124
  %v198 = vpop.permute.xlu0 %197
  %199 = vrot.lane.b32.xlu0 %v48, 124
  %v200 = vpop.permute.xlu0 %199
  %201 = vrot.lane.b32.xlu0 %v49, 124
  %v202 = vpop.permute.xlu0 %201
  %203 = vrot.lane.b32.xlu0 %v50, 124
  %v204 = vpop.permute.xlu0 %203
  %205 = vrot.lane.b32.xlu0 %v51, 124
  %v206 = vpop.permute.xlu0 %205
  %207 = vrot.lane.b32.xlu0 %v52, 124
  %v208 = vpop.permute.xlu0 %207
  %209 = vrot.lane.b32.xlu0 %v53, 124
  %v210 = vpop.permute.xlu0 %209
  %211 = vrot.lane.b32.xlu0 %v54, 124
  %v212 = vpop.permute.xlu0 %211
  %213 = vrot.lane.b32.xlu0 %v55, 124
  %v214 = vpop.permute.xlu0 %213
  %vm215 = vcmask 1014784
  %v216 = vsel %vm215, %v192, %v194
  %v217 = vsel %vm215, %v194, %v196
  %v218 = vsel %vm215, %v198, %v200
  %v219 = vsel %vm215, %v200, %v202
  %v220 = vsel %vm215, %v204, %v206
  %v221 = vsel %vm215, %v206, %v208
  %v222 = vsel %vm215, %v210, %v212
  %v223 = vsel %vm215, %v212, %v214
  %v232 = vld [vmem:[%s1] sm:$0xff]
  %v233 = vld [vmem:[%s1 + $0x8] sm:$0xff]
  %v234 = vld [vmem:[%s1 + $0x10] sm:$0xff]
  %v235 = vld [vmem:[%s1 + $0x18] sm:$0xff]
  %v236 = vld [vmem:[%s1 + $0x20] sm:$0xff]
  %v237 = vld [vmem:[%s1 + $0x28] sm:$0xff]
  %v238 = vld [vmem:[%s1 + $0x30] sm:$0xff]
  %v239 = vld [vmem:[%s1 + $0x38] sm:$0xff]
  %v240 = vld [vmem:[%s1 + $0x40] sm:$0xff]
  %v241 = vld [vmem:[%s1 + $0x48] sm:$0xff]
  %v242 = vld [vmem:[%s1 + $0x50] sm:$0xff]
  %v243 = vld [vmem:[%s1 + $0x58] sm:$0xff]
  %v244 = vld [vmem:[%s1 + $0x60] sm:$0xff]
  %v245 = vld [vmem:[%s1 + $0x68] sm:$0xff]
  %v246 = vld [vmem:[%s1 + $0x70] sm:$0xff]
  %v247 = vld [vmem:[%s1 + $0x78] sm:$0xff]
  %v248 = vld [vmem:[%s1 + $0x80] sm:$0xff]
  %v249 = vld [vmem:[%s1 + $0x88] sm:$0xff]
  %v250 = vld [vmem:[%s1 + $0x90] sm:$0xff]
  %v251 = vld [vmem:[%s1 + $0x98] sm:$0xff]
  %v252 = vld [vmem:[%s1 + $0xa0] sm:$0xff]
  %v253 = vld [vmem:[%s1 + $0xa8] sm:$0xff]
  %v254 = vld [vmem:[%s1 + $0xb0] sm:$0xff]
  %v255 = vld [vmem:[%s1 + $0xb8] sm:$0xff]
  %v256 = vld [vmem:[%s1 + $0xc0] sm:$0xff]
  %v257 = vld [vmem:[%s1 + $0xc8] sm:$0xff]
  %v258 = vld [vmem:[%s1 + $0xd0] sm:$0xff]
  %v259 = vld [vmem:[%s1 + $0xd8] sm:$0xff]
  %v260 = vld [vmem:[%s1 + $0xe0] sm:$0xff]
  %v261 = vld [vmem:[%s1 + $0xe8] sm:$0xff]
  %v262 = vld [vmem:[%s1 + $0xf0] sm:$0xff]
  %v263 = vld [vmem:[%s1 + $0xf8] sm:$0xff]
  %v264 = vld [vmem:[%s1 + $0x100] sm:$0xff]
  %v265 = vld [vmem:[%s1 + $0x108] sm:$0xff]
  %v266 = vld [vmem:[%s1 + $0x110] sm:$0xff]
  %v267 = vld [vmem:[%s1 + $0x118] sm:$0xff]
  %v268 = vld [vmem:[%s1 + $0x120] sm:$0xff]
  %v269 = vld [vmem:[%s1 + $0x128] sm:$0xff]
  %v270 = vld [vmem:[%s1 + $0x130] sm:$0xff]
  %v271 = vld [vmem:[%s1 + $0x138] sm:$0xff]
  %v272 = vld [vmem:[%s1 + $0x140] sm:$0xff]
  %v273 = vld [vmem:[%s1 + $0x148] sm:$0xff]
  %v274 = vld [vmem:[%s2] sm:$0xff]
  %v275 = vld [vmem:[%s2 + $0x8] sm:$0xff]
  %v276 = vld [vmem:[%s2 + $0x10] sm:$0xff]
  %v277 = vld [vmem:[%s2 + $0x18] sm:$0xff]
  %v278 = vld [vmem:[%s2 + $0x20] sm:$0xff]
  %v279 = vld [vmem:[%s2 + $0x28] sm:$0xff]
  %v280 = vld [vmem:[%s2 + $0x30] sm:$0xff]
  %v281 = vld [vmem:[%s2 + $0x38] sm:$0xff]
  %v282 = vld [vmem:[%s2 + $0x40] sm:$0xff]
  %v283 = vld [vmem:[%s2 + $0x48] sm:$0xff]
  %v284 = vld [vmem:[%s2 + $0x50] sm:$0xff]
  %v285 = vld [vmem:[%s2 + $0x58] sm:$0xff]
  %v286 = vld [vmem:[%s2 + $0x60] sm:$0xff]
  %v287 = vld [vmem:[%s2 + $0x68] sm:$0xff]
  %v288 = vld [vmem:[%s2 + $0x70] sm:$0xff]
  %v289 = vld [vmem:[%s2 + $0x78] sm:$0xff]
  %v290 = vld [vmem:[%s2 + $0x80] sm:$0xff]
  %v291 = vld [vmem:[%s2 + $0x88] sm:$0xff]
  %v292 = vld [vmem:[%s2 + $0x90] sm:$0xff]
  %v293 = vld [vmem:[%s2 + $0x98] sm:$0xff]
  %v294 = vld [vmem:[%s2 + $0xa0] sm:$0xff]
  %296 = vset.pattern.permute.xlu0 0
  %297 = vperm.xlu0 %296, %v274
  %v298 = vpop.permute.xlu0 %297
  %301 = vset.pattern.permute.xlu0 0
  %302 = vperm.xlu0 %301, %v275
  %v303 = vpop.permute.xlu0 %302
  %306 = vset.pattern.permute.xlu0 0
  %307 = vperm.xlu0 %306, %v276
  %v308 = vpop.permute.xlu0 %307
  %311 = vset.pattern.permute.xlu0 0
  %312 = vperm.xlu0 %311, %v277
  %v313 = vpop.permute.xlu0 %312
  %316 = vset.pattern.permute.xlu0 0
  %317 = vperm.xlu0 %316, %v278
  %v318 = vpop.permute.xlu0 %317
  %321 = vset.pattern.permute.xlu0 0
  %322 = vperm.xlu0 %321, %v279
  %v323 = vpop.permute.xlu0 %322
  %326 = vset.pattern.permute.xlu0 0
  %327 = vperm.xlu0 %326, %v280
  %v328 = vpop.permute.xlu0 %327
  %331 = vset.pattern.permute.xlu0 0
  %332 = vperm.xlu0 %331, %v281
  %v333 = vpop.permute.xlu0 %332
  %336 = vset.pattern.permute.xlu0 0
  %337 = vperm.xlu0 %336, %v282
  %v338 = vpop.permute.xlu0 %337
  %341 = vset.pattern.permute.xlu0 0
  %342 = vperm.xlu0 %341, %v283
  %v343 = vpop.permute.xlu0 %342
  %346 = vset.pattern.permute.xlu0 0
  %347 = vperm.xlu0 %346, %v284
  %v348 = vpop.permute.xlu0 %347
  %351 = vset.pattern.permute.xlu0 0
  %352 = vperm.xlu0 %351, %v285
  %v353 = vpop.permute.xlu0 %352
  %356 = vset.pattern.permute.xlu0 0
  %357 = vperm.xlu0 %356, %v286
  %v358 = vpop.permute.xlu0 %357
  %361 = vset.pattern.permute.xlu0 0
  %362 = vperm.xlu0 %361, %v287
  %v363 = vpop.permute.xlu0 %362
  %366 = vset.pattern.permute.xlu0 0
  %367 = vperm.xlu0 %366, %v288
  %v368 = vpop.permute.xlu0 %367
  %371 = vset.pattern.permute.xlu0 0
  %372 = vperm.xlu0 %371, %v289
  %v373 = vpop.permute.xlu0 %372
  %376 = vset.pattern.permute.xlu0 0
  %377 = vperm.xlu0 %376, %v290
  %v378 = vpop.permute.xlu0 %377
  %381 = vset.pattern.permute.xlu0 0
  %382 = vperm.xlu0 %381, %v291
  %v383 = vpop.permute.xlu0 %382
  %386 = vset.pattern.permute.xlu0 0
  %387 = vperm.xlu0 %386, %v292
  %v388 = vpop.permute.xlu0 %387
  %391 = vset.pattern.permute.xlu0 0
  %392 = vperm.xlu0 %391, %v293
  %v393 = vpop.permute.xlu0 %392
  %396 = vset.pattern.permute.xlu0 0
  %397 = vperm.xlu0 %396, %v294
  %v398 = vpop.permute.xlu0 %397
  %vm400 = vcmask 261120
  %v402 = vsel %vm400, %v233, 0
  %v405 = vsel %vm400, %v235, 0
  %v408 = vsel %vm400, %v237, 0
  %v411 = vsel %vm400, %v239, 0
  %v414 = vsel %vm400, %v241, 0
  %v417 = vsel %vm400, %v243, 0
  %v420 = vsel %vm400, %v245, 0
  %v423 = vsel %vm400, %v247, 0
  %v426 = vsel %vm400, %v249, 0
  %v429 = vsel %vm400, %v251, 0
  %v432 = vsel %vm400, %v253, 0
  %v435 = vsel %vm400, %v255, 0
  %v438 = vsel %vm400, %v257, 0
  %v441 = vsel %vm400, %v259, 0
  %v444 = vsel %vm400, %v261, 0
  %v447 = vsel %vm400, %v263, 0
  %v450 = vsel %vm400, %v265, 0
  %v453 = vsel %vm400, %v267, 0
  %v456 = vsel %vm400, %v269, 0
  %v459 = vsel %vm400, %v271, 0
  %v462 = vsel %vm400, %v273, 0
  %464 = vmatpush.msra.mxu0 %v181
  %465 = vmatpush.msra.mxu0 %v179
  %466 = vmatpush.msra.mxu0 %v177
  %467 = vmatpush.msra.mxu0 %v175
  %468 = vmatpush.msra.mxu0 %v140
  %469 = vmatpush.msra.mxu0 %v138
  %470 = vmatpush.msra.mxu0 %v136
  %471 = vmatpush.msra.mxu0 %v134
  %472 = vmatpush.msra.mxu0 %v99
  %473 = vmatpush.msra.mxu0 %v97
  %474 = vmatpush.msra.mxu0 %v95
  %475 = vmatpush.msra.mxu0 %v93
  %476 = vmatpush.msra.mxu0 %v53
  %477 = vmatpush.msra.mxu0 %v50
  %478 = vmatpush.msra.mxu0 %v47
  %479 = vmatpush.msra.mxu0 %v44
  %480 = vmatmul.f32.gmra.mxu0 %v232
  %v481 = vpop.f32.mrf.mxu0
  %v482 = vadd.f32 %v298, %v481
  %483 = vmatmul.f32.gmra.mxu0 %v234
  %v484 = vpop.f32.mrf.mxu0
  %v485 = vadd.f32 %v303, %v484
  %486 = vmatmul.f32.gmra.mxu0 %v236
  %v487 = vpop.f32.mrf.mxu0
  %v488 = vadd.f32 %v308, %v487
  %489 = vmatmul.f32.gmra.mxu0 %v238
  %v490 = vpop.f32.mrf.mxu0
  %v491 = vadd.f32 %v313, %v490
  %492 = vmatmul.f32.gmra.mxu0 %v240
  %v493 = vpop.f32.mrf.mxu0
  %v494 = vadd.f32 %v318, %v493
  %495 = vmatmul.f32.gmra.mxu0 %v242
  %v496 = vpop.f32.mrf.mxu0
  %v497 = vadd.f32 %v323, %v496
  %498 = vmatmul.f32.gmra.mxu0 %v244
  %v499 = vpop.f32.mrf.mxu0
  %v500 = vadd.f32 %v328, %v499
  %501 = vmatmul.f32.gmra.mxu0 %v246
  %v502 = vpop.f32.mrf.mxu0
  %v503 = vadd.f32 %v333, %v502
  %504 = vmatmul.f32.gmra.mxu0 %v248
  %v505 = vpop.f32.mrf.mxu0
  %v506 = vadd.f32 %v338, %v505
  %507 = vmatmul.f32.gmra.mxu0 %v250
  %v508 = vpop.f32.mrf.mxu0
  %v509 = vadd.f32 %v343, %v508
  %510 = vmatmul.f32.gmra.mxu0 %v252
  %v511 = vpop.f32.mrf.mxu0
  %v512 = vadd.f32 %v348, %v511
  %513 = vmatmul.f32.gmra.mxu0 %v254
  %v514 = vpop.f32.mrf.mxu0
  %v515 = vadd.f32 %v353, %v514
  %516 = vmatmul.f32.gmra.mxu0 %v256
  %v517 = vpop.f32.mrf.mxu0
  %v518 = vadd.f32 %v358, %v517
  %519 = vmatmul.f32.gmra.mxu0 %v258
  %v520 = vpop.f32.mrf.mxu0
  %v521 = vadd.f32 %v363, %v520
  %522 = vmatmul.f32.gmra.mxu0 %v260
  %v523 = vpop.f32.mrf.mxu0
  %v524 = vadd.f32 %v368, %v523
  %525 = vmatmul.f32.gmra.mxu0 %v262
  %v526 = vpop.f32.mrf.mxu0
  %v527 = vadd.f32 %v373, %v526
  %528 = vmatmul.f32.gmra.mxu0 %v264
  %v529 = vpop.f32.mrf.mxu0
  %v530 = vadd.f32 %v378, %v529
  %531 = vmatmul.f32.gmra.mxu0 %v266
  %v532 = vpop.f32.mrf.mxu0
  %v533 = vadd.f32 %v383, %v532
  %534 = vmatmul.f32.gmra.mxu0 %v268
  %v535 = vpop.f32.mrf.mxu0
  %v536 = vadd.f32 %v388, %v535
  %537 = vmatmul.f32.gmra.mxu0 %v270
  %v538 = vpop.f32.mrf.mxu0
  %v539 = vadd.f32 %v393, %v538
  %540 = vmatmul.f32.gmra.mxu0 %v272
  %v541 = vpop.f32.mrf.mxu0
  %v542 = vadd.f32 %v398, %v541
  %543 = vdwg.mxu0
  %544 = vmatpush.msra.mxu0 0.0
  %545 = vmatpush.msra.mxu0 0.0
  %546 = vmatpush.msra.mxu0 0.0
  %547 = vmatpush.msra.mxu0 0.0
  %548 = vmatpush.msra.mxu0 0.0
  %549 = vmatpush.msra.mxu0 0.0
  %550 = vmatpush.msra.mxu0 0.0
  %551 = vmatpush.msra.mxu0 0.0
  %552 = vmatpush.msra.mxu0 0.0
  %553 = vmatpush.msra.mxu0 0.0
  %554 = vmatpush.msra.mxu0 0.0
  %555 = vmatpush.msra.mxu0 0.0
  %556 = vmatpush.msra.mxu0 %v222
  %557 = vmatpush.msra.mxu0 %v220
  %558 = vmatpush.msra.mxu0 %v218
  %559 = vmatpush.msra.mxu0 %v216
  %560 = vmatmul.f32.gmra.mxu0 %v402
  %v561 = vpop.f32.mrf.mxu0
  %v562 = vadd.f32 %v482, %v561
  %563 = vmatmul.f32.gmra.mxu0 %v405
  %v564 = vpop.f32.mrf.mxu0
  %v565 = vadd.f32 %v485, %v564
  %566 = vmatmul.f32.gmra.mxu0 %v408
  %v567 = vpop.f32.mrf.mxu0
  %v568 = vadd.f32 %v488, %v567
  %569 = vmatmul.f32.gmra.mxu0 %v411
  %v570 = vpop.f32.mrf.mxu0
  %v571 = vadd.f32 %v491, %v570
  %572 = vmatmul.f32.gmra.mxu0 %v414
  %v573 = vpop.f32.mrf.mxu0
  %v574 = vadd.f32 %v494, %v573
  %575 = vmatmul.f32.gmra.mxu0 %v417
  %v576 = vpop.f32.mrf.mxu0
  %v577 = vadd.f32 %v497, %v576
  %578 = vmatmul.f32.gmra.mxu0 %v420
  %v579 = vpop.f32.mrf.mxu0
  %v580 = vadd.f32 %v500, %v579
  %581 = vmatmul.f32.gmra.mxu0 %v423
  %v582 = vpop.f32.mrf.mxu0
  %v583 = vadd.f32 %v503, %v582
  %584 = vmatmul.f32.gmra.mxu0 %v426
  %v585 = vpop.f32.mrf.mxu0
  %v586 = vadd.f32 %v506, %v585
  %587 = vmatmul.f32.gmra.mxu0 %v429
  %v588 = vpop.f32.mrf.mxu0
  %v589 = vadd.f32 %v509, %v588
  %590 = vmatmul.f32.gmra.mxu0 %v432
  %v591 = vpop.f32.mrf.mxu0
  %v592 = vadd.f32 %v512, %v591
  %593 = vmatmul.f32.gmra.mxu0 %v435
  %v594 = vpop.f32.mrf.mxu0
  %v595 = vadd.f32 %v515, %v594
  %596 = vmatmul.f32.gmra.mxu0 %v438
  %v597 = vpop.f32.mrf.mxu0
  %v598 = vadd.f32 %v518, %v597
  %599 = vmatmul.f32.gmra.mxu0 %v441
  %v600 = vpop.f32.mrf.mxu0
  %v601 = vadd.f32 %v521, %v600
  %602 = vmatmul.f32.gmra.mxu0 %v444
  %v603 = vpop.f32.mrf.mxu0
  %v604 = vadd.f32 %v524, %v603
  %605 = vmatmul.f32.gmra.mxu0 %v447
  %v606 = vpop.f32.mrf.mxu0
  %v607 = vadd.f32 %v527, %v606
  %608 = vmatmul.f32.gmra.mxu0 %v450
  %v609 = vpop.f32.mrf.mxu0
  %v610 = vadd.f32 %v530, %v609
  %611 = vmatmul.f32.gmra.mxu0 %v453
  %v612 = vpop.f32.mrf.mxu0
  %v613 = vadd.f32 %v533, %v612
  %614 = vmatmul.f32.gmra.mxu0 %v456
  %v615 = vpop.f32.mrf.mxu0
  %v616 = vadd.f32 %v536, %v615
  %617 = vmatmul.f32.gmra.mxu0 %v459
  %v618 = vpop.f32.mrf.mxu0
  %v619 = vadd.f32 %v539, %v618
  %620 = vmatmul.f32.gmra.mxu0 %v462
  %v621 = vpop.f32.mrf.mxu0
  %v622 = vadd.f32 %v542, %v621
  %623 = vdwg.mxu0
  %624 = vmatpush.msra.mxu0 %v182
  %625 = vmatpush.msra.mxu0 %v180
  %626 = vmatpush.msra.mxu0 %v178
  %627 = vmatpush.msra.mxu0 %v176
  %628 = vmatpush.msra.mxu0 %v141
  %629 = vmatpush.msra.mxu0 %v139
  %630 = vmatpush.msra.mxu0 %v137
  %631 = vmatpush.msra.mxu0 %v135
  %632 = vmatpush.msra.mxu0 %v100
  %633 = vmatpush.msra.mxu0 %v98
  %634 = vmatpush.msra.mxu0 %v96
  %635 = vmatpush.msra.mxu0 %v94
  %636 = vmatpush.msra.mxu0 %v54
  %637 = vmatpush.msra.mxu0 %v51
  %638 = vmatpush.msra.mxu0 %v48
  %639 = vmatpush.msra.mxu0 %v45
  %640 = vmatmul.f32.gmra.mxu0 %v232
  %v641 = vpop.f32.mrf.mxu0
  %v642 = vadd.f32 %v298, %v641
  %643 = vmatmul.f32.gmra.mxu0 %v234
  %v644 = vpop.f32.mrf.mxu0
  %v645 = vadd.f32 %v303, %v644
  %646 = vmatmul.f32.gmra.mxu0 %v236
  %v647 = vpop.f32.mrf.mxu0
  %v648 = vadd.f32 %v308, %v647
  %649 = vmatmul.f32.gmra.mxu0 %v238
  %v650 = vpop.f32.mrf.mxu0
  %v651 = vadd.f32 %v313, %v650
  %652 = vmatmul.f32.gmra.mxu0 %v240
  %v653 = vpop.f32.mrf.mxu0
  %v654 = vadd.f32 %v318, %v653
  %655 = vmatmul.f32.gmra.mxu0 %v242
  %v656 = vpop.f32.mrf.mxu0
  %v657 = vadd.f32 %v323, %v656
  %658 = vmatmul.f32.gmra.mxu0 %v244
  %v659 = vpop.f32.mrf.mxu0
  %v660 = vadd.f32 %v328, %v659
  %661 = vmatmul.f32.gmra.mxu0 %v246
  %v662 = vpop.f32.mrf.mxu0
  %v663 = vadd.f32 %v333, %v662
  %664 = vmatmul.f32.gmra.mxu0 %v248
  %v665 = vpop.f32.mrf.mxu0
  %v666 = vadd.f32 %v338, %v665
  %667 = vmatmul.f32.gmra.mxu0 %v250
  %v668 = vpop.f32.mrf.mxu0
  %v669 = vadd.f32 %v343, %v668
  %670 = vmatmul.f32.gmra.mxu0 %v252
  %v671 = vpop.f32.mrf.mxu0
  %v672 = vadd.f32 %v348, %v671
  %673 = vmatmul.f32.gmra.mxu0 %v254
  %v674 = vpop.f32.mrf.mxu0
  %v675 = vadd.f32 %v353, %v674
  %676 = vmatmul.f32.gmra.mxu0 %v256
  %v677 = vpop.f32.mrf.mxu0
  %v678 = vadd.f32 %v358, %v677
  %679 = vmatmul.f32.gmra.mxu0 %v258
  %v680 = vpop.f32.mrf.mxu0
  %v681 = vadd.f32 %v363, %v680
  %682 = vmatmul.f32.gmra.mxu0 %v260
  %v683 = vpop.f32.mrf.mxu0
  %v684 = vadd.f32 %v368, %v683
  %685 = vmatmul.f32.gmra.mxu0 %v262
  %v686 = vpop.f32.mrf.mxu0
  %v687 = vadd.f32 %v373, %v686
  %688 = vmatmul.f32.gmra.mxu0 %v264
  %v689 = vpop.f32.mrf.mxu0
  %v690 = vadd.f32 %v378, %v689
  %691 = vmatmul.f32.gmra.mxu0 %v266
  %v692 = vpop.f32.mrf.mxu0
  %v693 = vadd.f32 %v383, %v692
  %694 = vmatmul.f32.gmra.mxu0 %v268
  %v695 = vpop.f32.mrf.mxu0
  %v696 = vadd.f32 %v388, %v695
  %697 = vmatmul.f32.gmra.mxu0 %v270
  %v698 = vpop.f32.mrf.mxu0
  %v699 = vadd.f32 %v393, %v698
  %700 = vmatmul.f32.gmra.mxu0 %v272
  %v701 = vpop.f32.mrf.mxu0
  %v702 = vadd.f32 %v398, %v701
  %703 = vdwg.mxu0
  %704 = vmatpush.msra.mxu0 0.0
  %705 = vmatpush.msra.mxu0 0.0
  %706 = vmatpush.msra.mxu0 0.0
  %707 = vmatpush.msra.mxu0 0.0
  %708 = vmatpush.msra.mxu0 0.0
  %709 = vmatpush.msra.mxu0 0.0
  %710 = vmatpush.msra.mxu0 0.0
  %711 = vmatpush.msra.mxu0 0.0
  %712 = vmatpush.msra.mxu0 0.0
  %713 = vmatpush.msra.mxu0 0.0
  %714 = vmatpush.msra.mxu0 0.0
  %715 = vmatpush.msra.mxu0 0.0
  %716 = vmatpush.msra.mxu0 %v223
  %717 = vmatpush.msra.mxu0 %v221
  %718 = vmatpush.msra.mxu0 %v219
  %719 = vmatpush.msra.mxu0 %v217
  %720 = vmatmul.f32.gmra.mxu0 %v402
  %v721 = vpop.f32.mrf.mxu0
  %v722 = vadd.f32 %v642, %v721
  %723 = vmatmul.f32.gmra.mxu0 %v405
  %v724 = vpop.f32.mrf.mxu0
  %v725 = vadd.f32 %v645, %v724
  %726 = vmatmul.f32.gmra.mxu0 %v408
  %v727 = vpop.f32.mrf.mxu0
  %v728 = vadd.f32 %v648, %v727
  %729 = vmatmul.f32.gmra.mxu0 %v411
  %v730 = vpop.f32.mrf.mxu0
  %v731 = vadd.f32 %v651, %v730
  %732 = vmatmul.f32.gmra.mxu0 %v414
  %v733 = vpop.f32.mrf.mxu0
  %v734 = vadd.f32 %v654, %v733
  %735 = vmatmul.f32.gmra.mxu0 %v417
  %v736 = vpop.f32.mrf.mxu0
  %v737 = vadd.f32 %v657, %v736
  %738 = vmatmul.f32.gmra.mxu0 %v420
  %v739 = vpop.f32.mrf.mxu0
  %v740 = vadd.f32 %v660, %v739
  %741 = vmatmul.f32.gmra.mxu0 %v423
  %v742 = vpop.f32.mrf.mxu0
  %v743 = vadd.f32 %v663, %v742
  %744 = vmatmul.f32.gmra.mxu0 %v426
  %v745 = vpop.f32.mrf.mxu0
  %v746 = vadd.f32 %v666, %v745
  %747 = vmatmul.f32.gmra.mxu0 %v429
  %v748 = vpop.f32.mrf.mxu0
  %v749 = vadd.f32 %v669, %v748
  %750 = vmatmul.f32.gmra.mxu0 %v432
  %v751 = vpop.f32.mrf.mxu0
  %v752 = vadd.f32 %v672, %v751
  %753 = vmatmul.f32.gmra.mxu0 %v435
  %v754 = vpop.f32.mrf.mxu0
  %v755 = vadd.f32 %v675, %v754
  %756 = vmatmul.f32.gmra.mxu0 %v438
  %v757 = vpop.f32.mrf.mxu0
  %v758 = vadd.f32 %v678, %v757
  %759 = vmatmul.f32.gmra.mxu0 %v441
  %v760 = vpop.f32.mrf.mxu0
  %v761 = vadd.f32 %v681, %v760
  %762 = vmatmul.f32.gmra.mxu0 %v444
  %v763 = vpop.f32.mrf.mxu0
  %v764 = vadd.f32 %v684, %v763
  %765 = vmatmul.f32.gmra.mxu0 %v447
  %v766 = vpop.f32.mrf.mxu0
  %v767 = vadd.f32 %v687, %v766
  %768 = vmatmul.f32.gmra.mxu0 %v450
  %v769 = vpop.f32.mrf.mxu0
  %v770 = vadd.f32 %v690, %v769
  %771 = vmatmul.f32.gmra.mxu0 %v453
  %v772 = vpop.f32.mrf.mxu0
  %v773 = vadd.f32 %v693, %v772
  %774 = vmatmul.f32.gmra.mxu0 %v456
  %v775 = vpop.f32.mrf.mxu0
  %v776 = vadd.f32 %v696, %v775
  %777 = vmatmul.f32.gmra.mxu0 %v459
  %v778 = vpop.f32.mrf.mxu0
  %v779 = vadd.f32 %v699, %v778
  %780 = vmatmul.f32.gmra.mxu0 %v462
  %v781 = vpop.f32.mrf.mxu0
  %v782 = vadd.f32 %v702, %v781
  %783 = vdwg.mxu0
  %v784 = vmax.f32 %v562, 0.0
  %v785 = vmax.f32 %v722, 0.0
  %v786 = vmax.f32 %v565, 0.0
  %v787 = vmax.f32 %v725, 0.0
  %v788 = vmax.f32 %v568, 0.0
  %v789 = vmax.f32 %v728, 0.0
  %v790 = vmax.f32 %v571, 0.0
  %v791 = vmax.f32 %v731, 0.0
  %v792 = vmax.f32 %v574, 0.0
  %v793 = vmax.f32 %v734, 0.0
  %v794 = vmax.f32 %v577, 0.0
  %v795 = vmax.f32 %v737, 0.0
  %v796 = vmax.f32 %v580, 0.0
  %v797 = vmax.f32 %v740, 0.0
  %v798 = vmax.f32 %v583, 0.0
  %v799 = vmax.f32 %v743, 0.0
  %v800 = vmax.f32 %v586, 0.0
  %v801 = vmax.f32 %v746, 0.0
  %v802 = vmax.f32 %v589, 0.0
  %v803 = vmax.f32 %v749, 0.0
  %v804 = vmax.f32 %v592, 0.0
  %v805 = vmax.f32 %v752, 0.0
  %v806 = vmax.f32 %v595, 0.0
  %v807 = vmax.f32 %v755, 0.0
  %v808 = vmax.f32 %v598, 0.0
  %v809 = vmax.f32 %v758, 0.0
  %v810 = vmax.f32 %v601, 0.0
  %v811 = vmax.f32 %v761, 0.0
  %v812 = vmax.f32 %v604, 0.0
  %v813 = vmax.f32 %v764, 0.0
  %v814 = vmax.f32 %v607, 0.0
  %v815 = vmax.f32 %v767, 0.0
  %v816 = vmax.f32 %v610, 0.0
  %v817 = vmax.f32 %v770, 0.0
  %v818 = vmax.f32 %v613, 0.0
  %v819 = vmax.f32 %v773, 0.0
  %v820 = vmax.f32 %v616, 0.0
  %v821 = vmax.f32 %v776, 0.0
  %v822 = vmax.f32 %v619, 0.0
  %v823 = vmax.f32 %v779, 0.0
  %v824 = vmax.f32 %v622, 0.0
  %v825 = vmax.f32 %v782, 0.0
  %v826 = vld [vmem:[%s5] sm:$0xff]
  %v827 = vld [vmem:[%s5 + $0x8] sm:$0xff]
  %v828 = vld [vmem:[%s5 + $0x10] sm:$0xff]
  %v829 = vld [vmem:[%s5 + $0x18] sm:$0xff]
  %v830 = vld [vmem:[%s5 + $0x20] sm:$0xff]
  %v831 = vld [vmem:[%s5 + $0x28] sm:$0xff]
  %v832 = vld [vmem:[%s5 + $0x30] sm:$0xff]
  %v833 = vld [vmem:[%s5 + $0x38] sm:$0xff]
  %v834 = vld [vmem:[%s5 + $0x40] sm:$0xff]
  %v835 = vld [vmem:[%s5 + $0x48] sm:$0xff]
  %v836 = vld [vmem:[%s5 + $0x50] sm:$0xff]
  %v837 = vld [vmem:[%s5 + $0x58] sm:$0xff]
  %v838 = vld [vmem:[%s5 + $0x60] sm:$0xff]
  %v839 = vld [vmem:[%s5 + $0x68] sm:$0xff]
  %v840 = vld [vmem:[%s5 + $0x70] sm:$0xff]
  %v841 = vld [vmem:[%s5 + $0x78] sm:$0xff]
  %v842 = vld [vmem:[%s5 + $0x80] sm:$0xff]
  %v843 = vld [vmem:[%s5 + $0x88] sm:$0xff]
  %v844 = vld [vmem:[%s5 + $0x90] sm:$0xff]
  %v845 = vld [vmem:[%s5 + $0x98] sm:$0xff]
  %v846 = vld [vmem:[%s5 + $0xa0] sm:$0xff]
  %v847 = vld [vmem:[%s5 + $0xa8] sm:$0xff]
  %v848 = vld [vmem:[%s5 + $0xb0] sm:$0xff]
  %v849 = vld [vmem:[%s5 + $0xb8] sm:$0xff]
  %v850 = vld [vmem:[%s5 + $0xc0] sm:$0xff]
  %v851 = vld [vmem:[%s5 + $0xc8] sm:$0xff]
  %v852 = vld [vmem:[%s5 + $0xd0] sm:$0xff]
  %v853 = vld [vmem:[%s5 + $0xd8] sm:$0xff]
  %v854 = vld [vmem:[%s5 + $0xe0] sm:$0xff]
  %v855 = vld [vmem:[%s5 + $0xe8] sm:$0xff]
  %v856 = vld [vmem:[%s5 + $0xf0] sm:$0xff]
  %v857 = vld [vmem:[%s5 + $0xf8] sm:$0xff]
  %858 = vmatpush.msra.mxu0 %v841
  %859 = vmatpush.msra.mxu0 %v840
  %860 = vmatpush.msra.mxu0 %v839
  %861 = vmatpush.msra.mxu0 %v838
  %862 = vmatpush.msra.mxu0 %v837
  %863 = vmatpush.msra.mxu0 %v836
  %864 = vmatpush.msra.mxu0 %v835
  %865 = vmatpush.msra.mxu0 %v834
  %866 = vmatpush.msra.mxu0 %v833
  %867 = vmatpush.msra.mxu0 %v832
  %868 = vmatpush.msra.mxu0 %v831
  %869 = vmatpush.msra.mxu0 %v830
  %870 = vmatpush.msra.mxu0 %v829
  %871 = vmatpush.msra.mxu0 %v828
  %872 = vmatpush.msra.mxu0 %v827
  %873 = vmatpush.msra.mxu0 %v826
  %874 = vmatmul.f32.gmra.mxu0 %v784
  %v875 = vpop.f32.mrf.mxu0
  %v876 = vadd.f32 0.0, %v875
  %877 = vmatmul.f32.gmra.mxu0 %v786
  %v878 = vpop.f32.mrf.mxu0
  %v879 = vadd.f32 0.0, %v878
  %880 = vmatmul.f32.gmra.mxu0 %v788
  %v881 = vpop.f32.mrf.mxu0
  %v882 = vadd.f32 0.0, %v881
  %883 = vmatmul.f32.gmra.mxu0 %v790
  %v884 = vpop.f32.mrf.mxu0
  %v885 = vadd.f32 0.0, %v884
  %886 = vmatmul.f32.gmra.mxu0 %v792
  %v887 = vpop.f32.mrf.mxu0
  %v888 = vadd.f32 0.0, %v887
  %889 = vmatmul.f32.gmra.mxu0 %v794
  %v890 = vpop.f32.mrf.mxu0
  %v891 = vadd.f32 0.0, %v890
  %892 = vmatmul.f32.gmra.mxu0 %v796
  %v893 = vpop.f32.mrf.mxu0
  %v894 = vadd.f32 0.0, %v893
  %895 = vmatmul.f32.gmra.mxu0 %v798
  %v896 = vpop.f32.mrf.mxu0
  %v897 = vadd.f32 0.0, %v896
  %898 = vmatmul.f32.gmra.mxu0 %v800
  %v899 = vpop.f32.mrf.mxu0
  %v900 = vadd.f32 0.0, %v899
  %901 = vmatmul.f32.gmra.mxu0 %v802
  %v902 = vpop.f32.mrf.mxu0
  %v903 = vadd.f32 0.0, %v902
  %904 = vmatmul.f32.gmra.mxu0 %v804
  %v905 = vpop.f32.mrf.mxu0
  %v906 = vadd.f32 0.0, %v905
  %907 = vmatmul.f32.gmra.mxu0 %v806
  %v908 = vpop.f32.mrf.mxu0
  %v909 = vadd.f32 0.0, %v908
  %910 = vmatmul.f32.gmra.mxu0 %v808
  %v911 = vpop.f32.mrf.mxu0
  %v912 = vadd.f32 0.0, %v911
  %913 = vmatmul.f32.gmra.mxu0 %v810
  %v914 = vpop.f32.mrf.mxu0
  %v915 = vadd.f32 0.0, %v914
  %916 = vmatmul.f32.gmra.mxu0 %v812
  %v917 = vpop.f32.mrf.mxu0
  %v918 = vadd.f32 0.0, %v917
  %919 = vmatmul.f32.gmra.mxu0 %v814
  %v920 = vpop.f32.mrf.mxu0
  %v921 = vadd.f32 0.0, %v920
  %922 = vmatmul.f32.gmra.mxu0 %v816
  %v923 = vpop.f32.mrf.mxu0
  %v924 = vadd.f32 0.0, %v923
  %925 = vmatmul.f32.gmra.mxu0 %v818
  %v926 = vpop.f32.mrf.mxu0
  %v927 = vadd.f32 0.0, %v926
  %928 = vmatmul.f32.gmra.mxu0 %v820
  %v929 = vpop.f32.mrf.mxu0
  %v930 = vadd.f32 0.0, %v929
  %931 = vmatmul.f32.gmra.mxu0 %v822
  %v932 = vpop.f32.mrf.mxu0
  %v933 = vadd.f32 0.0, %v932
  %934 = vmatmul.f32.gmra.mxu0 %v824
  %v935 = vpop.f32.mrf.mxu0
  %v936 = vadd.f32 0.0, %v935
  %937 = vdwg.mxu0
  %938 = vmatpush.msra.mxu0 %v857
  %939 = vmatpush.msra.mxu0 %v856
  %940 = vmatpush.msra.mxu0 %v855
  %941 = vmatpush.msra.mxu0 %v854
  %942 = vmatpush.msra.mxu0 %v853
  %943 = vmatpush.msra.mxu0 %v852
  %944 = vmatpush.msra.mxu0 %v851
  %945 = vmatpush.msra.mxu0 %v850
  %946 = vmatpush.msra.mxu0 %v849
  %947 = vmatpush.msra.mxu0 %v848
  %948 = vmatpush.msra.mxu0 %v847
  %949 = vmatpush.msra.mxu0 %v846
  %950 = vmatpush.msra.mxu0 %v845
  %951 = vmatpush.msra.mxu0 %v844
  %952 = vmatpush.msra.mxu0 %v843
  %953 = vmatpush.msra.mxu0 %v842
  %954 = vmatmul.f32.gmra.mxu0 %v785
  %v955 = vpop.f32.mrf.mxu0
  %v956 = vadd.f32 %v876, %v955
  %957 = vmatmul.f32.gmra.mxu0 %v787
  %v958 = vpop.f32.mrf.mxu0
  %v959 = vadd.f32 %v879, %v958
  %960 = vmatmul.f32.gmra.mxu0 %v789
  %v961 = vpop.f32.mrf.mxu0
  %v962 = vadd.f32 %v882, %v961
  %963 = vmatmul.f32.gmra.mxu0 %v791
  %v964 = vpop.f32.mrf.mxu0
  %v965 = vadd.f32 %v885, %v964
  %966 = vmatmul.f32.gmra.mxu0 %v793
  %v967 = vpop.f32.mrf.mxu0
  %v968 = vadd.f32 %v888, %v967
  %969 = vmatmul.f32.gmra.mxu0 %v795
  %v970 = vpop.f32.mrf.mxu0
  %v971 = vadd.f32 %v891, %v970
  %972 = vmatmul.f32.gmra.mxu0 %v797
  %v973 = vpop.f32.mrf.mxu0
  %v974 = vadd.f32 %v894, %v973
  %975 = vmatmul.f32.gmra.mxu0 %v799
  %v976 = vpop.f32.mrf.mxu0
  %v977 = vadd.f32 %v897, %v976
  %978 = vmatmul.f32.gmra.mxu0 %v801
  %v979 = vpop.f32.mrf.mxu0
  %v980 = vadd.f32 %v900, %v979
  %981 = vmatmul.f32.gmra.mxu0 %v803
  %v982 = vpop.f32.mrf.mxu0
  %v983 = vadd.f32 %v903, %v982
  %984 = vmatmul.f32.gmra.mxu0 %v805
  %v985 = vpop.f32.mrf.mxu0
  %v986 = vadd.f32 %v906, %v985
  %987 = vmatmul.f32.gmra.mxu0 %v807
  %v988 = vpop.f32.mrf.mxu0
  %v989 = vadd.f32 %v909, %v988
  %990 = vmatmul.f32.gmra.mxu0 %v809
  %v991 = vpop.f32.mrf.mxu0
  %v992 = vadd.f32 %v912, %v991
  %993 = vmatmul.f32.gmra.mxu0 %v811
  %v994 = vpop.f32.mrf.mxu0
  %v995 = vadd.f32 %v915, %v994
  %996 = vmatmul.f32.gmra.mxu0 %v813
  %v997 = vpop.f32.mrf.mxu0
  %v998 = vadd.f32 %v918, %v997
  %999 = vmatmul.f32.gmra.mxu0 %v815
  %v1000 = vpop.f32.mrf.mxu0
  %v1001 = vadd.f32 %v921, %v1000
  %1002 = vmatmul.f32.gmra.mxu0 %v817
  %v1003 = vpop.f32.mrf.mxu0
  %v1004 = vadd.f32 %v924, %v1003
  %1005 = vmatmul.f32.gmra.mxu0 %v819
  %v1006 = vpop.f32.mrf.mxu0
  %v1007 = vadd.f32 %v927, %v1006
  %1008 = vmatmul.f32.gmra.mxu0 %v821
  %v1009 = vpop.f32.mrf.mxu0
  %v1010 = vadd.f32 %v930, %v1009
  %1011 = vmatmul.f32.gmra.mxu0 %v823
  %v1012 = vpop.f32.mrf.mxu0
  %v1013 = vadd.f32 %v933, %v1012
  %1014 = vmatmul.f32.gmra.mxu0 %v825
  %v1015 = vpop.f32.mrf.mxu0
  %v1016 = vadd.f32 %v936, %v1015
  %1017 = vdwg.mxu0
  %1039 = vrot.lane.b32.xlu0 %v956, 127
  %v1040 = vpop.permute.xlu0 %1039
  %1041 = vrot.lane.b32.xlu0 %v959, 127
  %v1042 = vpop.permute.xlu0 %1041
  %1043 = vrot.lane.b32.xlu0 %v962, 127
  %v1044 = vpop.permute.xlu0 %1043
  %1045 = vrot.lane.b32.xlu0 %v965, 127
  %v1046 = vpop.permute.xlu0 %1045
  %1047 = vrot.lane.b32.xlu0 %v968, 127
  %v1048 = vpop.permute.xlu0 %1047
  %1049 = vrot.lane.b32.xlu0 %v971, 127
  %v1050 = vpop.permute.xlu0 %1049
  %1051 = vrot.lane.b32.xlu0 %v974, 127
  %v1052 = vpop.permute.xlu0 %1051
  %1053 = vrot.lane.b32.xlu0 %v977, 127
  %v1054 = vpop.permute.xlu0 %1053
  %1055 = vrot.lane.b32.xlu0 %v980, 127
  %v1056 = vpop.permute.xlu0 %1055
  %1057 = vrot.lane.b32.xlu0 %v983, 127
  %v1058 = vpop.permute.xlu0 %1057
  %1059 = vrot.lane.b32.xlu0 %v986, 127
  %v1060 = vpop.permute.xlu0 %1059
  %1061 = vrot.lane.b32.xlu0 %v989, 127
  %v1062 = vpop.permute.xlu0 %1061
  %1063 = vrot.lane.b32.xlu0 %v992, 127
  %v1064 = vpop.permute.xlu0 %1063
  %1065 = vrot.lane.b32.xlu0 %v995, 127
  %v1066 = vpop.permute.xlu0 %1065
  %1067 = vrot.lane.b32.xlu0 %v998, 127
  %v1068 = vpop.permute.xlu0 %1067
  %1069 = vrot.lane.b32.xlu0 %v1001, 127
  %v1070 = vpop.permute.xlu0 %1069
  %1071 = vrot.lane.b32.xlu0 %v1004, 127
  %v1072 = vpop.permute.xlu0 %1071
  %1073 = vrot.lane.b32.xlu0 %v1007, 127
  %v1074 = vpop.permute.xlu0 %1073
  %1075 = vrot.lane.b32.xlu0 %v1010, 127
  %v1076 = vpop.permute.xlu0 %1075
  %1077 = vrot.lane.b32.xlu0 %v1013, 127
  %v1078 = vpop.permute.xlu0 %1077
  %1079 = vrot.lane.b32.xlu0 %v1016, 127
  %v1080 = vpop.permute.xlu0 %1079
  %1102 = vrot.lane.b32.xlu0 %v956, 126
  %v1103 = vpop.permute.xlu0 %1102
  %1104 = vrot.lane.b32.xlu0 %v959, 126
  %v1105 = vpop.permute.xlu0 %1104
  %1106 = vrot.lane.b32.xlu0 %v962, 126
  %v1107 = vpop.permute.xlu0 %1106
  %1108 = vrot.lane.b32.xlu0 %v965, 126
  %v1109 = vpop.permute.xlu0 %1108
  %1110 = vrot.lane.b32.xlu0 %v968, 126
  %v1111 = vpop.permute.xlu0 %1110
  %1112 = vrot.lane.b32.xlu0 %v971, 126
  %v1113 = vpop.permute.xlu0 %1112
  %1114 = vrot.lane.b32.xlu0 %v974, 126
  %v1115 = vpop.permute.xlu0 %1114
  %1116 = vrot.lane.b32.xlu0 %v977, 126
  %v1117 = vpop.permute.xlu0 %1116
  %1118 = vrot.lane.b32.xlu0 %v980, 126
  %v1119 = vpop.permute.xlu0 %1118
  %1120 = vrot.lane.b32.xlu0 %v983, 126
  %v1121 = vpop.permute.xlu0 %1120
  %1122 = vrot.lane.b32.xlu0 %v986, 126
  %v1123 = vpop.permute.xlu0 %1122
  %1124 = vrot.lane.b32.xlu0 %v989, 126
  %v1125 = vpop.permute.xlu0 %1124
  %1126 = vrot.lane.b32.xlu0 %v992, 126
  %v1127 = vpop.permute.xlu0 %1126
  %1128 = vrot.lane.b32.xlu0 %v995, 126
  %v1129 = vpop.permute.xlu0 %1128
  %1130 = vrot.lane.b32.xlu0 %v998, 126
  %v1131 = vpop.permute.xlu0 %1130
  %1132 = vrot.lane.b32.xlu0 %v1001, 126
  %v1133 = vpop.permute.xlu0 %1132
  %1134 = vrot.lane.b32.xlu0 %v1004, 126
  %v1135 = vpop.permute.xlu0 %1134
  %1136 = vrot.lane.b32.xlu0 %v1007, 126
  %v1137 = vpop.permute.xlu0 %1136
  %1138 = vrot.lane.b32.xlu0 %v1010, 126
  %v1139 = vpop.permute.xlu0 %1138
  %1140 = vrot.lane.b32.xlu0 %v1013, 126
  %v1141 = vpop.permute.xlu0 %1140
  %1142 = vrot.lane.b32.xlu0 %v1016, 126
  %v1143 = vpop.permute.xlu0 %1142
  %1165 = vrot.lane.b32.xlu0 %v956, 125
  %v1166 = vpop.permute.xlu0 %1165
  %1167 = vrot.lane.b32.xlu0 %v959, 125
  %v1168 = vpop.permute.xlu0 %1167
  %1169 = vrot.lane.b32.xlu0 %v962, 125
  %v1170 = vpop.permute.xlu0 %1169
  %1171 = vrot.lane.b32.xlu0 %v965, 125
  %v1172 = vpop.permute.xlu0 %1171
  %1173 = vrot.lane.b32.xlu0 %v968, 125
  %v1174 = vpop.permute.xlu0 %1173
  %1175 = vrot.lane.b32.xlu0 %v971, 125
  %v1176 = vpop.permute.xlu0 %1175
  %1177 = vrot.lane.b32.xlu0 %v974, 125
  %v1178 = vpop.permute.xlu0 %1177
  %1179 = vrot.lane.b32.xlu0 %v977, 125
  %v1180 = vpop.permute.xlu0 %1179
  %1181 = vrot.lane.b32.xlu0 %v980, 125
  %v1182 = vpop.permute.xlu0 %1181
  %1183 = vrot.lane.b32.xlu0 %v983, 125
  %v1184 = vpop.permute.xlu0 %1183
  %1185 = vrot.lane.b32.xlu0 %v986, 125
  %v1186 = vpop.permute.xlu0 %1185
  %1187 = vrot.lane.b32.xlu0 %v989, 125
  %v1188 = vpop.permute.xlu0 %1187
  %1189 = vrot.lane.b32.xlu0 %v992, 125
  %v1190 = vpop.permute.xlu0 %1189
  %1191 = vrot.lane.b32.xlu0 %v995, 125
  %v1192 = vpop.permute.xlu0 %1191
  %1193 = vrot.lane.b32.xlu0 %v998, 125
  %v1194 = vpop.permute.xlu0 %1193
  %1195 = vrot.lane.b32.xlu0 %v1001, 125
  %v1196 = vpop.permute.xlu0 %1195
  %1197 = vrot.lane.b32.xlu0 %v1004, 125
  %v1198 = vpop.permute.xlu0 %1197
  %1199 = vrot.lane.b32.xlu0 %v1007, 125
  %v1200 = vpop.permute.xlu0 %1199
  %1201 = vrot.lane.b32.xlu0 %v1010, 125
  %v1202 = vpop.permute.xlu0 %1201
  %1203 = vrot.lane.b32.xlu0 %v1013, 125
  %v1204 = vpop.permute.xlu0 %1203
  %1205 = vrot.lane.b32.xlu0 %v1016, 125
  %v1206 = vpop.permute.xlu0 %1205
  %1228 = vrot.lane.b32.xlu0 %v956, 124
  %v1229 = vpop.permute.xlu0 %1228
  %1230 = vrot.lane.b32.xlu0 %v959, 124
  %v1231 = vpop.permute.xlu0 %1230
  %1232 = vrot.lane.b32.xlu0 %v962, 124
  %v1233 = vpop.permute.xlu0 %1232
  %1234 = vrot.lane.b32.xlu0 %v965, 124
  %v1235 = vpop.permute.xlu0 %1234
  %1236 = vrot.lane.b32.xlu0 %v968, 124
  %v1237 = vpop.permute.xlu0 %1236
  %1238 = vrot.lane.b32.xlu0 %v971, 124
  %v1239 = vpop.permute.xlu0 %1238
  %1240 = vrot.lane.b32.xlu0 %v974, 124
  %v1241 = vpop.permute.xlu0 %1240
  %1242 = vrot.lane.b32.xlu0 %v977, 124
  %v1243 = vpop.permute.xlu0 %1242
  %1244 = vrot.lane.b32.xlu0 %v980, 124
  %v1245 = vpop.permute.xlu0 %1244
  %1246 = vrot.lane.b32.xlu0 %v983, 124
  %v1247 = vpop.permute.xlu0 %1246
  %1248 = vrot.lane.b32.xlu0 %v986, 124
  %v1249 = vpop.permute.xlu0 %1248
  %1250 = vrot.lane.b32.xlu0 %v989, 124
  %v1251 = vpop.permute.xlu0 %1250
  %1252 = vrot.lane.b32.xlu0 %v992, 124
  %v1253 = vpop.permute.xlu0 %1252
  %1254 = vrot.lane.b32.xlu0 %v995, 124
  %v1255 = vpop.permute.xlu0 %1254
  %1256 = vrot.lane.b32.xlu0 %v998, 124
  %v1257 = vpop.permute.xlu0 %1256
  %1258 = vrot.lane.b32.xlu0 %v1001, 124
  %v1259 = vpop.permute.xlu0 %1258
  %1260 = vrot.lane.b32.xlu0 %v1004, 124
  %v1261 = vpop.permute.xlu0 %1260
  %1262 = vrot.lane.b32.xlu0 %v1007, 124
  %v1263 = vpop.permute.xlu0 %1262
  %1264 = vrot.lane.b32.xlu0 %v1010, 124
  %v1265 = vpop.permute.xlu0 %1264
  %1266 = vrot.lane.b32.xlu0 %v1013, 124
  %v1267 = vpop.permute.xlu0 %1266
  %1268 = vrot.lane.b32.xlu0 %v1016, 124
  %v1269 = vpop.permute.xlu0 %1268
  %v1291 = vld [vmem:[%s3] sm:$0xff]
  %v1292 = vld [vmem:[%s3 + $0x8] sm:$0xff]
  %v1293 = vld [vmem:[%s3 + $0x10] sm:$0xff]
  %v1294 = vld [vmem:[%s3 + $0x18] sm:$0xff]
  %v1295 = vld [vmem:[%s3 + $0x20] sm:$0xff]
  %v1296 = vld [vmem:[%s3 + $0x28] sm:$0xff]
  %v1297 = vld [vmem:[%s3 + $0x30] sm:$0xff]
  %v1298 = vld [vmem:[%s3 + $0x38] sm:$0xff]
  %v1299 = vld [vmem:[%s3 + $0x40] sm:$0xff]
  %v1300 = vld [vmem:[%s3 + $0x48] sm:$0xff]
  %v1301 = vld [vmem:[%s3 + $0x50] sm:$0xff]
  %v1302 = vld [vmem:[%s3 + $0x58] sm:$0xff]
  %v1303 = vld [vmem:[%s3 + $0x60] sm:$0xff]
  %v1304 = vld [vmem:[%s3 + $0x68] sm:$0xff]
  %v1305 = vld [vmem:[%s3 + $0x70] sm:$0xff]
  %v1306 = vld [vmem:[%s3 + $0x78] sm:$0xff]
  %v1307 = vld [vmem:[%s3 + $0x80] sm:$0xff]
  %v1308 = vld [vmem:[%s3 + $0x88] sm:$0xff]
  %v1309 = vld [vmem:[%s3 + $0x90] sm:$0xff]
  %v1310 = vld [vmem:[%s3 + $0x98] sm:$0xff]
  %v1311 = vld [vmem:[%s3 + $0xa0] sm:$0xff]
  %v1312 = vld [vmem:[%s3 + $0xa8] sm:$0xff]
  %v1313 = vld [vmem:[%s3 + $0xb0] sm:$0xff]
  %v1314 = vld [vmem:[%s3 + $0xb8] sm:$0xff]
  %v1315 = vld [vmem:[%s3 + $0xc0] sm:$0xff]
  %v1316 = vld [vmem:[%s3 + $0xc8] sm:$0xff]
  %v1317 = vld [vmem:[%s3 + $0xd0] sm:$0xff]
  %v1318 = vld [vmem:[%s3 + $0xd8] sm:$0xff]
  %v1319 = vld [vmem:[%s3 + $0xe0] sm:$0xff]
  %v1320 = vld [vmem:[%s3 + $0xe8] sm:$0xff]
  %v1321 = vld [vmem:[%s3 + $0xf0] sm:$0xff]
  %v1322 = vld [vmem:[%s3 + $0xf8] sm:$0xff]
  %v1323 = vld [vmem:[%s3 + $0x100] sm:$0xff]
  %v1324 = vld [vmem:[%s3 + $0x108] sm:$0xff]
  %v1325 = vld [vmem:[%s3 + $0x110] sm:$0xff]
  %v1326 = vld [vmem:[%s3 + $0x118] sm:$0xff]
  %v1327 = vld [vmem:[%s3 + $0x120] sm:$0xff]
  %v1328 = vld [vmem:[%s3 + $0x128] sm:$0xff]
  %v1329 = vld [vmem:[%s3 + $0x130] sm:$0xff]
  %v1330 = vld [vmem:[%s3 + $0x138] sm:$0xff]
  %v1331 = vld [vmem:[%s3 + $0x140] sm:$0xff]
  %v1332 = vld [vmem:[%s3 + $0x148] sm:$0xff]
  %v1333 = vld [vmem:[%s3 + $0x150] sm:$0xff]
  %v1334 = vld [vmem:[%s3 + $0x158] sm:$0xff]
  %v1335 = vld [vmem:[%s3 + $0x160] sm:$0xff]
  %v1336 = vld [vmem:[%s3 + $0x168] sm:$0xff]
  %v1337 = vld [vmem:[%s3 + $0x170] sm:$0xff]
  %v1338 = vld [vmem:[%s3 + $0x178] sm:$0xff]
  %v1339 = vld [vmem:[%s3 + $0x180] sm:$0xff]
  %v1340 = vld [vmem:[%s3 + $0x188] sm:$0xff]
  %v1341 = vld [vmem:[%s3 + $0x190] sm:$0xff]
  %v1342 = vld [vmem:[%s3 + $0x198] sm:$0xff]
  %v1343 = vld [vmem:[%s3 + $0x1a0] sm:$0xff]
  %v1344 = vld [vmem:[%s3 + $0x1a8] sm:$0xff]
  %v1345 = vld [vmem:[%s3 + $0x1b0] sm:$0xff]
  %v1346 = vld [vmem:[%s3 + $0x1b8] sm:$0xff]
  %v1347 = vld [vmem:[%s3 + $0x1c0] sm:$0xff]
  %v1348 = vld [vmem:[%s3 + $0x1c8] sm:$0xff]
  %v1349 = vld [vmem:[%s3 + $0x1d0] sm:$0xff]
  %v1350 = vld [vmem:[%s3 + $0x1d8] sm:$0xff]
  %v1351 = vld [vmem:[%s3 + $0x1e0] sm:$0xff]
  %v1352 = vld [vmem:[%s3 + $0x1e8] sm:$0xff]
  %v1353 = vld [vmem:[%s3 + $0x1f0] sm:$0xff]
  %v1354 = vld [vmem:[%s3 + $0x1f8] sm:$0xff]
  %v1355 = vld [vmem:[%s3 + $0x200] sm:$0xff]
  %v1356 = vld [vmem:[%s3 + $0x208] sm:$0xff]
  %v1357 = vld [vmem:[%s3 + $0x210] sm:$0xff]
  %v1358 = vld [vmem:[%s3 + $0x218] sm:$0xff]
  %v1359 = vld [vmem:[%s3 + $0x220] sm:$0xff]
  %v1360 = vld [vmem:[%s3 + $0x228] sm:$0xff]
  %v1361 = vld [vmem:[%s3 + $0x230] sm:$0xff]
  %v1362 = vld [vmem:[%s3 + $0x238] sm:$0xff]
  %v1363 = vld [vmem:[%s3 + $0x240] sm:$0xff]
  %v1364 = vld [vmem:[%s3 + $0x248] sm:$0xff]
  %v1365 = vld [vmem:[%s3 + $0x250] sm:$0xff]
  %v1366 = vld [vmem:[%s3 + $0x258] sm:$0xff]
  %v1367 = vld [vmem:[%s3 + $0x260] sm:$0xff]
  %v1368 = vld [vmem:[%s3 + $0x268] sm:$0xff]
  %v1369 = vld [vmem:[%s3 + $0x270] sm:$0xff]
  %v1370 = vld [vmem:[%s3 + $0x278] sm:$0xff]
  %v1371 = vld [vmem:[%s3 + $0x280] sm:$0xff]
  %v1372 = vld [vmem:[%s3 + $0x288] sm:$0xff]
  %v1373 = vld [vmem:[%s3 + $0x290] sm:$0xff]
  %v1374 = vld [vmem:[%s3 + $0x298] sm:$0xff]
  %v1375 = vld [vmem:[%s3 + $0x2a0] sm:$0xff]
  %v1376 = vld [vmem:[%s3 + $0x2a8] sm:$0xff]
  %v1377 = vld [vmem:[%s3 + $0x2b0] sm:$0xff]
  %v1378 = vld [vmem:[%s3 + $0x2b8] sm:$0xff]
  %v1379 = vld [vmem:[%s3 + $0x2c0] sm:$0xff]
  %v1380 = vld [vmem:[%s3 + $0x2c8] sm:$0xff]
  %v1381 = vld [vmem:[%s3 + $0x2d0] sm:$0xff]
  %v1382 = vld [vmem:[%s3 + $0x2d8] sm:$0xff]
  %v1383 = vld [vmem:[%s3 + $0x2e0] sm:$0xff]
  %v1384 = vld [vmem:[%s3 + $0x2e8] sm:$0xff]
  %v1385 = vld [vmem:[%s3 + $0x2f0] sm:$0xff]
  %v1386 = vld [vmem:[%s3 + $0x2f8] sm:$0xff]
  %v1387 = vld [vmem:[%s3 + $0x300] sm:$0xff]
  %v1388 = vld [vmem:[%s3 + $0x308] sm:$0xff]
  %v1389 = vld [vmem:[%s3 + $0x310] sm:$0xff]
  %v1390 = vld [vmem:[%s3 + $0x318] sm:$0xff]
  %v1391 = vld [vmem:[%s3 + $0x320] sm:$0xff]
  %v1392 = vld [vmem:[%s3 + $0x328] sm:$0xff]
  %v1393 = vld [vmem:[%s3 + $0x330] sm:$0xff]
  %v1394 = vld [vmem:[%s3 + $0x338] sm:$0xff]
  %v1395 = vld [vmem:[%s3 + $0x340] sm:$0xff]
  %v1396 = vld [vmem:[%s3 + $0x348] sm:$0xff]
  %v1397 = vld [vmem:[%s3 + $0x350] sm:$0xff]
  %v1398 = vld [vmem:[%s3 + $0x358] sm:$0xff]
  %v1399 = vld [vmem:[%s3 + $0x360] sm:$0xff]
  %v1400 = vld [vmem:[%s3 + $0x368] sm:$0xff]
  %v1401 = vld [vmem:[%s3 + $0x370] sm:$0xff]
  %v1402 = vld [vmem:[%s3 + $0x378] sm:$0xff]
  %v1403 = vld [vmem:[%s3 + $0x380] sm:$0xff]
  %v1404 = vld [vmem:[%s3 + $0x388] sm:$0xff]
  %v1405 = vld [vmem:[%s3 + $0x390] sm:$0xff]
  %v1406 = vld [vmem:[%s3 + $0x398] sm:$0xff]
  %v1407 = vld [vmem:[%s3 + $0x3a0] sm:$0xff]
  %v1408 = vld [vmem:[%s3 + $0x3a8] sm:$0xff]
  %v1409 = vld [vmem:[%s3 + $0x3b0] sm:$0xff]
  %v1410 = vld [vmem:[%s3 + $0x3b8] sm:$0xff]
  %v1411 = vld [vmem:[%s3 + $0x3c0] sm:$0xff]
  %v1412 = vld [vmem:[%s3 + $0x3c8] sm:$0xff]
  %v1413 = vld [vmem:[%s3 + $0x3d0] sm:$0xff]
  %v1414 = vld [vmem:[%s3 + $0x3d8] sm:$0xff]
  %v1415 = vld [vmem:[%s3 + $0x3e0] sm:$0xff]
  %v1416 = vld [vmem:[%s3 + $0x3e8] sm:$0xff]
  %v1417 = vld [vmem:[%s3 + $0x3f0] sm:$0xff]
  %v1418 = vld [vmem:[%s3 + $0x3f8] sm:$0xff]
  %v1419 = vld [vmem:[%s3 + $0x400] sm:$0xff]
  %v1420 = vld [vmem:[%s3 + $0x408] sm:$0xff]
  %v1421 = vld [vmem:[%s3 + $0x410] sm:$0xff]
  %v1422 = vld [vmem:[%s3 + $0x418] sm:$0xff]
  %v1423 = vld [vmem:[%s3 + $0x420] sm:$0xff]
  %v1424 = vld [vmem:[%s3 + $0x428] sm:$0xff]
  %v1425 = vld [vmem:[%s3 + $0x430] sm:$0xff]
  %v1426 = vld [vmem:[%s3 + $0x438] sm:$0xff]
  %v1427 = vld [vmem:[%s3 + $0x440] sm:$0xff]
  %v1428 = vld [vmem:[%s3 + $0x448] sm:$0xff]
  %v1429 = vld [vmem:[%s3 + $0x450] sm:$0xff]
  %v1430 = vld [vmem:[%s3 + $0x458] sm:$0xff]
  %v1431 = vld [vmem:[%s4] sm:$0xff]
  %v1432 = vld [vmem:[%s4 + $0x8] sm:$0xff]
  %v1433 = vld [vmem:[%s4 + $0x10] sm:$0xff]
  %v1434 = vld [vmem:[%s4 + $0x18] sm:$0xff]
  %v1435 = vld [vmem:[%s4 + $0x20] sm:$0xff]
  %v1436 = vld [vmem:[%s4 + $0x28] sm:$0xff]
  %v1437 = vld [vmem:[%s4 + $0x30] sm:$0xff]
  %v1438 = vld [vmem:[%s4 + $0x38] sm:$0xff]
  %v1439 = vld [vmem:[%s4 + $0x40] sm:$0xff]
  %v1440 = vld [vmem:[%s4 + $0x48] sm:$0xff]
  %v1441 = vld [vmem:[%s4 + $0x50] sm:$0xff]
  %v1442 = vld [vmem:[%s4 + $0x58] sm:$0xff]
  %v1443 = vld [vmem:[%s4 + $0x60] sm:$0xff]
  %v1444 = vld [vmem:[%s4 + $0x68] sm:$0xff]
  %v1445 = vld [vmem:[%s4 + $0x70] sm:$0xff]
  %v1446 = vld [vmem:[%s4 + $0x78] sm:$0xff]
  %v1447 = vld [vmem:[%s4 + $0x80] sm:$0xff]
  %v1448 = vld [vmem:[%s4 + $0x88] sm:$0xff]
  %v1449 = vld [vmem:[%s4 + $0x90] sm:$0xff]
  %v1450 = vld [vmem:[%s4 + $0x98] sm:$0xff]
  %1452 = vset.pattern.permute.xlu0 0
  %1453 = vperm.xlu0 %1452, %v1431
  %v1454 = vpop.permute.xlu0 %1453
  %1457 = vset.pattern.permute.xlu0 0
  %1458 = vperm.xlu0 %1457, %v1432
  %v1459 = vpop.permute.xlu0 %1458
  %1462 = vset.pattern.permute.xlu0 0
  %1463 = vperm.xlu0 %1462, %v1433
  %v1464 = vpop.permute.xlu0 %1463
  %1467 = vset.pattern.permute.xlu0 0
  %1468 = vperm.xlu0 %1467, %v1434
  %v1469 = vpop.permute.xlu0 %1468
  %1472 = vset.pattern.permute.xlu0 0
  %1473 = vperm.xlu0 %1472, %v1435
  %v1474 = vpop.permute.xlu0 %1473
  %1477 = vset.pattern.permute.xlu0 0
  %1478 = vperm.xlu0 %1477, %v1436
  %v1479 = vpop.permute.xlu0 %1478
  %1482 = vset.pattern.permute.xlu0 0
  %1483 = vperm.xlu0 %1482, %v1437
  %v1484 = vpop.permute.xlu0 %1483
  %1487 = vset.pattern.permute.xlu0 0
  %1488 = vperm.xlu0 %1487, %v1438
  %v1489 = vpop.permute.xlu0 %1488
  %1492 = vset.pattern.permute.xlu0 0
  %1493 = vperm.xlu0 %1492, %v1439
  %v1494 = vpop.permute.xlu0 %1493
  %1497 = vset.pattern.permute.xlu0 0
  %1498 = vperm.xlu0 %1497, %v1440
  %v1499 = vpop.permute.xlu0 %1498
  %1502 = vset.pattern.permute.xlu0 0
  %1503 = vperm.xlu0 %1502, %v1441
  %v1504 = vpop.permute.xlu0 %1503
  %1507 = vset.pattern.permute.xlu0 0
  %1508 = vperm.xlu0 %1507, %v1442
  %v1509 = vpop.permute.xlu0 %1508
  %1512 = vset.pattern.permute.xlu0 0
  %1513 = vperm.xlu0 %1512, %v1443
  %v1514 = vpop.permute.xlu0 %1513
  %1517 = vset.pattern.permute.xlu0 0
  %1518 = vperm.xlu0 %1517, %v1444
  %v1519 = vpop.permute.xlu0 %1518
  %1522 = vset.pattern.permute.xlu0 0
  %1523 = vperm.xlu0 %1522, %v1445
  %v1524 = vpop.permute.xlu0 %1523
  %1527 = vset.pattern.permute.xlu0 0
  %1528 = vperm.xlu0 %1527, %v1446
  %v1529 = vpop.permute.xlu0 %1528
  %1532 = vset.pattern.permute.xlu0 0
  %1533 = vperm.xlu0 %1532, %v1447
  %v1534 = vpop.permute.xlu0 %1533
  %1537 = vset.pattern.permute.xlu0 0
  %1538 = vperm.xlu0 %1537, %v1448
  %v1539 = vpop.permute.xlu0 %1538
  %1542 = vset.pattern.permute.xlu0 0
  %1543 = vperm.xlu0 %1542, %v1449
  %v1544 = vpop.permute.xlu0 %1543
  %1547 = vset.pattern.permute.xlu0 0
  %1548 = vperm.xlu0 %1547, %v1450
  %v1549 = vpop.permute.xlu0 %1548
  %vm1551 = vcmask 588800
  %v1553 = vsel %vm1551, %v1297, 0
  %v1556 = vsel %vm1551, %v1304, 0
  %v1559 = vsel %vm1551, %v1311, 0
  %v1562 = vsel %vm1551, %v1318, 0
  %v1565 = vsel %vm1551, %v1325, 0
  %v1568 = vsel %vm1551, %v1332, 0
  %v1571 = vsel %vm1551, %v1339, 0
  %v1574 = vsel %vm1551, %v1346, 0
  %v1577 = vsel %vm1551, %v1353, 0
  %v1580 = vsel %vm1551, %v1360, 0
  %v1583 = vsel %vm1551, %v1367, 0
  %v1586 = vsel %vm1551, %v1374, 0
  %v1589 = vsel %vm1551, %v1381, 0
  %v1592 = vsel %vm1551, %v1388, 0
  %v1595 = vsel %vm1551, %v1395, 0
  %v1598 = vsel %vm1551, %v1402, 0
  %v1601 = vsel %vm1551, %v1409, 0
  %v1604 = vsel %vm1551, %v1416, 0
  %v1607 = vsel %vm1551, %v1423, 0
  %v1610 = vsel %vm1551, %v1430, 0
  %1612 = vmatpush.msra.mxu0 %v1001
  %1613 = vmatpush.msra.mxu0 %v998
  %1614 = vmatpush.msra.mxu0 %v995
  %1615 = vmatpush.msra.mxu0 %v992
  %1616 = vmatpush.msra.mxu0 %v989
  %1617 = vmatpush.msra.mxu0 %v986
  %1618 = vmatpush.msra.mxu0 %v983
  %1619 = vmatpush.msra.mxu0 %v980
  %1620 = vmatpush.msra.mxu0 %v977
  %1621 = vmatpush.msra.mxu0 %v974
  %1622 = vmatpush.msra.mxu0 %v971
  %1623 = vmatpush.msra.mxu0 %v968
  %1624 = vmatpush.msra.mxu0 %v965
  %1625 = vmatpush.msra.mxu0 %v962
  %1626 = vmatpush.msra.mxu0 %v959
  %1627 = vmatpush.msra.mxu0 %v956
  %1628 = vmatmul.f32.gmra.mxu0 %v1291
  %v1629 = vpop.f32.mrf.mxu0
  %v1630 = vadd.f32 %v1454, %v1629
  %1631 = vmatmul.f32.gmra.mxu0 %v1298
  %v1632 = vpop.f32.mrf.mxu0
  %v1633 = vadd.f32 %v1459, %v1632
  %1634 = vmatmul.f32.gmra.mxu0 %v1305
  %v1635 = vpop.f32.mrf.mxu0
  %v1636 = vadd.f32 %v1464, %v1635
  %1637 = vmatmul.f32.gmra.mxu0 %v1312
  %v1638 = vpop.f32.mrf.mxu0
  %v1639 = vadd.f32 %v1469, %v1638
  %1640 = vmatmul.f32.gmra.mxu0 %v1319
  %v1641 = vpop.f32.mrf.mxu0
  %v1642 = vadd.f32 %v1474, %v1641
  %1643 = vmatmul.f32.gmra.mxu0 %v1326
  %v1644 = vpop.f32.mrf.mxu0
  %v1645 = vadd.f32 %v1479, %v1644
  %1646 = vmatmul.f32.gmra.mxu0 %v1333
  %v1647 = vpop.f32.mrf.mxu0
  %v1648 = vadd.f32 %v1484, %v1647
  %1649 = vmatmul.f32.gmra.mxu0 %v1340
  %v1650 = vpop.f32.mrf.mxu0
  %v1651 = vadd.f32 %v1489, %v1650
  %1652 = vmatmul.f32.gmra.mxu0 %v1347
  %v1653 = vpop.f32.mrf.mxu0
  %v1654 = vadd.f32 %v1494, %v1653
  %1655 = vmatmul.f32.gmra.mxu0 %v1354
  %v1656 = vpop.f32.mrf.mxu0
  %v1657 = vadd.f32 %v1499, %v1656
  %1658 = vmatmul.f32.gmra.mxu0 %v1361
  %v1659 = vpop.f32.mrf.mxu0
  %v1660 = vadd.f32 %v1504, %v1659
  %1661 = vmatmul.f32.gmra.mxu0 %v1368
  %v1662 = vpop.f32.mrf.mxu0
  %v1663 = vadd.f32 %v1509, %v1662
  %1664 = vmatmul.f32.gmra.mxu0 %v1375
  %v1665 = vpop.f32.mrf.mxu0
  %v1666 = vadd.f32 %v1514, %v1665
  %1667 = vmatmul.f32.gmra.mxu0 %v1382
  %v1668 = vpop.f32.mrf.mxu0
  %v1669 = vadd.f32 %v1519, %v1668
  %1670 = vmatmul.f32.gmra.mxu0 %v1389
  %v1671 = vpop.f32.mrf.mxu0
  %v1672 = vadd.f32 %v1524, %v1671
  %1673 = vmatmul.f32.gmra.mxu0 %v1396
  %v1674 = vpop.f32.mrf.mxu0
  %v1675 = vadd.f32 %v1529, %v1674
  %1676 = vmatmul.f32.gmra.mxu0 %v1403
  %v1677 = vpop.f32.mrf.mxu0
  %v1678 = vadd.f32 %v1534, %v1677
  %1679 = vmatmul.f32.gmra.mxu0 %v1410
  %v1680 = vpop.f32.mrf.mxu0
  %v1681 = vadd.f32 %v1539, %v1680
  %1682 = vmatmul.f32.gmra.mxu0 %v1417
  %v1683 = vpop.f32.mrf.mxu0
  %v1684 = vadd.f32 %v1544, %v1683
  %1685 = vmatmul.f32.gmra.mxu0 %v1424
  %v1686 = vpop.f32.mrf.mxu0
  %v1687 = vadd.f32 %v1549, %v1686
  %1688 = vdwg.mxu0
  %1689 = vmatpush.msra.mxu0 %v1060
  %1690 = vmatpush.msra.mxu0 %v1058
  %1691 = vmatpush.msra.mxu0 %v1056
  %1692 = vmatpush.msra.mxu0 %v1054
  %1693 = vmatpush.msra.mxu0 %v1052
  %1694 = vmatpush.msra.mxu0 %v1050
  %1695 = vmatpush.msra.mxu0 %v1048
  %1696 = vmatpush.msra.mxu0 %v1046
  %1697 = vmatpush.msra.mxu0 %v1044
  %1698 = vmatpush.msra.mxu0 %v1042
  %1699 = vmatpush.msra.mxu0 %v1040
  %1700 = vmatpush.msra.mxu0 %v1016
  %1701 = vmatpush.msra.mxu0 %v1013
  %1702 = vmatpush.msra.mxu0 %v1010
  %1703 = vmatpush.msra.mxu0 %v1007
  %1704 = vmatpush.msra.mxu0 %v1004
  %1705 = vmatmul.f32.gmra.mxu0 %v1292
  %v1706 = vpop.f32.mrf.mxu0
  %v1707 = vadd.f32 %v1630, %v1706
  %1708 = vmatmul.f32.gmra.mxu0 %v1299
  %v1709 = vpop.f32.mrf.mxu0
  %v1710 = vadd.f32 %v1633, %v1709
  %1711 = vmatmul.f32.gmra.mxu0 %v1306
  %v1712 = vpop.f32.mrf.mxu0
  %v1713 = vadd.f32 %v1636, %v1712
  %1714 = vmatmul.f32.gmra.mxu0 %v1313
  %v1715 = vpop.f32.mrf.mxu0
  %v1716 = vadd.f32 %v1639, %v1715
  %1717 = vmatmul.f32.gmra.mxu0 %v1320
  %v1718 = vpop.f32.mrf.mxu0
  %v1719 = vadd.f32 %v1642, %v1718
  %1720 = vmatmul.f32.gmra.mxu0 %v1327
  %v1721 = vpop.f32.mrf.mxu0
  %v1722 = vadd.f32 %v1645, %v1721
  %1723 = vmatmul.f32.gmra.mxu0 %v1334
  %v1724 = vpop.f32.mrf.mxu0
  %v1725 = vadd.f32 %v1648, %v1724
  %1726 = vmatmul.f32.gmra.mxu0 %v1341
  %v1727 = vpop.f32.mrf.mxu0
  %v1728 = vadd.f32 %v1651, %v1727
  %1729 = vmatmul.f32.gmra.mxu0 %v1348
  %v1730 = vpop.f32.mrf.mxu0
  %v1731 = vadd.f32 %v1654, %v1730
  %1732 = vmatmul.f32.gmra.mxu0 %v1355
  %v1733 = vpop.f32.mrf.mxu0
  %v1734 = vadd.f32 %v1657, %v1733
  %1735 = vmatmul.f32.gmra.mxu0 %v1362
  %v1736 = vpop.f32.mrf.mxu0
  %v1737 = vadd.f32 %v1660, %v1736
  %1738 = vmatmul.f32.gmra.mxu0 %v1369
  %v1739 = vpop.f32.mrf.mxu0
  %v1740 = vadd.f32 %v1663, %v1739
  %1741 = vmatmul.f32.gmra.mxu0 %v1376
  %v1742 = vpop.f32.mrf.mxu0
  %v1743 = vadd.f32 %v1666, %v1742
  %1744 = vmatmul.f32.gmra.mxu0 %v1383
  %v1745 = vpop.f32.mrf.mxu0
  %v1746 = vadd.f32 %v1669, %v1745
  %1747 = vmatmul.f32.gmra.mxu0 %v1390
  %v1748 = vpop.f32.mrf.mxu0
  %v1749 = vadd.f32 %v1672, %v1748
  %1750 = vmatmul.f32.gmra.mxu0 %v1397
  %v1751 = vpop.f32.mrf.mxu0
  %v1752 = vadd.f32 %v1675, %v1751
  %1753 = vmatmul.f32.gmra.mxu0 %v1404
  %v1754 = vpop.f32.mrf.mxu0
  %v1755 = vadd.f32 %v1678, %v1754
  %1756 = vmatmul.f32.gmra.mxu0 %v1411
  %v1757 = vpop.f32.mrf.mxu0
  %v1758 = vadd.f32 %v1681, %v1757
  %1759 = vmatmul.f32.gmra.mxu0 %v1418
  %v1760 = vpop.f32.mrf.mxu0
  %v1761 = vadd.f32 %v1684, %v1760
  %1762 = vmatmul.f32.gmra.mxu0 %v1425
  %v1763 = vpop.f32.mrf.mxu0
  %v1764 = vadd.f32 %v1687, %v1763
  %1765 = vdwg.mxu0
  %1766 = vmatpush.msra.mxu0 %v1113
  %1767 = vmatpush.msra.mxu0 %v1111
  %1768 = vmatpush.msra.mxu0 %v1109
  %1769 = vmatpush.msra.mxu0 %v1107
  %1770 = vmatpush.msra.mxu0 %v1105
  %1771 = vmatpush.msra.mxu0 %v1103
  %1772 = vmatpush.msra.mxu0 %v1080
  %1773 = vmatpush.msra.mxu0 %v1078
  %1774 = vmatpush.msra.mxu0 %v1076
  %1775 = vmatpush.msra.mxu0 %v1074
  %1776 = vmatpush.msra.mxu0 %v1072
  %1777 = vmatpush.msra.mxu0 %v1070
  %1778 = vmatpush.msra.mxu0 %v1068
  %1779 = vmatpush.msra.mxu0 %v1066
  %1780 = vmatpush.msra.mxu0 %v1064
  %1781 = vmatpush.msra.mxu0 %v1062
  %1782 = vmatmul.f32.gmra.mxu0 %v1293
  %v1783 = vpop.f32.mrf.mxu0
  %v1784 = vadd.f32 %v1707, %v1783
  %1785 = vmatmul.f32.gmra.mxu0 %v1300
  %v1786 = vpop.f32.mrf.mxu0
  %v1787 = vadd.f32 %v1710, %v1786
  %1788 = vmatmul.f32.gmra.mxu0 %v1307
  %v1789 = vpop.f32.mrf.mxu0
  %v1790 = vadd.f32 %v1713, %v1789
  %1791 = vmatmul.f32.gmra.mxu0 %v1314
  %v1792 = vpop.f32.mrf.mxu0
  %v1793 = vadd.f32 %v1716, %v1792
  %1794 = vmatmul.f32.gmra.mxu0 %v1321
  %v1795 = vpop.f32.mrf.mxu0
  %v1796 = vadd.f32 %v1719, %v1795
  %1797 = vmatmul.f32.gmra.mxu0 %v1328
  %v1798 = vpop.f32.mrf.mxu0
  %v1799 = vadd.f32 %v1722, %v1798
  %1800 = vmatmul.f32.gmra.mxu0 %v1335
  %v1801 = vpop.f32.mrf.mxu0
  %v1802 = vadd.f32 %v1725, %v1801
  %1803 = vmatmul.f32.gmra.mxu0 %v1342
  %v1804 = vpop.f32.mrf.mxu0
  %v1805 = vadd.f32 %v1728, %v1804
  %1806 = vmatmul.f32.gmra.mxu0 %v1349
  %v1807 = vpop.f32.mrf.mxu0
  %v1808 = vadd.f32 %v1731, %v1807
  %1809 = vmatmul.f32.gmra.mxu0 %v1356
  %v1810 = vpop.f32.mrf.mxu0
  %v1811 = vadd.f32 %v1734, %v1810
  %1812 = vmatmul.f32.gmra.mxu0 %v1363
  %v1813 = vpop.f32.mrf.mxu0
  %v1814 = vadd.f32 %v1737, %v1813
  %1815 = vmatmul.f32.gmra.mxu0 %v1370
  %v1816 = vpop.f32.mrf.mxu0
  %v1817 = vadd.f32 %v1740, %v1816
  %1818 = vmatmul.f32.gmra.mxu0 %v1377
  %v1819 = vpop.f32.mrf.mxu0
  %v1820 = vadd.f32 %v1743, %v1819
  %1821 = vmatmul.f32.gmra.mxu0 %v1384
  %v1822 = vpop.f32.mrf.mxu0
  %v1823 = vadd.f32 %v1746, %v1822
  %1824 = vmatmul.f32.gmra.mxu0 %v1391
  %v1825 = vpop.f32.mrf.mxu0
  %v1826 = vadd.f32 %v1749, %v1825
  %1827 = vmatmul.f32.gmra.mxu0 %v1398
  %v1828 = vpop.f32.mrf.mxu0
  %v1829 = vadd.f32 %v1752, %v1828
  %1830 = vmatmul.f32.gmra.mxu0 %v1405
  %v1831 = vpop.f32.mrf.mxu0
  %v1832 = vadd.f32 %v1755, %v1831
  %1833 = vmatmul.f32.gmra.mxu0 %v1412
  %v1834 = vpop.f32.mrf.mxu0
  %v1835 = vadd.f32 %v1758, %v1834
  %1836 = vmatmul.f32.gmra.mxu0 %v1419
  %v1837 = vpop.f32.mrf.mxu0
  %v1838 = vadd.f32 %v1761, %v1837
  %1839 = vmatmul.f32.gmra.mxu0 %v1426
  %v1840 = vpop.f32.mrf.mxu0
  %v1841 = vadd.f32 %v1764, %v1840
  %1842 = vdwg.mxu0
  %1843 = vmatpush.msra.mxu0 %v1166
  %1844 = vmatpush.msra.mxu0 %v1143
  %1845 = vmatpush.msra.mxu0 %v1141
  %1846 = vmatpush.msra.mxu0 %v1139
  %1847 = vmatpush.msra.mxu0 %v1137
  %1848 = vmatpush.msra.mxu0 %v1135
  %1849 = vmatpush.msra.mxu0 %v1133
  %1850 = vmatpush.msra.mxu0 %v1131
  %1851 = vmatpush.msra.mxu0 %v1129
  %1852 = vmatpush.msra.mxu0 %v1127
  %1853 = vmatpush.msra.mxu0 %v1125
  %1854 = vmatpush.msra.mxu0 %v1123
  %1855 = vmatpush.msra.mxu0 %v1121
  %1856 = vmatpush.msra.mxu0 %v1119
  %1857 = vmatpush.msra.mxu0 %v1117
  %1858 = vmatpush.msra.mxu0 %v1115
  %1859 = vmatmul.f32.gmra.mxu0 %v1294
  %v1860 = vpop.f32.mrf.mxu0
  %v1861 = vadd.f32 %v1784, %v1860
  %1862 = vmatmul.f32.gmra.mxu0 %v1301
  %v1863 = vpop.f32.mrf.mxu0
  %v1864 = vadd.f32 %v1787, %v1863
  %1865 = vmatmul.f32.gmra.mxu0 %v1308
  %v1866 = vpop.f32.mrf.mxu0
  %v1867 = vadd.f32 %v1790, %v1866
  %1868 = vmatmul.f32.gmra.mxu0 %v1315
  %v1869 = vpop.f32.mrf.mxu0
  %v1870 = vadd.f32 %v1793, %v1869
  %1871 = vmatmul.f32.gmra.mxu0 %v1322
  %v1872 = vpop.f32.mrf.mxu0
  %v1873 = vadd.f32 %v1796, %v1872
  %1874 = vmatmul.f32.gmra.mxu0 %v1329
  %v1875 = vpop.f32.mrf.mxu0
  %v1876 = vadd.f32 %v1799, %v1875
  %1877 = vmatmul.f32.gmra.mxu0 %v1336
  %v1878 = vpop.f32.mrf.mxu0
  %v1879 = vadd.f32 %v1802, %v1878
  %1880 = vmatmul.f32.gmra.mxu0 %v1343
  %v1881 = vpop.f32.mrf.mxu0
  %v1882 = vadd.f32 %v1805, %v1881
  %1883 = vmatmul.f32.gmra.mxu0 %v1350
  %v1884 = vpop.f32.mrf.mxu0
  %v1885 = vadd.f32 %v1808, %v1884
  %1886 = vmatmul.f32.gmra.mxu0 %v1357
  %v1887 = vpop.f32.mrf.mxu0
  %v1888 = vadd.f32 %v1811, %v1887
  %1889 = vmatmul.f32.gmra.mxu0 %v1364
  %v1890 = vpop.f32.mrf.mxu0
  %v1891 = vadd.f32 %v1814, %v1890
  %1892 = vmatmul.f32.gmra.mxu0 %v1371
  %v1893 = vpop.f32.mrf.mxu0
  %v1894 = vadd.f32 %v1817, %v1893
  %1895 = vmatmul.f32.gmra.mxu0 %v1378
  %v1896 = vpop.f32.mrf.mxu0
  %v1897 = vadd.f32 %v1820, %v1896
  %1898 = vmatmul.f32.gmra.mxu0 %v1385
  %v1899 = vpop.f32.mrf.mxu0
  %v1900 = vadd.f32 %v1823, %v1899
  %1901 = vmatmul.f32.gmra.mxu0 %v1392
  %v1902 = vpop.f32.mrf.mxu0
  %v1903 = vadd.f32 %v1826, %v1902
  %1904 = vmatmul.f32.gmra.mxu0 %v1399
  %v1905 = vpop.f32.mrf.mxu0
  %v1906 = vadd.f32 %v1829, %v1905
  %1907 = vmatmul.f32.gmra.mxu0 %v1406
  %v1908 = vpop.f32.mrf.mxu0
  %v1909 = vadd.f32 %v1832, %v1908
  %1910 = vmatmul.f32.gmra.mxu0 %v1413
  %v1911 = vpop.f32.mrf.mxu0
  %v1912 = vadd.f32 %v1835, %v1911
  %1913 = vmatmul.f32.gmra.mxu0 %v1420
  %v1914 = vpop.f32.mrf.mxu0
  %v1915 = vadd.f32 %v1838, %v1914
  %1916 = vmatmul.f32.gmra.mxu0 %v1427
  %v1917 = vpop.f32.mrf.mxu0
  %v1918 = vadd.f32 %v1841, %v1917
  %1919 = vdwg.mxu0
  %1920 = vmatpush.msra.mxu0 %v1198
  %1921 = vmatpush.msra.mxu0 %v1196
  %1922 = vmatpush.msra.mxu0 %v1194
  %1923 = vmatpush.msra.mxu0 %v1192
  %1924 = vmatpush.msra.mxu0 %v1190
  %1925 = vmatpush.msra.mxu0 %v1188
  %1926 = vmatpush.msra.mxu0 %v1186
  %1927 = vmatpush.msra.mxu0 %v1184
  %1928 = vmatpush.msra.mxu0 %v1182
  %1929 = vmatpush.msra.mxu0 %v1180
  %1930 = vmatpush.msra.mxu0 %v1178
  %1931 = vmatpush.msra.mxu0 %v1176
  %1932 = vmatpush.msra.mxu0 %v1174
  %1933 = vmatpush.msra.mxu0 %v1172
  %1934 = vmatpush.msra.mxu0 %v1170
  %1935 = vmatpush.msra.mxu0 %v1168
  %1936 = vmatmul.f32.gmra.mxu0 %v1295
  %v1937 = vpop.f32.mrf.mxu0
  %v1938 = vadd.f32 %v1861, %v1937
  %1939 = vmatmul.f32.gmra.mxu0 %v1302
  %v1940 = vpop.f32.mrf.mxu0
  %v1941 = vadd.f32 %v1864, %v1940
  %1942 = vmatmul.f32.gmra.mxu0 %v1309
  %v1943 = vpop.f32.mrf.mxu0
  %v1944 = vadd.f32 %v1867, %v1943
  %1945 = vmatmul.f32.gmra.mxu0 %v1316
  %v1946 = vpop.f32.mrf.mxu0
  %v1947 = vadd.f32 %v1870, %v1946
  %1948 = vmatmul.f32.gmra.mxu0 %v1323
  %v1949 = vpop.f32.mrf.mxu0
  %v1950 = vadd.f32 %v1873, %v1949
  %1951 = vmatmul.f32.gmra.mxu0 %v1330
  %v1952 = vpop.f32.mrf.mxu0
  %v1953 = vadd.f32 %v1876, %v1952
  %1954 = vmatmul.f32.gmra.mxu0 %v1337
  %v1955 = vpop.f32.mrf.mxu0
  %v1956 = vadd.f32 %v1879, %v1955
  %1957 = vmatmul.f32.gmra.mxu0 %v1344
  %v1958 = vpop.f32.mrf.mxu0
  %v1959 = vadd.f32 %v1882, %v1958
  %1960 = vmatmul.f32.gmra.mxu0 %v1351
  %v1961 = vpop.f32.mrf.mxu0
  %v1962 = vadd.f32 %v1885, %v1961
  %1963 = vmatmul.f32.gmra.mxu0 %v1358
  %v1964 = vpop.f32.mrf.mxu0
  %v1965 = vadd.f32 %v1888, %v1964
  %1966 = vmatmul.f32.gmra.mxu0 %v1365
  %v1967 = vpop.f32.mrf.mxu0
  %v1968 = vadd.f32 %v1891, %v1967
  %1969 = vmatmul.f32.gmra.mxu0 %v1372
  %v1970 = vpop.f32.mrf.mxu0
  %v1971 = vadd.f32 %v1894, %v1970
  %1972 = vmatmul.f32.gmra.mxu0 %v1379
  %v1973 = vpop.f32.mrf.mxu0
  %v1974 = vadd.f32 %v1897, %v1973
  %1975 = vmatmul.f32.gmra.mxu0 %v1386
  %v1976 = vpop.f32.mrf.mxu0
  %v1977 = vadd.f32 %v1900, %v1976
  %1978 = vmatmul.f32.gmra.mxu0 %v1393
  %v1979 = vpop.f32.mrf.mxu0
  %v1980 = vadd.f32 %v1903, %v1979
  %1981 = vmatmul.f32.gmra.mxu0 %v1400
  %v1982 = vpop.f32.mrf.mxu0
  %v1983 = vadd.f32 %v1906, %v1982
  %1984 = vmatmul.f32.gmra.mxu0 %v1407
  %v1985 = vpop.f32.mrf.mxu0
  %v1986 = vadd.f32 %v1909, %v1985
  %1987 = vmatmul.f32.gmra.mxu0 %v1414
  %v1988 = vpop.f32.mrf.mxu0
  %v1989 = vadd.f32 %v1912, %v1988
  %1990 = vmatmul.f32.gmra.mxu0 %v1421
  %v1991 = vpop.f32.mrf.mxu0
  %v1992 = vadd.f32 %v1915, %v1991
  %1993 = vmatmul.f32.gmra.mxu0 %v1428
  %v1994 = vpop.f32.mrf.mxu0
  %v1995 = vadd.f32 %v1918, %v1994
  %1996 = vdwg.mxu0
  %1997 = vmatpush.msra.mxu0 %v1251
  %1998 = vmatpush.msra.mxu0 %v1249
  %1999 = vmatpush.msra.mxu0 %v1247
  %2000 = vmatpush.msra.mxu0 %v1245
  %2001 = vmatpush.msra.mxu0 %v1243
  %2002 = vmatpush.msra.mxu0 %v1241
  %2003 = vmatpush.msra.mxu0 %v1239
  %2004 = vmatpush.msra.mxu0 %v1237
  %2005 = vmatpush.msra.mxu0 %v1235
  %2006 = vmatpush.msra.mxu0 %v1233
  %2007 = vmatpush.msra.mxu0 %v1231
  %2008 = vmatpush.msra.mxu0 %v1229
  %2009 = vmatpush.msra.mxu0 %v1206
  %2010 = vmatpush.msra.mxu0 %v1204
  %2011 = vmatpush.msra.mxu0 %v1202
  %2012 = vmatpush.msra.mxu0 %v1200
  %2013 = vmatmul.f32.gmra.mxu0 %v1296
  %v2014 = vpop.f32.mrf.mxu0
  %v2015 = vadd.f32 %v1938, %v2014
  %2016 = vmatmul.f32.gmra.mxu0 %v1303
  %v2017 = vpop.f32.mrf.mxu0
  %v2018 = vadd.f32 %v1941, %v2017
  %2019 = vmatmul.f32.gmra.mxu0 %v1310
  %v2020 = vpop.f32.mrf.mxu0
  %v2021 = vadd.f32 %v1944, %v2020
  %2022 = vmatmul.f32.gmra.mxu0 %v1317
  %v2023 = vpop.f32.mrf.mxu0
  %v2024 = vadd.f32 %v1947, %v2023
  %2025 = vmatmul.f32.gmra.mxu0 %v1324
  %v2026 = vpop.f32.mrf.mxu0
  %v2027 = vadd.f32 %v1950, %v2026
  %2028 = vmatmul.f32.gmra.mxu0 %v1331
  %v2029 = vpop.f32.mrf.mxu0
  %v2030 = vadd.f32 %v1953, %v2029
  %2031 = vmatmul.f32.gmra.mxu0 %v1338
  %v2032 = vpop.f32.mrf.mxu0
  %v2033 = vadd.f32 %v1956, %v2032
  %2034 = vmatmul.f32.gmra.mxu0 %v1345
  %v2035 = vpop.f32.mrf.mxu0
  %v2036 = vadd.f32 %v1959, %v2035
  %2037 = vmatmul.f32.gmra.mxu0 %v1352
  %v2038 = vpop.f32.mrf.mxu0
  %v2039 = vadd.f32 %v1962, %v2038
  %2040 = vmatmul.f32.gmra.mxu0 %v1359
  %v2041 = vpop.f32.mrf.mxu0
  %v2042 = vadd.f32 %v1965, %v2041
  %2043 = vmatmul.f32.gmra.mxu0 %v1366
  %v2044 = vpop.f32.mrf.mxu0
  %v2045 = vadd.f32 %v1968, %v2044
  %2046 = vmatmul.f32.gmra.mxu0 %v1373
  %v2047 = vpop.f32.mrf.mxu0
  %v2048 = vadd.f32 %v1971, %v2047
  %2049 = vmatmul.f32.gmra.mxu0 %v1380
  %v2050 = vpop.f32.mrf.mxu0
  %v2051 = vadd.f32 %v1974, %v2050
  %2052 = vmatmul.f32.gmra.mxu0 %v1387
  %v2053 = vpop.f32.mrf.mxu0
  %v2054 = vadd.f32 %v1977, %v2053
  %2055 = vmatmul.f32.gmra.mxu0 %v1394
  %v2056 = vpop.f32.mrf.mxu0
  %v2057 = vadd.f32 %v1980, %v2056
  %2058 = vmatmul.f32.gmra.mxu0 %v1401
  %v2059 = vpop.f32.mrf.mxu0
  %v2060 = vadd.f32 %v1983, %v2059
  %2061 = vmatmul.f32.gmra.mxu0 %v1408
  %v2062 = vpop.f32.mrf.mxu0
  %v2063 = vadd.f32 %v1986, %v2062
  %2064 = vmatmul.f32.gmra.mxu0 %v1415
  %v2065 = vpop.f32.mrf.mxu0
  %v2066 = vadd.f32 %v1989, %v2065
  %2067 = vmatmul.f32.gmra.mxu0 %v1422
  %v2068 = vpop.f32.mrf.mxu0
  %v2069 = vadd.f32 %v1992, %v2068
  %2070 = vmatmul.f32.gmra.mxu0 %v1429
  %v2071 = vpop.f32.mrf.mxu0
  %v2072 = vadd.f32 %v1995, %v2071
  %2073 = vdwg.mxu0
  %2074 = vmatpush.msra.mxu0 0.0
  %2075 = vmatpush.msra.mxu0 0.0
  %2076 = vmatpush.msra.mxu0 0.0
  %2077 = vmatpush.msra.mxu0 0.0
  %2078 = vmatpush.msra.mxu0 0.0
  %2079 = vmatpush.msra.mxu0 0.0
  %2080 = vmatpush.msra.mxu0 0.0
  %2081 = vmatpush.msra.mxu0 %v1269
  %2082 = vmatpush.msra.mxu0 %v1267
  %2083 = vmatpush.msra.mxu0 %v1265
  %2084 = vmatpush.msra.mxu0 %v1263
  %2085 = vmatpush.msra.mxu0 %v1261
  %2086 = vmatpush.msra.mxu0 %v1259
  %2087 = vmatpush.msra.mxu0 %v1257
  %2088 = vmatpush.msra.mxu0 %v1255
  %2089 = vmatpush.msra.mxu0 %v1253
  %2090 = vmatmul.f32.gmra.mxu0 %v1553
  %v2091 = vpop.f32.mrf.mxu0
  %v2092 = vadd.f32 %v2015, %v2091
  %2093 = vmatmul.f32.gmra.mxu0 %v1556
  %v2094 = vpop.f32.mrf.mxu0
  %v2095 = vadd.f32 %v2018, %v2094
  %2096 = vmatmul.f32.gmra.mxu0 %v1559
  %v2097 = vpop.f32.mrf.mxu0
  %v2098 = vadd.f32 %v2021, %v2097
  %2099 = vmatmul.f32.gmra.mxu0 %v1562
  %v2100 = vpop.f32.mrf.mxu0
  %v2101 = vadd.f32 %v2024, %v2100
  %2102 = vmatmul.f32.gmra.mxu0 %v1565
  %v2103 = vpop.f32.mrf.mxu0
  %v2104 = vadd.f32 %v2027, %v2103
  %2105 = vmatmul.f32.gmra.mxu0 %v1568
  %v2106 = vpop.f32.mrf.mxu0
  %v2107 = vadd.f32 %v2030, %v2106
  %2108 = vmatmul.f32.gmra.mxu0 %v1571
  %v2109 = vpop.f32.mrf.mxu0
  %v2110 = vadd.f32 %v2033, %v2109
  %2111 = vmatmul.f32.gmra.mxu0 %v1574
  %v2112 = vpop.f32.mrf.mxu0
  %v2113 = vadd.f32 %v2036, %v2112
  %2114 = vmatmul.f32.gmra.mxu0 %v1577
  %v2115 = vpop.f32.mrf.mxu0
  %v2116 = vadd.f32 %v2039, %v2115
  %2117 = vmatmul.f32.gmra.mxu0 %v1580
  %v2118 = vpop.f32.mrf.mxu0
  %v2119 = vadd.f32 %v2042, %v2118
  %2120 = vmatmul.f32.gmra.mxu0 %v1583
  %v2121 = vpop.f32.mrf.mxu0
  %v2122 = vadd.f32 %v2045, %v2121
  %2123 = vmatmul.f32.gmra.mxu0 %v1586
  %v2124 = vpop.f32.mrf.mxu0
  %v2125 = vadd.f32 %v2048, %v2124
  %2126 = vmatmul.f32.gmra.mxu0 %v1589
  %v2127 = vpop.f32.mrf.mxu0
  %v2128 = vadd.f32 %v2051, %v2127
  %2129 = vmatmul.f32.gmra.mxu0 %v1592
  %v2130 = vpop.f32.mrf.mxu0
  %v2131 = vadd.f32 %v2054, %v2130
  %2132 = vmatmul.f32.gmra.mxu0 %v1595
  %v2133 = vpop.f32.mrf.mxu0
  %v2134 = vadd.f32 %v2057, %v2133
  %2135 = vmatmul.f32.gmra.mxu0 %v1598
  %v2136 = vpop.f32.mrf.mxu0
  %v2137 = vadd.f32 %v2060, %v2136
  %2138 = vmatmul.f32.gmra.mxu0 %v1601
  %v2139 = vpop.f32.mrf.mxu0
  %v2140 = vadd.f32 %v2063, %v2139
  %2141 = vmatmul.f32.gmra.mxu0 %v1604
  %v2142 = vpop.f32.mrf.mxu0
  %v2143 = vadd.f32 %v2066, %v2142
  %2144 = vmatmul.f32.gmra.mxu0 %v1607
  %v2145 = vpop.f32.mrf.mxu0
  %v2146 = vadd.f32 %v2069, %v2145
  %2147 = vmatmul.f32.gmra.mxu0 %v1610
  %v2148 = vpop.f32.mrf.mxu0
  %v2149 = vadd.f32 %v2072, %v2148
  %2150 = vdwg.mxu0
  %v2151 = vmax.f32 %v2092, 0.0
  %v2152 = vmax.f32 %v2095, 0.0
  %v2153 = vmax.f32 %v2098, 0.0
  %v2154 = vmax.f32 %v2101, 0.0
  %v2155 = vmax.f32 %v2104, 0.0
  %v2156 = vmax.f32 %v2107, 0.0
  %v2157 = vmax.f32 %v2110, 0.0
  %v2158 = vmax.f32 %v2113, 0.0
  %v2159 = vmax.f32 %v2116, 0.0
  %v2160 = vmax.f32 %v2119, 0.0
  %v2161 = vmax.f32 %v2122, 0.0
  %v2162 = vmax.f32 %v2125, 0.0
  %v2163 = vmax.f32 %v2128, 0.0
  %v2164 = vmax.f32 %v2131, 0.0
  %v2165 = vmax.f32 %v2134, 0.0
  %v2166 = vmax.f32 %v2137, 0.0
  %v2167 = vmax.f32 %v2140, 0.0
  %v2168 = vmax.f32 %v2143, 0.0
  %v2169 = vmax.f32 %v2146, 0.0
  %v2170 = vmax.f32 %v2149, 0.0
  %v2171 = vld [vmem:[%s6] sm:$0xff]
  %v2172 = vld [vmem:[%s6 + $0x8] sm:$0xff]
  %v2173 = vld [vmem:[%s6 + $0x10] sm:$0xff]
  %v2174 = vld [vmem:[%s6 + $0x18] sm:$0xff]
  %v2175 = vld [vmem:[%s6 + $0x20] sm:$0xff]
  %v2176 = vld [vmem:[%s6 + $0x28] sm:$0xff]
  %v2177 = vld [vmem:[%s6 + $0x30] sm:$0xff]
  %v2178 = vld [vmem:[%s6 + $0x38] sm:$0xff]
  %v2179 = vld [vmem:[%s6 + $0x40] sm:$0xff]
  %v2180 = vld [vmem:[%s6 + $0x48] sm:$0xff]
  %v2181 = vld [vmem:[%s6 + $0x50] sm:$0xff]
  %v2182 = vld [vmem:[%s6 + $0x58] sm:$0xff]
  %v2183 = vld [vmem:[%s6 + $0x60] sm:$0xff]
  %v2184 = vld [vmem:[%s6 + $0x68] sm:$0xff]
  %vm2185 = vcmask 916480
  %v2187 = vsel %vm2185, %v2151, 0
  %v2190 = vsel %vm2185, %v2152, 0
  %v2193 = vsel %vm2185, %v2153, 0
  %v2196 = vsel %vm2185, %v2154, 0
  %v2199 = vsel %vm2185, %v2155, 0
  %v2202 = vsel %vm2185, %v2156, 0
  %v2205 = vsel %vm2185, %v2157, 0
  %v2208 = vsel %vm2185, %v2158, 0
  %v2211 = vsel %vm2185, %v2159, 0
  %v2214 = vsel %vm2185, %v2160, 0
  %v2217 = vsel %vm2185, %v2161, 0
  %v2220 = vsel %vm2185, %v2162, 0
  %v2223 = vsel %vm2185, %v2163, 0
  %v2226 = vsel %vm2185, %v2164, 0
  %v2229 = vsel %vm2185, %v2165, 0
  %v2232 = vsel %vm2185, %v2166, 0
  %v2235 = vsel %vm2185, %v2167, 0
  %v2238 = vsel %vm2185, %v2168, 0
  %v2241 = vsel %vm2185, %v2169, 0
  %v2244 = vsel %vm2185, %v2170, 0
  %2246 = vmatpush.msra.mxu0 0.0
  %2247 = vmatpush.msra.mxu0 0.0
  %2248 = vmatpush.msra.mxu0 %v2184
  %2249 = vmatpush.msra.mxu0 %v2183
  %2250 = vmatpush.msra.mxu0 %v2182
  %2251 = vmatpush.msra.mxu0 %v2181
  %2252 = vmatpush.msra.mxu0 %v2180
  %2253 = vmatpush.msra.mxu0 %v2179
  %2254 = vmatpush.msra.mxu0 %v2178
  %2255 = vmatpush.msra.mxu0 %v2177
  %2256 = vmatpush.msra.mxu0 %v2176
  %2257 = vmatpush.msra.mxu0 %v2175
  %2258 = vmatpush.msra.mxu0 %v2174
  %2259 = vmatpush.msra.mxu0 %v2173
  %2260 = vmatpush.msra.mxu0 %v2172
  %2261 = vmatpush.msra.mxu0 %v2171
  %2262 = vmatmul.f32.gmra.mxu0 %v2187
  %v2263 = vpop.f32.mrf.mxu0
  %v2264 = vadd.f32 0.0, %v2263
  %2265 = vmatmul.f32.gmra.mxu0 %v2190
  %v2266 = vpop.f32.mrf.mxu0
  %v2267 = vadd.f32 0.0, %v2266
  %2268 = vmatmul.f32.gmra.mxu0 %v2193
  %v2269 = vpop.f32.mrf.mxu0
  %v2270 = vadd.f32 0.0, %v2269
  %2271 = vmatmul.f32.gmra.mxu0 %v2196
  %v2272 = vpop.f32.mrf.mxu0
  %v2273 = vadd.f32 0.0, %v2272
  %2274 = vmatmul.f32.gmra.mxu0 %v2199
  %v2275 = vpop.f32.mrf.mxu0
  %v2276 = vadd.f32 0.0, %v2275
  %2277 = vmatmul.f32.gmra.mxu0 %v2202
  %v2278 = vpop.f32.mrf.mxu0
  %v2279 = vadd.f32 0.0, %v2278
  %2280 = vmatmul.f32.gmra.mxu0 %v2205
  %v2281 = vpop.f32.mrf.mxu0
  %v2282 = vadd.f32 0.0, %v2281
  %2283 = vmatmul.f32.gmra.mxu0 %v2208
  %v2284 = vpop.f32.mrf.mxu0
  %v2285 = vadd.f32 0.0, %v2284
  %2286 = vmatmul.f32.gmra.mxu0 %v2211
  %v2287 = vpop.f32.mrf.mxu0
  %v2288 = vadd.f32 0.0, %v2287
  %2289 = vmatmul.f32.gmra.mxu0 %v2214
  %v2290 = vpop.f32.mrf.mxu0
  %v2291 = vadd.f32 0.0, %v2290
  %2292 = vmatmul.f32.gmra.mxu0 %v2217
  %v2293 = vpop.f32.mrf.mxu0
  %v2294 = vadd.f32 0.0, %v2293
  %2295 = vmatmul.f32.gmra.mxu0 %v2220
  %v2296 = vpop.f32.mrf.mxu0
  %v2297 = vadd.f32 0.0, %v2296
  %2298 = vmatmul.f32.gmra.mxu0 %v2223
  %v2299 = vpop.f32.mrf.mxu0
  %v2300 = vadd.f32 0.0, %v2299
  %2301 = vmatmul.f32.gmra.mxu0 %v2226
  %v2302 = vpop.f32.mrf.mxu0
  %v2303 = vadd.f32 0.0, %v2302
  %2304 = vmatmul.f32.gmra.mxu0 %v2229
  %v2305 = vpop.f32.mrf.mxu0
  %v2306 = vadd.f32 0.0, %v2305
  %2307 = vmatmul.f32.gmra.mxu0 %v2232
  %v2308 = vpop.f32.mrf.mxu0
  %v2309 = vadd.f32 0.0, %v2308
  %2310 = vmatmul.f32.gmra.mxu0 %v2235
  %v2311 = vpop.f32.mrf.mxu0
  %v2312 = vadd.f32 0.0, %v2311
  %2313 = vmatmul.f32.gmra.mxu0 %v2238
  %v2314 = vpop.f32.mrf.mxu0
  %v2315 = vadd.f32 0.0, %v2314
  %2316 = vmatmul.f32.gmra.mxu0 %v2241
  %v2317 = vpop.f32.mrf.mxu0
  %v2318 = vadd.f32 0.0, %v2317
  %2319 = vmatmul.f32.gmra.mxu0 %v2244
  %v2320 = vpop.f32.mrf.mxu0
  %v2321 = vadd.f32 0.0, %v2320
  %2322 = vdwg.mxu0
  %v2323 = vld [vmem:[%s7] sm:$0xff]
  %v2324 = vld [vmem:[%s7 + $0x8] sm:$0xff]
  %v2325 = vld [vmem:[%s7 + $0x10] sm:$0xff]
  %v2326 = vld [vmem:[%s7 + $0x18] sm:$0xff]
  %v2327 = vld [vmem:[%s7 + $0x20] sm:$0xff]
  %v2328 = vld [vmem:[%s7 + $0x28] sm:$0xff]
  %v2329 = vld [vmem:[%s7 + $0x30] sm:$0xff]
  %v2330 = vld [vmem:[%s7 + $0x38] sm:$0xff]
  %v2331 = vld [vmem:[%s7 + $0x40] sm:$0xff]
  %v2332 = vld [vmem:[%s7 + $0x48] sm:$0xff]
  %v2333 = vld [vmem:[%s7 + $0x50] sm:$0xff]
  %v2334 = vld [vmem:[%s7 + $0x58] sm:$0xff]
  %v2335 = vld [vmem:[%s7 + $0x60] sm:$0xff]
  %v2336 = vld [vmem:[%s7 + $0x68] sm:$0xff]
  %v2337 = vld [vmem:[%s7 + $0x70] sm:$0xff]
  %v2338 = vld [vmem:[%s7 + $0x78] sm:$0xff]
  %v2339 = vld [vmem:[%s7 + $0x80] sm:$0xff]
  %v2340 = vld [vmem:[%s7 + $0x88] sm:$0xff]
  %v2341 = vld [vmem:[%s7 + $0x90] sm:$0xff]
  %v2342 = vld [vmem:[%s7 + $0x98] sm:$0xff]
  %v2343 = vld [vmem:[%s7 + $0xa0] sm:$0xff]
  %v2344 = vld [vmem:[%s7 + $0xa8] sm:$0xff]
  %v2345 = vld [vmem:[%s7 + $0xb0] sm:$0xff]
  %v2346 = vld [vmem:[%s7 + $0xb8] sm:$0xff]
  %v2347 = vld [vmem:[%s7 + $0xc0] sm:$0xff]
  %v2348 = vld [vmem:[%s7 + $0xc8] sm:$0xff]
  %v2349 = vld [vmem:[%s7 + $0xd0] sm:$0xff]
  %v2350 = vld [vmem:[%s7 + $0xd8] sm:$0xff]
  %v2351 = vld [vmem:[%s7 + $0xe0] sm:$0xff]
  %v2352 = vld [vmem:[%s7 + $0xe8] sm:$0xff]
  %v2353 = vld [vmem:[%s7 + $0xf0] sm:$0xff]
  %v2354 = vld [vmem:[%s7 + $0xf8] sm:$0xff]
  %s2355 = scalar_lea.vmem %s6, 112
  %v2356 = vld [vmem:[%s2355] sm:$0xff]
  %v2357 = vld [vmem:[%s2355 + $0x8] sm:$0xff]
  %v2358 = vld [vmem:[%s2355 + $0x10] sm:$0xff]
  %v2359 = vld [vmem:[%s2355 + $0x18] sm:$0xff]
  %v2360 = vld [vmem:[%s2355 + $0x20] sm:$0xff]
  %v2361 = vld [vmem:[%s2355 + $0x28] sm:$0xff]
  %v2362 = vld [vmem:[%s2355 + $0x30] sm:$0xff]
  %v2363 = vld [vmem:[%s2355 + $0x38] sm:$0xff]
  %v2364 = vld [vmem:[%s2355 + $0x40] sm:$0xff]
  %v2365 = vld [vmem:[%s2355 + $0x48] sm:$0xff]
  %v2366 = vld [vmem:[%s2355 + $0x50] sm:$0xff]
  %v2367 = vld [vmem:[%s2355 + $0x58] sm:$0xff]
  %v2368 = vld [vmem:[%s2355 + $0x60] sm:$0xff]
  %v2369 = vld [vmem:[%s2355 + $0x68] sm:$0xff]
  %2370 = vmatpush.msra.mxu0 0.0
  %2371 = vmatpush.msra.mxu0 0.0
  %2372 = vmatpush.msra.mxu0 %v2369
  %2373 = vmatpush.msra.mxu0 %v2368
  %2374 = vmatpush.msra.mxu0 %v2367
  %2375 = vmatpush.msra.mxu0 %v2366
  %2376 = vmatpush.msra.mxu0 %v2365
  %2377 = vmatpush.msra.mxu0 %v2364
  %2378 = vmatpush.msra.mxu0 %v2363
  %2379 = vmatpush.msra.mxu0 %v2362
  %2380 = vmatpush.msra.mxu0 %v2361
  %2381 = vmatpush.msra.mxu0 %v2360
  %2382 = vmatpush.msra.mxu0 %v2359
  %2383 = vmatpush.msra.mxu0 %v2358
  %2384 = vmatpush.msra.mxu0 %v2357
  %2385 = vmatpush.msra.mxu0 %v2356
  %2386 = vmatmul.f32.gmra.mxu0 %v2187
  %v2387 = vpop.f32.mrf.mxu0
  %v2388 = vadd.f32 0.0, %v2387
  %2389 = vmatmul.f32.gmra.mxu0 %v2190
  %v2390 = vpop.f32.mrf.mxu0
  %v2391 = vadd.f32 0.0, %v2390
  %2392 = vmatmul.f32.gmra.mxu0 %v2193
  %v2393 = vpop.f32.mrf.mxu0
  %v2394 = vadd.f32 0.0, %v2393
  %2395 = vmatmul.f32.gmra.mxu0 %v2196
  %v2396 = vpop.f32.mrf.mxu0
  %v2397 = vadd.f32 0.0, %v2396
  %2398 = vmatmul.f32.gmra.mxu0 %v2199
  %v2399 = vpop.f32.mrf.mxu0
  %v2400 = vadd.f32 0.0, %v2399
  %2401 = vmatmul.f32.gmra.mxu0 %v2202
  %v2402 = vpop.f32.mrf.mxu0
  %v2403 = vadd.f32 0.0, %v2402
  %2404 = vmatmul.f32.gmra.mxu0 %v2205
  %v2405 = vpop.f32.mrf.mxu0
  %v2406 = vadd.f32 0.0, %v2405
  %2407 = vmatmul.f32.gmra.mxu0 %v2208
  %v2408 = vpop.f32.mrf.mxu0
  %v2409 = vadd.f32 0.0, %v2408
  %2410 = vmatmul.f32.gmra.mxu0 %v2211
  %v2411 = vpop.f32.mrf.mxu0
  %v2412 = vadd.f32 0.0, %v2411
  %2413 = vmatmul.f32.gmra.mxu0 %v2214
  %v2414 = vpop.f32.mrf.mxu0
  %v2415 = vadd.f32 0.0, %v2414
  %2416 = vmatmul.f32.gmra.mxu0 %v2217
  %v2417 = vpop.f32.mrf.mxu0
  %v2418 = vadd.f32 0.0, %v2417
  %2419 = vmatmul.f32.gmra.mxu0 %v2220
  %v2420 = vpop.f32.mrf.mxu0
  %v2421 = vadd.f32 0.0, %v2420
  %2422 = vmatmul.f32.gmra.mxu0 %v2223
  %v2423 = vpop.f32.mrf.mxu0
  %v2424 = vadd.f32 0.0, %v2423
  %2425 = vmatmul.f32.gmra.mxu0 %v2226
  %v2426 = vpop.f32.mrf.mxu0
  %v2427 = vadd.f32 0.0, %v2426
  %2428 = vmatmul.f32.gmra.mxu0 %v2229
  %v2429 = vpop.f32.mrf.mxu0
  %v2430 = vadd.f32 0.0, %v2429
  %2431 = vmatmul.f32.gmra.mxu0 %v2232
  %v2432 = vpop.f32.mrf.mxu0
  %v2433 = vadd.f32 0.0, %v2432
  %2434 = vmatmul.f32.gmra.mxu0 %v2235
  %v2435 = vpop.f32.mrf.mxu0
  %v2436 = vadd.f32 0.0, %v2435
  %2437 = vmatmul.f32.gmra.mxu0 %v2238
  %v2438 = vpop.f32.mrf.mxu0
  %v2439 = vadd.f32 0.0, %v2438
  %2440 = vmatmul.f32.gmra.mxu0 %v2241
  %v2441 = vpop.f32.mrf.mxu0
  %v2442 = vadd.f32 0.0, %v2441
  %2443 = vmatmul.f32.gmra.mxu0 %v2244
  %v2444 = vpop.f32.mrf.mxu0
  %v2445 = vadd.f32 0.0, %v2444
  %2446 = vdwg.mxu0
  %s2447 = scalar_lea.vmem %s7, 256
  %v2448 = vld [vmem:[%s2447] sm:$0xff]
  %v2449 = vld [vmem:[%s2447 + $0x8] sm:$0xff]
  %v2450 = vld [vmem:[%s2447 + $0x10] sm:$0xff]
  %v2451 = vld [vmem:[%s2447 + $0x18] sm:$0xff]
  %v2452 = vld [vmem:[%s2447 + $0x20] sm:$0xff]
  %v2453 = vld [vmem:[%s2447 + $0x28] sm:$0xff]
  %v2454 = vld [vmem:[%s2447 + $0x30] sm:$0xff]
  %v2455 = vld [vmem:[%s2447 + $0x38] sm:$0xff]
  %v2456 = vld [vmem:[%s2447 + $0x40] sm:$0xff]
  %v2457 = vld [vmem:[%s2447 + $0x48] sm:$0xff]
  %v2458 = vld [vmem:[%s2447 + $0x50] sm:$0xff]
  %v2459 = vld [vmem:[%s2447 + $0x58] sm:$0xff]
  %v2460 = vld [vmem:[%s2447 + $0x60] sm:$0xff]
  %v2461 = vld [vmem:[%s2447 + $0x68] sm:$0xff]
  %v2462 = vld [vmem:[%s2447 + $0x70] sm:$0xff]
  %v2463 = vld [vmem:[%s2447 + $0x78] sm:$0xff]
  %v2464 = vld [vmem:[%s2447 + $0x80] sm:$0xff]
  %v2465 = vld [vmem:[%s2447 + $0x88] sm:$0xff]
  %v2466 = vld [vmem:[%s2447 + $0x90] sm:$0xff]
  %v2467 = vld [vmem:[%s2447 + $0x98] sm:$0xff]
  %v2468 = vld [vmem:[%s2447 + $0xa0] sm:$0xff]
  %v2469 = vld [vmem:[%s2447 + $0xa8] sm:$0xff]
  %v2470 = vld [vmem:[%s2447 + $0xb0] sm:$0xff]
  %v2471 = vld [vmem:[%s2447 + $0xb8] sm:$0xff]
  %v2472 = vld [vmem:[%s2447 + $0xc0] sm:$0xff]
  %v2473 = vld [vmem:[%s2447 + $0xc8] sm:$0xff]
  %v2474 = vld [vmem:[%s2447 + $0xd0] sm:$0xff]
  %v2475 = vld [vmem:[%s2447 + $0xd8] sm:$0xff]
  %v2476 = vld [vmem:[%s2447 + $0xe0] sm:$0xff]
  %v2477 = vld [vmem:[%s2447 + $0xe8] sm:$0xff]
  %v2478 = vld [vmem:[%s2447 + $0xf0] sm:$0xff]
  %v2479 = vld [vmem:[%s2447 + $0xf8] sm:$0xff]
  %v2481 = vsel %vm400, %v2449, 0
  %v2484 = vsel %vm400, %v2451, 0
  %v2487 = vsel %vm400, %v2453, 0
  %v2490 = vsel %vm400, %v2455, 0
  %v2493 = vsel %vm400, %v2457, 0
  %v2496 = vsel %vm400, %v2459, 0
  %v2499 = vsel %vm400, %v2461, 0
  %v2502 = vsel %vm400, %v2463, 0
  %v2505 = vsel %vm400, %v2465, 0
  %v2508 = vsel %vm400, %v2467, 0
  %v2511 = vsel %vm400, %v2469, 0
  %v2514 = vsel %vm400, %v2471, 0
  %v2517 = vsel %vm400, %v2473, 0
  %v2520 = vsel %vm400, %v2475, 0
  %v2523 = vsel %vm400, %v2477, 0
  %v2526 = vsel %vm400, %v2479, 0
  %2528 = vmatpush.msra.mxu0 %v2433
  %2529 = vmatpush.msra.mxu0 %v2430
  %2530 = vmatpush.msra.mxu0 %v2427
  %2531 = vmatpush.msra.mxu0 %v2424
  %2532 = vmatpush.msra.mxu0 %v2421
  %2533 = vmatpush.msra.mxu0 %v2418
  %2534 = vmatpush.msra.mxu0 %v2415
  %2535 = vmatpush.msra.mxu0 %v2412
  %2536 = vmatpush.msra.mxu0 %v2409
  %2537 = vmatpush.msra.mxu0 %v2406
  %2538 = vmatpush.msra.mxu0 %v2403
  %2539 = vmatpush.msra.mxu0 %v2400
  %2540 = vmatpush.msra.mxu0 %v2397
  %2541 = vmatpush.msra.mxu0 %v2394
  %2542 = vmatpush.msra.mxu0 %v2391
  %2543 = vmatpush.msra.mxu0 %v2388
  %2544 = vmatmul.f32.gmra.mxu0 %v2448
  %v2545 = vpop.f32.mrf.mxu0
  %v2546 = vadd.f32 0.0, %v2545
  %2547 = vmatmul.f32.gmra.mxu0 %v2450
  %v2548 = vpop.f32.mrf.mxu0
  %v2549 = vadd.f32 0.0, %v2548
  %2550 = vmatmul.f32.gmra.mxu0 %v2452
  %v2551 = vpop.f32.mrf.mxu0
  %v2552 = vadd.f32 0.0, %v2551
  %2553 = vmatmul.f32.gmra.mxu0 %v2454
  %v2554 = vpop.f32.mrf.mxu0
  %v2555 = vadd.f32 0.0, %v2554
  %2556 = vmatmul.f32.gmra.mxu0 %v2456
  %v2557 = vpop.f32.mrf.mxu0
  %v2558 = vadd.f32 0.0, %v2557
  %2559 = vmatmul.f32.gmra.mxu0 %v2458
  %v2560 = vpop.f32.mrf.mxu0
  %v2561 = vadd.f32 0.0, %v2560
  %2562 = vmatmul.f32.gmra.mxu0 %v2460
  %v2563 = vpop.f32.mrf.mxu0
  %v2564 = vadd.f32 0.0, %v2563
  %2565 = vmatmul.f32.gmra.mxu0 %v2462
  %v2566 = vpop.f32.mrf.mxu0
  %v2567 = vadd.f32 0.0, %v2566
  %2568 = vmatmul.f32.gmra.mxu0 %v2464
  %v2569 = vpop.f32.mrf.mxu0
  %v2570 = vadd.f32 0.0, %v2569
  %2571 = vmatmul.f32.gmra.mxu0 %v2466
  %v2572 = vpop.f32.mrf.mxu0
  %v2573 = vadd.f32 0.0, %v2572
  %2574 = vmatmul.f32.gmra.mxu0 %v2468
  %v2575 = vpop.f32.mrf.mxu0
  %v2576 = vadd.f32 0.0, %v2575
  %2577 = vmatmul.f32.gmra.mxu0 %v2470
  %v2578 = vpop.f32.mrf.mxu0
  %v2579 = vadd.f32 0.0, %v2578
  %2580 = vmatmul.f32.gmra.mxu0 %v2472
  %v2581 = vpop.f32.mrf.mxu0
  %v2582 = vadd.f32 0.0, %v2581
  %2583 = vmatmul.f32.gmra.mxu0 %v2474
  %v2584 = vpop.f32.mrf.mxu0
  %v2585 = vadd.f32 0.0, %v2584
  %2586 = vmatmul.f32.gmra.mxu0 %v2476
  %v2587 = vpop.f32.mrf.mxu0
  %v2588 = vadd.f32 0.0, %v2587
  %2589 = vmatmul.f32.gmra.mxu0 %v2478
  %v2590 = vpop.f32.mrf.mxu0
  %v2591 = vadd.f32 0.0, %v2590
  %2592 = vdwg.mxu0
  %2593 = vmatpush.msra.mxu0 0.0
  %2594 = vmatpush.msra.mxu0 0.0
  %2595 = vmatpush.msra.mxu0 0.0
  %2596 = vmatpush.msra.mxu0 0.0
  %2597 = vmatpush.msra.mxu0 0.0
  %2598 = vmatpush.msra.mxu0 0.0
  %2599 = vmatpush.msra.mxu0 0.0
  %2600 = vmatpush.msra.mxu0 0.0
  %2601 = vmatpush.msra.mxu0 0.0
  %2602 = vmatpush.msra.mxu0 0.0
  %2603 = vmatpush.msra.mxu0 0.0
  %2604 = vmatpush.msra.mxu0 0.0
  %2605 = vmatpush.msra.mxu0 %v2445
  %2606 = vmatpush.msra.mxu0 %v2442
  %2607 = vmatpush.msra.mxu0 %v2439
  %2608 = vmatpush.msra.mxu0 %v2436
  %2609 = vmatmul.f32.gmra.mxu0 %v2481
  %v2610 = vpop.f32.mrf.mxu0
  %v2611 = vadd.f32 %v2546, %v2610
  %2612 = vmatmul.f32.gmra.mxu0 %v2484
  %v2613 = vpop.f32.mrf.mxu0
  %v2614 = vadd.f32 %v2549, %v2613
  %2615 = vmatmul.f32.gmra.mxu0 %v2487
  %v2616 = vpop.f32.mrf.mxu0
  %v2617 = vadd.f32 %v2552, %v2616
  %2618 = vmatmul.f32.gmra.mxu0 %v2490
  %v2619 = vpop.f32.mrf.mxu0
  %v2620 = vadd.f32 %v2555, %v2619
  %2621 = vmatmul.f32.gmra.mxu0 %v2493
  %v2622 = vpop.f32.mrf.mxu0
  %v2623 = vadd.f32 %v2558, %v2622
  %2624 = vmatmul.f32.gmra.mxu0 %v2496
  %v2625 = vpop.f32.mrf.mxu0
  %v2626 = vadd.f32 %v2561, %v2625
  %2627 = vmatmul.f32.gmra.mxu0 %v2499
  %v2628 = vpop.f32.mrf.mxu0
  %v2629 = vadd.f32 %v2564, %v2628
  %2630 = vmatmul.f32.gmra.mxu0 %v2502
  %v2631 = vpop.f32.mrf.mxu0
  %v2632 = vadd.f32 %v2567, %v2631
  %2633 = vmatmul.f32.gmra.mxu0 %v2505
  %v2634 = vpop.f32.mrf.mxu0
  %v2635 = vadd.f32 %v2570, %v2634
  %2636 = vmatmul.f32.gmra.mxu0 %v2508
  %v2637 = vpop.f32.mrf.mxu0
  %v2638 = vadd.f32 %v2573, %v2637
  %2639 = vmatmul.f32.gmra.mxu0 %v2511
  %v2640 = vpop.f32.mrf.mxu0
  %v2641 = vadd.f32 %v2576, %v2640
  %2642 = vmatmul.f32.gmra.mxu0 %v2514
  %v2643 = vpop.f32.mrf.mxu0
  %v2644 = vadd.f32 %v2579, %v2643
  %2645 = vmatmul.f32.gmra.mxu0 %v2517
  %v2646 = vpop.f32.mrf.mxu0
  %v2647 = vadd.f32 %v2582, %v2646
  %2648 = vmatmul.f32.gmra.mxu0 %v2520
  %v2649 = vpop.f32.mrf.mxu0
  %v2650 = vadd.f32 %v2585, %v2649
  %2651 = vmatmul.f32.gmra.mxu0 %v2523
  %v2652 = vpop.f32.mrf.mxu0
  %v2653 = vadd.f32 %v2588, %v2652
  %2654 = vmatmul.f32.gmra.mxu0 %v2526
  %v2655 = vpop.f32.mrf.mxu0
  %v2656 = vadd.f32 %v2591, %v2655
  %2657 = vdwg.mxu0
  %v2659 = vsel %vm400, %v2324, 0
  %v2662 = vsel %vm400, %v2326, 0
  %v2665 = vsel %vm400, %v2328, 0
  %v2668 = vsel %vm400, %v2330, 0
  %v2671 = vsel %vm400, %v2332, 0
  %v2674 = vsel %vm400, %v2334, 0
  %v2677 = vsel %vm400, %v2336, 0
  %v2680 = vsel %vm400, %v2338, 0
  %v2683 = vsel %vm400, %v2340, 0
  %v2686 = vsel %vm400, %v2342, 0
  %v2689 = vsel %vm400, %v2344, 0
  %v2692 = vsel %vm400, %v2346, 0
  %v2695 = vsel %vm400, %v2348, 0
  %v2698 = vsel %vm400, %v2350, 0
  %v2701 = vsel %vm400, %v2352, 0
  %v2704 = vsel %vm400, %v2354, 0
  %2706 = vmatpush.msra.mxu0 %v2309
  %2707 = vmatpush.msra.mxu0 %v2306
  %2708 = vmatpush.msra.mxu0 %v2303
  %2709 = vmatpush.msra.mxu0 %v2300
  %2710 = vmatpush.msra.mxu0 %v2297
  %2711 = vmatpush.msra.mxu0 %v2294
  %2712 = vmatpush.msra.mxu0 %v2291
  %2713 = vmatpush.msra.mxu0 %v2288
  %2714 = vmatpush.msra.mxu0 %v2285
  %2715 = vmatpush.msra.mxu0 %v2282
  %2716 = vmatpush.msra.mxu0 %v2279
  %2717 = vmatpush.msra.mxu0 %v2276
  %2718 = vmatpush.msra.mxu0 %v2273
  %2719 = vmatpush.msra.mxu0 %v2270
  %2720 = vmatpush.msra.mxu0 %v2267
  %2721 = vmatpush.msra.mxu0 %v2264
  %2722 = vmatmul.f32.gmra.mxu0 %v2323
  %v2723 = vpop.f32.mrf.mxu0
  %v2724 = vadd.f32 %v2611, %v2723
  %2725 = vmatmul.f32.gmra.mxu0 %v2325
  %v2726 = vpop.f32.mrf.mxu0
  %v2727 = vadd.f32 %v2614, %v2726
  %2728 = vmatmul.f32.gmra.mxu0 %v2327
  %v2729 = vpop.f32.mrf.mxu0
  %v2730 = vadd.f32 %v2617, %v2729
  %2731 = vmatmul.f32.gmra.mxu0 %v2329
  %v2732 = vpop.f32.mrf.mxu0
  %v2733 = vadd.f32 %v2620, %v2732
  %2734 = vmatmul.f32.gmra.mxu0 %v2331
  %v2735 = vpop.f32.mrf.mxu0
  %v2736 = vadd.f32 %v2623, %v2735
  %2737 = vmatmul.f32.gmra.mxu0 %v2333
  %v2738 = vpop.f32.mrf.mxu0
  %v2739 = vadd.f32 %v2626, %v2738
  %2740 = vmatmul.f32.gmra.mxu0 %v2335
  %v2741 = vpop.f32.mrf.mxu0
  %v2742 = vadd.f32 %v2629, %v2741
  %2743 = vmatmul.f32.gmra.mxu0 %v2337
  %v2744 = vpop.f32.mrf.mxu0
  %v2745 = vadd.f32 %v2632, %v2744
  %2746 = vmatmul.f32.gmra.mxu0 %v2339
  %v2747 = vpop.f32.mrf.mxu0
  %v2748 = vadd.f32 %v2635, %v2747
  %2749 = vmatmul.f32.gmra.mxu0 %v2341
  %v2750 = vpop.f32.mrf.mxu0
  %v2751 = vadd.f32 %v2638, %v2750
  %2752 = vmatmul.f32.gmra.mxu0 %v2343
  %v2753 = vpop.f32.mrf.mxu0
  %v2754 = vadd.f32 %v2641, %v2753
  %2755 = vmatmul.f32.gmra.mxu0 %v2345
  %v2756 = vpop.f32.mrf.mxu0
  %v2757 = vadd.f32 %v2644, %v2756
  %2758 = vmatmul.f32.gmra.mxu0 %v2347
  %v2759 = vpop.f32.mrf.mxu0
  %v2760 = vadd.f32 %v2647, %v2759
  %2761 = vmatmul.f32.gmra.mxu0 %v2349
  %v2762 = vpop.f32.mrf.mxu0
  %v2763 = vadd.f32 %v2650, %v2762
  %2764 = vmatmul.f32.gmra.mxu0 %v2351
  %v2765 = vpop.f32.mrf.mxu0
  %v2766 = vadd.f32 %v2653, %v2765
  %2767 = vmatmul.f32.gmra.mxu0 %v2353
  %v2768 = vpop.f32.mrf.mxu0
  %v2769 = vadd.f32 %v2656, %v2768
  %2770 = vdwg.mxu0
  %2771 = vmatpush.msra.mxu0 0.0
  %2772 = vmatpush.msra.mxu0 0.0
  %2773 = vmatpush.msra.mxu0 0.0
  %2774 = vmatpush.msra.mxu0 0.0
  %2775 = vmatpush.msra.mxu0 0.0
  %2776 = vmatpush.msra.mxu0 0.0
  %2777 = vmatpush.msra.mxu0 0.0
  %2778 = vmatpush.msra.mxu0 0.0
  %2779 = vmatpush.msra.mxu0 0.0
  %2780 = vmatpush.msra.mxu0 0.0
  %2781 = vmatpush.msra.mxu0 0.0
  %2782 = vmatpush.msra.mxu0 0.0
  %2783 = vmatpush.msra.mxu0 %v2321
  %2784 = vmatpush.msra.mxu0 %v2318
  %2785 = vmatpush.msra.mxu0 %v2315
  %2786 = vmatpush.msra.mxu0 %v2312
  %2787 = vmatmul.f32.gmra.mxu0 %v2659
  %v2788 = vpop.f32.mrf.mxu0
  %v2789 = vadd.f32 %v2724, %v2788
  %2790 = vmatmul.f32.gmra.mxu0 %v2662
  %v2791 = vpop.f32.mrf.mxu0
  %v2792 = vadd.f32 %v2727, %v2791
  %2793 = vmatmul.f32.gmra.mxu0 %v2665
  %v2794 = vpop.f32.mrf.mxu0
  %v2795 = vadd.f32 %v2730, %v2794
  %2796 = vmatmul.f32.gmra.mxu0 %v2668
  %v2797 = vpop.f32.mrf.mxu0
  %v2798 = vadd.f32 %v2733, %v2797
  %2799 = vmatmul.f32.gmra.mxu0 %v2671
  %v2800 = vpop.f32.mrf.mxu0
  %v2801 = vadd.f32 %v2736, %v2800
  %2802 = vmatmul.f32.gmra.mxu0 %v2674
  %v2803 = vpop.f32.mrf.mxu0
  %v2804 = vadd.f32 %v2739, %v2803
  %2805 = vmatmul.f32.gmra.mxu0 %v2677
  %v2806 = vpop.f32.mrf.mxu0
  %v2807 = vadd.f32 %v2742, %v2806
  %2808 = vmatmul.f32.gmra.mxu0 %v2680
  %v2809 = vpop.f32.mrf.mxu0
  %v2810 = vadd.f32 %v2745, %v2809
  %2811 = vmatmul.f32.gmra.mxu0 %v2683
  %v2812 = vpop.f32.mrf.mxu0
  %v2813 = vadd.f32 %v2748, %v2812
  %2814 = vmatmul.f32.gmra.mxu0 %v2686
  %v2815 = vpop.f32.mrf.mxu0
  %v2816 = vadd.f32 %v2751, %v2815
  %2817 = vmatmul.f32.gmra.mxu0 %v2689
  %v2818 = vpop.f32.mrf.mxu0
  %v2819 = vadd.f32 %v2754, %v2818
  %2820 = vmatmul.f32.gmra.mxu0 %v2692
  %v2821 = vpop.f32.mrf.mxu0
  %v2822 = vadd.f32 %v2757, %v2821
  %2823 = vmatmul.f32.gmra.mxu0 %v2695
  %v2824 = vpop.f32.mrf.mxu0
  %v2825 = vadd.f32 %v2760, %v2824
  %2826 = vmatmul.f32.gmra.mxu0 %v2698
  %v2827 = vpop.f32.mrf.mxu0
  %v2828 = vadd.f32 %v2763, %v2827
  %2829 = vmatmul.f32.gmra.mxu0 %v2701
  %v2830 = vpop.f32.mrf.mxu0
  %v2831 = vadd.f32 %v2766, %v2830
  %2832 = vmatmul.f32.gmra.mxu0 %v2704
  %v2833 = vpop.f32.mrf.mxu0
  %v2834 = vadd.f32 %v2769, %v2833
  %2835 = vdwg.mxu0
  %s2836 = scalar_lea.vmem %s6, 224
  %v2837 = vld [vmem:[%s2836] sm:$0xff]
  %v2838 = vld [vmem:[%s2836 + $0x8] sm:$0xff]
  %v2839 = vld [vmem:[%s2836 + $0x10] sm:$0xff]
  %v2840 = vld [vmem:[%s2836 + $0x18] sm:$0xff]
  %v2841 = vld [vmem:[%s2836 + $0x20] sm:$0xff]
  %v2842 = vld [vmem:[%s2836 + $0x28] sm:$0xff]
  %v2843 = vld [vmem:[%s2836 + $0x30] sm:$0xff]
  %v2844 = vld [vmem:[%s2836 + $0x38] sm:$0xff]
  %v2845 = vld [vmem:[%s2836 + $0x40] sm:$0xff]
  %v2846 = vld [vmem:[%s2836 + $0x48] sm:$0xff]
  %v2847 = vld [vmem:[%s2836 + $0x50] sm:$0xff]
  %v2848 = vld [vmem:[%s2836 + $0x58] sm:$0xff]
  %v2849 = vld [vmem:[%s2836 + $0x60] sm:$0xff]
  %v2850 = vld [vmem:[%s2836 + $0x68] sm:$0xff]
  %2851 = vmatpush.msra.mxu0 0.0
  %2852 = vmatpush.msra.mxu0 0.0
  %2853 = vmatpush.msra.mxu0 %v2850
  %2854 = vmatpush.msra.mxu0 %v2849
  %2855 = vmatpush.msra.mxu0 %v2848
  %2856 = vmatpush.msra.mxu0 %v2847
  %2857 = vmatpush.msra.mxu0 %v2846
  %2858 = vmatpush.msra.mxu0 %v2845
  %2859 = vmatpush.msra.mxu0 %v2844
  %2860 = vmatpush.msra.mxu0 %v2843
  %2861 = vmatpush.msra.mxu0 %v2842
  %2862 = vmatpush.msra.mxu0 %v2841
  %2863 = vmatpush.msra.mxu0 %v2840
  %2864 = vmatpush.msra.mxu0 %v2839
  %2865 = vmatpush.msra.mxu0 %v2838
  %2866 = vmatpush.msra.mxu0 %v2837
  %2867 = vmatmul.f32.gmra.mxu0 %v2187
  %v2868 = vpop.f32.mrf.mxu0
  %v2869 = vadd.f32 0.0, %v2868
  %2870 = vmatmul.f32.gmra.mxu0 %v2190
  %v2871 = vpop.f32.mrf.mxu0
  %v2872 = vadd.f32 0.0, %v2871
  %2873 = vmatmul.f32.gmra.mxu0 %v2193
  %v2874 = vpop.f32.mrf.mxu0
  %v2875 = vadd.f32 0.0, %v2874
  %2876 = vmatmul.f32.gmra.mxu0 %v2196
  %v2877 = vpop.f32.mrf.mxu0
  %v2878 = vadd.f32 0.0, %v2877
  %2879 = vmatmul.f32.gmra.mxu0 %v2199
  %v2880 = vpop.f32.mrf.mxu0
  %v2881 = vadd.f32 0.0, %v2880
  %2882 = vmatmul.f32.gmra.mxu0 %v2202
  %v2883 = vpop.f32.mrf.mxu0
  %v2884 = vadd.f32 0.0, %v2883
  %2885 = vmatmul.f32.gmra.mxu0 %v2205
  %v2886 = vpop.f32.mrf.mxu0
  %v2887 = vadd.f32 0.0, %v2886
  %2888 = vmatmul.f32.gmra.mxu0 %v2208
  %v2889 = vpop.f32.mrf.mxu0
  %v2890 = vadd.f32 0.0, %v2889
  %2891 = vmatmul.f32.gmra.mxu0 %v2211
  %v2892 = vpop.f32.mrf.mxu0
  %v2893 = vadd.f32 0.0, %v2892
  %2894 = vmatmul.f32.gmra.mxu0 %v2214
  %v2895 = vpop.f32.mrf.mxu0
  %v2896 = vadd.f32 0.0, %v2895
  %2897 = vmatmul.f32.gmra.mxu0 %v2217
  %v2898 = vpop.f32.mrf.mxu0
  %v2899 = vadd.f32 0.0, %v2898
  %2900 = vmatmul.f32.gmra.mxu0 %v2220
  %v2901 = vpop.f32.mrf.mxu0
  %v2902 = vadd.f32 0.0, %v2901
  %2903 = vmatmul.f32.gmra.mxu0 %v2223
  %v2904 = vpop.f32.mrf.mxu0
  %v2905 = vadd.f32 0.0, %v2904
  %2906 = vmatmul.f32.gmra.mxu0 %v2226
  %v2907 = vpop.f32.mrf.mxu0
  %v2908 = vadd.f32 0.0, %v2907
  %2909 = vmatmul.f32.gmra.mxu0 %v2229
  %v2910 = vpop.f32.mrf.mxu0
  %v2911 = vadd.f32 0.0, %v2910
  %2912 = vmatmul.f32.gmra.mxu0 %v2232
  %v2913 = vpop.f32.mrf.mxu0
  %v2914 = vadd.f32 0.0, %v2913
  %2915 = vmatmul.f32.gmra.mxu0 %v2235
  %v2916 = vpop.f32.mrf.mxu0
  %v2917 = vadd.f32 0.0, %v2916
  %2918 = vmatmul.f32.gmra.mxu0 %v2238
  %v2919 = vpop.f32.mrf.mxu0
  %v2920 = vadd.f32 0.0, %v2919
  %2921 = vmatmul.f32.gmra.mxu0 %v2241
  %v2922 = vpop.f32.mrf.mxu0
  %v2923 = vadd.f32 0.0, %v2922
  %2924 = vmatmul.f32.gmra.mxu0 %v2244
  %v2925 = vpop.f32.mrf.mxu0
  %v2926 = vadd.f32 0.0, %v2925
  %2927 = vdwg.mxu0
  %s2928 = scalar_lea.vmem %s7, 512
  %v2929 = vld [vmem:[%s2928] sm:$0xff]
  %v2930 = vld [vmem:[%s2928 + $0x8] sm:$0xff]
  %v2931 = vld [vmem:[%s2928 + $0x10] sm:$0xff]
  %v2932 = vld [vmem:[%s2928 + $0x18] sm:$0xff]
  %v2933 = vld [vmem:[%s2928 + $0x20] sm:$0xff]
  %v2934 = vld [vmem:[%s2928 + $0x28] sm:$0xff]
  %v2935 = vld [vmem:[%s2928 + $0x30] sm:$0xff]
  %v2936 = vld [vmem:[%s2928 + $0x38] sm:$0xff]
  %v2937 = vld [vmem:[%s2928 + $0x40] sm:$0xff]
  %v2938 = vld [vmem:[%s2928 + $0x48] sm:$0xff]
  %v2939 = vld [vmem:[%s2928 + $0x50] sm:$0xff]
  %v2940 = vld [vmem:[%s2928 + $0x58] sm:$0xff]
  %v2941 = vld [vmem:[%s2928 + $0x60] sm:$0xff]
  %v2942 = vld [vmem:[%s2928 + $0x68] sm:$0xff]
  %v2943 = vld [vmem:[%s2928 + $0x70] sm:$0xff]
  %v2944 = vld [vmem:[%s2928 + $0x78] sm:$0xff]
  %v2945 = vld [vmem:[%s2928 + $0x80] sm:$0xff]
  %v2946 = vld [vmem:[%s2928 + $0x88] sm:$0xff]
  %v2947 = vld [vmem:[%s2928 + $0x90] sm:$0xff]
  %v2948 = vld [vmem:[%s2928 + $0x98] sm:$0xff]
  %v2949 = vld [vmem:[%s2928 + $0xa0] sm:$0xff]
  %v2950 = vld [vmem:[%s2928 + $0xa8] sm:$0xff]
  %v2951 = vld [vmem:[%s2928 + $0xb0] sm:$0xff]
  %v2952 = vld [vmem:[%s2928 + $0xb8] sm:$0xff]
  %v2953 = vld [vmem:[%s2928 + $0xc0] sm:$0xff]
  %v2954 = vld [vmem:[%s2928 + $0xc8] sm:$0xff]
  %v2955 = vld [vmem:[%s2928 + $0xd0] sm:$0xff]
  %v2956 = vld [vmem:[%s2928 + $0xd8] sm:$0xff]
  %v2957 = vld [vmem:[%s2928 + $0xe0] sm:$0xff]
  %v2958 = vld [vmem:[%s2928 + $0xe8] sm:$0xff]
  %v2959 = vld [vmem:[%s2928 + $0xf0] sm:$0xff]
  %v2960 = vld [vmem:[%s2928 + $0xf8] sm:$0xff]
  %v2962 = vsel %vm400, %v2930, 0
  %v2965 = vsel %vm400, %v2932, 0
  %v2968 = vsel %vm400, %v2934, 0
  %v2971 = vsel %vm400, %v2936, 0
  %v2974 = vsel %vm400, %v2938, 0
  %v2977 = vsel %vm400, %v2940, 0
  %v2980 = vsel %vm400, %v2942, 0
  %v2983 = vsel %vm400, %v2944, 0
  %v2986 = vsel %vm400, %v2946, 0
  %v2989 = vsel %vm400, %v2948, 0
  %v2992 = vsel %vm400, %v2950, 0
  %v2995 = vsel %vm400, %v2952, 0
  %v2998 = vsel %vm400, %v2954, 0
  %v3001 = vsel %vm400, %v2956, 0
  %v3004 = vsel %vm400, %v2958, 0
  %v3007 = vsel %vm400, %v2960, 0
  %3009 = vmatpush.msra.mxu0 %v2914
  %3010 = vmatpush.msra.mxu0 %v2911
  %3011 = vmatpush.msra.mxu0 %v2908
  %3012 = vmatpush.msra.mxu0 %v2905
  %3013 = vmatpush.msra.mxu0 %v2902
  %3014 = vmatpush.msra.mxu0 %v2899
  %3015 = vmatpush.msra.mxu0 %v2896
  %3016 = vmatpush.msra.mxu0 %v2893
  %3017 = vmatpush.msra.mxu0 %v2890
  %3018 = vmatpush.msra.mxu0 %v2887
  %3019 = vmatpush.msra.mxu0 %v2884
  %3020 = vmatpush.msra.mxu0 %v2881
  %3021 = vmatpush.msra.mxu0 %v2878
  %3022 = vmatpush.msra.mxu0 %v2875
  %3023 = vmatpush.msra.mxu0 %v2872
  %3024 = vmatpush.msra.mxu0 %v2869
  %3025 = vmatmul.f32.gmra.mxu0 %v2929
  %v3026 = vpop.f32.mrf.mxu0
  %v3027 = vadd.f32 0.0, %v3026
  %3028 = vmatmul.f32.gmra.mxu0 %v2931
  %v3029 = vpop.f32.mrf.mxu0
  %v3030 = vadd.f32 0.0, %v3029
  %3031 = vmatmul.f32.gmra.mxu0 %v2933
  %v3032 = vpop.f32.mrf.mxu0
  %v3033 = vadd.f32 0.0, %v3032
  %3034 = vmatmul.f32.gmra.mxu0 %v2935
  %v3035 = vpop.f32.mrf.mxu0
  %v3036 = vadd.f32 0.0, %v3035
  %3037 = vmatmul.f32.gmra.mxu0 %v2937
  %v3038 = vpop.f32.mrf.mxu0
  %v3039 = vadd.f32 0.0, %v3038
  %3040 = vmatmul.f32.gmra.mxu0 %v2939
  %v3041 = vpop.f32.mrf.mxu0
  %v3042 = vadd.f32 0.0, %v3041
  %3043 = vmatmul.f32.gmra.mxu0 %v2941
  %v3044 = vpop.f32.mrf.mxu0
  %v3045 = vadd.f32 0.0, %v3044
  %3046 = vmatmul.f32.gmra.mxu0 %v2943
  %v3047 = vpop.f32.mrf.mxu0
  %v3048 = vadd.f32 0.0, %v3047
  %3049 = vmatmul.f32.gmra.mxu0 %v2945
  %v3050 = vpop.f32.mrf.mxu0
  %v3051 = vadd.f32 0.0, %v3050
  %3052 = vmatmul.f32.gmra.mxu0 %v2947
  %v3053 = vpop.f32.mrf.mxu0
  %v3054 = vadd.f32 0.0, %v3053
  %3055 = vmatmul.f32.gmra.mxu0 %v2949
  %v3056 = vpop.f32.mrf.mxu0
  %v3057 = vadd.f32 0.0, %v3056
  %3058 = vmatmul.f32.gmra.mxu0 %v2951
  %v3059 = vpop.f32.mrf.mxu0
  %v3060 = vadd.f32 0.0, %v3059
  %3061 = vmatmul.f32.gmra.mxu0 %v2953
  %v3062 = vpop.f32.mrf.mxu0
  %v3063 = vadd.f32 0.0, %v3062
  %3064 = vmatmul.f32.gmra.mxu0 %v2955
  %v3065 = vpop.f32.mrf.mxu0
  %v3066 = vadd.f32 0.0, %v3065
  %3067 = vmatmul.f32.gmra.mxu0 %v2957
  %v3068 = vpop.f32.mrf.mxu0
  %v3069 = vadd.f32 0.0, %v3068
  %3070 = vmatmul.f32.gmra.mxu0 %v2959
  %v3071 = vpop.f32.mrf.mxu0
  %v3072 = vadd.f32 0.0, %v3071
  %3073 = vdwg.mxu0
  %3074 = vmatpush.msra.mxu0 0.0
  %3075 = vmatpush.msra.mxu0 0.0
  %3076 = vmatpush.msra.mxu0 0.0
  %3077 = vmatpush.msra.mxu0 0.0
  %3078 = vmatpush.msra.mxu0 0.0
  %3079 = vmatpush.msra.mxu0 0.0
  %3080 = vmatpush.msra.mxu0 0.0
  %3081 = vmatpush.msra.mxu0 0.0
  %3082 = vmatpush.msra.mxu0 0.0
  %3083 = vmatpush.msra.mxu0 0.0
  %3084 = vmatpush.msra.mxu0 0.0
  %3085 = vmatpush.msra.mxu0 0.0
  %3086 = vmatpush.msra.mxu0 %v2926
  %3087 = vmatpush.msra.mxu0 %v2923
  %3088 = vmatpush.msra.mxu0 %v2920
  %3089 = vmatpush.msra.mxu0 %v2917
  %3090 = vmatmul.f32.gmra.mxu0 %v2962
  %v3091 = vpop.f32.mrf.mxu0
  %v3092 = vadd.f32 %v3027, %v3091
  %3093 = vmatmul.f32.gmra.mxu0 %v2965
  %v3094 = vpop.f32.mrf.mxu0
  %v3095 = vadd.f32 %v3030, %v3094
  %3096 = vmatmul.f32.gmra.mxu0 %v2968
  %v3097 = vpop.f32.mrf.mxu0
  %v3098 = vadd.f32 %v3033, %v3097
  %3099 = vmatmul.f32.gmra.mxu0 %v2971
  %v3100 = vpop.f32.mrf.mxu0
  %v3101 = vadd.f32 %v3036, %v3100
  %3102 = vmatmul.f32.gmra.mxu0 %v2974
  %v3103 = vpop.f32.mrf.mxu0
  %v3104 = vadd.f32 %v3039, %v3103
  %3105 = vmatmul.f32.gmra.mxu0 %v2977
  %v3106 = vpop.f32.mrf.mxu0
  %v3107 = vadd.f32 %v3042, %v3106
  %3108 = vmatmul.f32.gmra.mxu0 %v2980
  %v3109 = vpop.f32.mrf.mxu0
  %v3110 = vadd.f32 %v3045, %v3109
  %3111 = vmatmul.f32.gmra.mxu0 %v2983
  %v3112 = vpop.f32.mrf.mxu0
  %v3113 = vadd.f32 %v3048, %v3112
  %3114 = vmatmul.f32.gmra.mxu0 %v2986
  %v3115 = vpop.f32.mrf.mxu0
  %v3116 = vadd.f32 %v3051, %v3115
  %3117 = vmatmul.f32.gmra.mxu0 %v2989
  %v3118 = vpop.f32.mrf.mxu0
  %v3119 = vadd.f32 %v3054, %v3118
  %3120 = vmatmul.f32.gmra.mxu0 %v2992
  %v3121 = vpop.f32.mrf.mxu0
  %v3122 = vadd.f32 %v3057, %v3121
  %3123 = vmatmul.f32.gmra.mxu0 %v2995
  %v3124 = vpop.f32.mrf.mxu0
  %v3125 = vadd.f32 %v3060, %v3124
  %3126 = vmatmul.f32.gmra.mxu0 %v2998
  %v3127 = vpop.f32.mrf.mxu0
  %v3128 = vadd.f32 %v3063, %v3127
  %3129 = vmatmul.f32.gmra.mxu0 %v3001
  %v3130 = vpop.f32.mrf.mxu0
  %v3131 = vadd.f32 %v3066, %v3130
  %3132 = vmatmul.f32.gmra.mxu0 %v3004
  %v3133 = vpop.f32.mrf.mxu0
  %v3134 = vadd.f32 %v3069, %v3133
  %3135 = vmatmul.f32.gmra.mxu0 %v3007
  %v3136 = vpop.f32.mrf.mxu0
  %v3137 = vadd.f32 %v3072, %v3136
  %3138 = vdwg.mxu0
  %v3139 = vadd.f32 %v2789, %v3092
  %v3140 = vadd.f32 %v2792, %v3095
  %v3141 = vadd.f32 %v2795, %v3098
  %v3142 = vadd.f32 %v2798, %v3101
  %v3143 = vadd.f32 %v2801, %v3104
  %v3144 = vadd.f32 %v2804, %v3107
  %v3145 = vadd.f32 %v2807, %v3110
  %v3146 = vadd.f32 %v2810, %v3113
  %v3147 = vadd.f32 %v2813, %v3116
  %v3148 = vadd.f32 %v2816, %v3119
  %v3149 = vadd.f32 %v2819, %v3122
  %v3150 = vadd.f32 %v2822, %v3125
  %v3151 = vadd.f32 %v2825, %v3128
  %v3152 = vadd.f32 %v2828, %v3131
  %v3153 = vadd.f32 %v2831, %v3134
  %v3154 = vadd.f32 %v2834, %v3137
  %s3155 = scalar_lea.vmem %s6, 336
  %v3156 = vld [vmem:[%s3155] sm:$0xff]
  %v3157 = vld [vmem:[%s3155 + $0x8] sm:$0xff]
  %v3158 = vld [vmem:[%s3155 + $0x10] sm:$0xff]
  %v3159 = vld [vmem:[%s3155 + $0x18] sm:$0xff]
  %v3160 = vld [vmem:[%s3155 + $0x20] sm:$0xff]
  %v3161 = vld [vmem:[%s3155 + $0x28] sm:$0xff]
  %v3162 = vld [vmem:[%s3155 + $0x30] sm:$0xff]
  %v3163 = vld [vmem:[%s3155 + $0x38] sm:$0xff]
  %v3164 = vld [vmem:[%s3155 + $0x40] sm:$0xff]
  %v3165 = vld [vmem:[%s3155 + $0x48] sm:$0xff]
  %v3166 = vld [vmem:[%s3155 + $0x50] sm:$0xff]
  %v3167 = vld [vmem:[%s3155 + $0x58] sm:$0xff]
  %v3168 = vld [vmem:[%s3155 + $0x60] sm:$0xff]
  %v3169 = vld [vmem:[%s3155 + $0x68] sm:$0xff]
  %3170 = vmatpush.msra.mxu0 0.0
  %3171 = vmatpush.msra.mxu0 0.0
  %3172 = vmatpush.msra.mxu0 %v3169
  %3173 = vmatpush.msra.mxu0 %v3168
  %3174 = vmatpush.msra.mxu0 %v3167
  %3175 = vmatpush.msra.mxu0 %v3166
  %3176 = vmatpush.msra.mxu0 %v3165
  %3177 = vmatpush.msra.mxu0 %v3164
  %3178 = vmatpush.msra.mxu0 %v3163
  %3179 = vmatpush.msra.mxu0 %v3162
  %3180 = vmatpush.msra.mxu0 %v3161
  %3181 = vmatpush.msra.mxu0 %v3160
  %3182 = vmatpush.msra.mxu0 %v3159
  %3183 = vmatpush.msra.mxu0 %v3158
  %3184 = vmatpush.msra.mxu0 %v3157
  %3185 = vmatpush.msra.mxu0 %v3156
  %3186 = vmatmul.f32.gmra.mxu0 %v2187
  %v3187 = vpop.f32.mrf.mxu0
  %v3188 = vadd.f32 0.0, %v3187
  %3189 = vmatmul.f32.gmra.mxu0 %v2190
  %v3190 = vpop.f32.mrf.mxu0
  %v3191 = vadd.f32 0.0, %v3190
  %3192 = vmatmul.f32.gmra.mxu0 %v2193
  %v3193 = vpop.f32.mrf.mxu0
  %v3194 = vadd.f32 0.0, %v3193
  %3195 = vmatmul.f32.gmra.mxu0 %v2196
  %v3196 = vpop.f32.mrf.mxu0
  %v3197 = vadd.f32 0.0, %v3196
  %3198 = vmatmul.f32.gmra.mxu0 %v2199
  %v3199 = vpop.f32.mrf.mxu0
  %v3200 = vadd.f32 0.0, %v3199
  %3201 = vmatmul.f32.gmra.mxu0 %v2202
  %v3202 = vpop.f32.mrf.mxu0
  %v3203 = vadd.f32 0.0, %v3202
  %3204 = vmatmul.f32.gmra.mxu0 %v2205
  %v3205 = vpop.f32.mrf.mxu0
  %v3206 = vadd.f32 0.0, %v3205
  %3207 = vmatmul.f32.gmra.mxu0 %v2208
  %v3208 = vpop.f32.mrf.mxu0
  %v3209 = vadd.f32 0.0, %v3208
  %3210 = vmatmul.f32.gmra.mxu0 %v2211
  %v3211 = vpop.f32.mrf.mxu0
  %v3212 = vadd.f32 0.0, %v3211
  %3213 = vmatmul.f32.gmra.mxu0 %v2214
  %v3214 = vpop.f32.mrf.mxu0
  %v3215 = vadd.f32 0.0, %v3214
  %3216 = vmatmul.f32.gmra.mxu0 %v2217
  %v3217 = vpop.f32.mrf.mxu0
  %v3218 = vadd.f32 0.0, %v3217
  %3219 = vmatmul.f32.gmra.mxu0 %v2220
  %v3220 = vpop.f32.mrf.mxu0
  %v3221 = vadd.f32 0.0, %v3220
  %3222 = vmatmul.f32.gmra.mxu0 %v2223
  %v3223 = vpop.f32.mrf.mxu0
  %v3224 = vadd.f32 0.0, %v3223
  %3225 = vmatmul.f32.gmra.mxu0 %v2226
  %v3226 = vpop.f32.mrf.mxu0
  %v3227 = vadd.f32 0.0, %v3226
  %3228 = vmatmul.f32.gmra.mxu0 %v2229
  %v3229 = vpop.f32.mrf.mxu0
  %v3230 = vadd.f32 0.0, %v3229
  %3231 = vmatmul.f32.gmra.mxu0 %v2232
  %v3232 = vpop.f32.mrf.mxu0
  %v3233 = vadd.f32 0.0, %v3232
  %3234 = vmatmul.f32.gmra.mxu0 %v2235
  %v3235 = vpop.f32.mrf.mxu0
  %v3236 = vadd.f32 0.0, %v3235
  %3237 = vmatmul.f32.gmra.mxu0 %v2238
  %v3238 = vpop.f32.mrf.mxu0
  %v3239 = vadd.f32 0.0, %v3238
  %3240 = vmatmul.f32.gmra.mxu0 %v2241
  %v3241 = vpop.f32.mrf.mxu0
  %v3242 = vadd.f32 0.0, %v3241
  %3243 = vmatmul.f32.gmra.mxu0 %v2244
  %v3244 = vpop.f32.mrf.mxu0
  %v3245 = vadd.f32 0.0, %v3244
  %3246 = vdwg.mxu0
  %s3247 = scalar_lea.vmem %s7, 768
  %v3248 = vld [vmem:[%s3247] sm:$0xff]
  %v3249 = vld [vmem:[%s3247 + $0x8] sm:$0xff]
  %v3250 = vld [vmem:[%s3247 + $0x10] sm:$0xff]
  %v3251 = vld [vmem:[%s3247 + $0x18] sm:$0xff]
  %v3252 = vld [vmem:[%s3247 + $0x20] sm:$0xff]
  %v3253 = vld [vmem:[%s3247 + $0x28] sm:$0xff]
  %v3254 = vld [vmem:[%s3247 + $0x30] sm:$0xff]
  %v3255 = vld [vmem:[%s3247 + $0x38] sm:$0xff]
  %v3256 = vld [vmem:[%s3247 + $0x40] sm:$0xff]
  %v3257 = vld [vmem:[%s3247 + $0x48] sm:$0xff]
  %v3258 = vld [vmem:[%s3247 + $0x50] sm:$0xff]
  %v3259 = vld [vmem:[%s3247 + $0x58] sm:$0xff]
  %v3260 = vld [vmem:[%s3247 + $0x60] sm:$0xff]
  %v3261 = vld [vmem:[%s3247 + $0x68] sm:$0xff]
  %v3262 = vld [vmem:[%s3247 + $0x70] sm:$0xff]
  %v3263 = vld [vmem:[%s3247 + $0x78] sm:$0xff]
  %v3264 = vld [vmem:[%s3247 + $0x80] sm:$0xff]
  %v3265 = vld [vmem:[%s3247 + $0x88] sm:$0xff]
  %v3266 = vld [vmem:[%s3247 + $0x90] sm:$0xff]
  %v3267 = vld [vmem:[%s3247 + $0x98] sm:$0xff]
  %v3268 = vld [vmem:[%s3247 + $0xa0] sm:$0xff]
  %v3269 = vld [vmem:[%s3247 + $0xa8] sm:$0xff]
  %v3270 = vld [vmem:[%s3247 + $0xb0] sm:$0xff]
  %v3271 = vld [vmem:[%s3247 + $0xb8] sm:$0xff]
  %v3272 = vld [vmem:[%s3247 + $0xc0] sm:$0xff]
  %v3273 = vld [vmem:[%s3247 + $0xc8] sm:$0xff]
  %v3274 = vld [vmem:[%s3247 + $0xd0] sm:$0xff]
  %v3275 = vld [vmem:[%s3247 + $0xd8] sm:$0xff]
  %v3276 = vld [vmem:[%s3247 + $0xe0] sm:$0xff]
  %v3277 = vld [vmem:[%s3247 + $0xe8] sm:$0xff]
  %v3278 = vld [vmem:[%s3247 + $0xf0] sm:$0xff]
  %v3279 = vld [vmem:[%s3247 + $0xf8] sm:$0xff]
  %v3281 = vsel %vm400, %v3249, 0
  %v3284 = vsel %vm400, %v3251, 0
  %v3287 = vsel %vm400, %v3253, 0
  %v3290 = vsel %vm400, %v3255, 0
  %v3293 = vsel %vm400, %v3257, 0
  %v3296 = vsel %vm400, %v3259, 0
  %v3299 = vsel %vm400, %v3261, 0
  %v3302 = vsel %vm400, %v3263, 0
  %v3305 = vsel %vm400, %v3265, 0
  %v3308 = vsel %vm400, %v3267, 0
  %v3311 = vsel %vm400, %v3269, 0
  %v3314 = vsel %vm400, %v3271, 0
  %v3317 = vsel %vm400, %v3273, 0
  %v3320 = vsel %vm400, %v3275, 0
  %v3323 = vsel %vm400, %v3277, 0
  %v3326 = vsel %vm400, %v3279, 0
  %3328 = vmatpush.msra.mxu0 %v3233
  %3329 = vmatpush.msra.mxu0 %v3230
  %3330 = vmatpush.msra.mxu0 %v3227
  %3331 = vmatpush.msra.mxu0 %v3224
  %3332 = vmatpush.msra.mxu0 %v3221
  %3333 = vmatpush.msra.mxu0 %v3218
  %3334 = vmatpush.msra.mxu0 %v3215
  %3335 = vmatpush.msra.mxu0 %v3212
  %3336 = vmatpush.msra.mxu0 %v3209
  %3337 = vmatpush.msra.mxu0 %v3206
  %3338 = vmatpush.msra.mxu0 %v3203
  %3339 = vmatpush.msra.mxu0 %v3200
  %3340 = vmatpush.msra.mxu0 %v3197
  %3341 = vmatpush.msra.mxu0 %v3194
  %3342 = vmatpush.msra.mxu0 %v3191
  %3343 = vmatpush.msra.mxu0 %v3188
  %3344 = vmatmul.f32.gmra.mxu0 %v3248
  %v3345 = vpop.f32.mrf.mxu0
  %v3346 = vadd.f32 0.0, %v3345
  %3347 = vmatmul.f32.gmra.mxu0 %v3250
  %v3348 = vpop.f32.mrf.mxu0
  %v3349 = vadd.f32 0.0, %v3348
  %3350 = vmatmul.f32.gmra.mxu0 %v3252
  %v3351 = vpop.f32.mrf.mxu0
  %v3352 = vadd.f32 0.0, %v3351
  %3353 = vmatmul.f32.gmra.mxu0 %v3254
  %v3354 = vpop.f32.mrf.mxu0
  %v3355 = vadd.f32 0.0, %v3354
  %3356 = vmatmul.f32.gmra.mxu0 %v3256
  %v3357 = vpop.f32.mrf.mxu0
  %v3358 = vadd.f32 0.0, %v3357
  %3359 = vmatmul.f32.gmra.mxu0 %v3258
  %v3360 = vpop.f32.mrf.mxu0
  %v3361 = vadd.f32 0.0, %v3360
  %3362 = vmatmul.f32.gmra.mxu0 %v3260
  %v3363 = vpop.f32.mrf.mxu0
  %v3364 = vadd.f32 0.0, %v3363
  %3365 = vmatmul.f32.gmra.mxu0 %v3262
  %v3366 = vpop.f32.mrf.mxu0
  %v3367 = vadd.f32 0.0, %v3366
  %3368 = vmatmul.f32.gmra.mxu0 %v3264
  %v3369 = vpop.f32.mrf.mxu0
  %v3370 = vadd.f32 0.0, %v3369
  %3371 = vmatmul.f32.gmra.mxu0 %v3266
  %v3372 = vpop.f32.mrf.mxu0
  %v3373 = vadd.f32 0.0, %v3372
  %3374 = vmatmul.f32.gmra.mxu0 %v3268
  %v3375 = vpop.f32.mrf.mxu0
  %v3376 = vadd.f32 0.0, %v3375
  %3377 = vmatmul.f32.gmra.mxu0 %v3270
  %v3378 = vpop.f32.mrf.mxu0
  %v3379 = vadd.f32 0.0, %v3378
  %3380 = vmatmul.f32.gmra.mxu0 %v3272
  %v3381 = vpop.f32.mrf.mxu0
  %v3382 = vadd.f32 0.0, %v3381
  %3383 = vmatmul.f32.gmra.mxu0 %v3274
  %v3384 = vpop.f32.mrf.mxu0
  %v3385 = vadd.f32 0.0, %v3384
  %3386 = vmatmul.f32.gmra.mxu0 %v3276
  %v3387 = vpop.f32.mrf.mxu0
  %v3388 = vadd.f32 0.0, %v3387
  %3389 = vmatmul.f32.gmra.mxu0 %v3278
  %v3390 = vpop.f32.mrf.mxu0
  %v3391 = vadd.f32 0.0, %v3390
  %3392 = vdwg.mxu0
  %3393 = vmatpush.msra.mxu0 0.0
  %3394 = vmatpush.msra.mxu0 0.0
  %3395 = vmatpush.msra.mxu0 0.0
  %3396 = vmatpush.msra.mxu0 0.0
  %3397 = vmatpush.msra.mxu0 0.0
  %3398 = vmatpush.msra.mxu0 0.0
  %3399 = vmatpush.msra.mxu0 0.0
  %3400 = vmatpush.msra.mxu0 0.0
  %3401 = vmatpush.msra.mxu0 0.0
  %3402 = vmatpush.msra.mxu0 0.0
  %3403 = vmatpush.msra.mxu0 0.0
  %3404 = vmatpush.msra.mxu0 0.0
  %3405 = vmatpush.msra.mxu0 %v3245
  %3406 = vmatpush.msra.mxu0 %v3242
  %3407 = vmatpush.msra.mxu0 %v3239
  %3408 = vmatpush.msra.mxu0 %v3236
  %3409 = vmatmul.f32.gmra.mxu0 %v3281
  %v3410 = vpop.f32.mrf.mxu0
  %v3411 = vadd.f32 %v3346, %v3410
  %3412 = vmatmul.f32.gmra.mxu0 %v3284
  %v3413 = vpop.f32.mrf.mxu0
  %v3414 = vadd.f32 %v3349, %v3413
  %3415 = vmatmul.f32.gmra.mxu0 %v3287
  %v3416 = vpop.f32.mrf.mxu0
  %v3417 = vadd.f32 %v3352, %v3416
  %3418 = vmatmul.f32.gmra.mxu0 %v3290
  %v3419 = vpop.f32.mrf.mxu0
  %v3420 = vadd.f32 %v3355, %v3419
  %3421 = vmatmul.f32.gmra.mxu0 %v3293
  %v3422 = vpop.f32.mrf.mxu0
  %v3423 = vadd.f32 %v3358, %v3422
  %3424 = vmatmul.f32.gmra.mxu0 %v3296
  %v3425 = vpop.f32.mrf.mxu0
  %v3426 = vadd.f32 %v3361, %v3425
  %3427 = vmatmul.f32.gmra.mxu0 %v3299
  %v3428 = vpop.f32.mrf.mxu0
  %v3429 = vadd.f32 %v3364, %v3428
  %3430 = vmatmul.f32.gmra.mxu0 %v3302
  %v3431 = vpop.f32.mrf.mxu0
  %v3432 = vadd.f32 %v3367, %v3431
  %3433 = vmatmul.f32.gmra.mxu0 %v3305
  %v3434 = vpop.f32.mrf.mxu0
  %v3435 = vadd.f32 %v3370, %v3434
  %3436 = vmatmul.f32.gmra.mxu0 %v3308
  %v3437 = vpop.f32.mrf.mxu0
  %v3438 = vadd.f32 %v3373, %v3437
  %3439 = vmatmul.f32.gmra.mxu0 %v3311
  %v3440 = vpop.f32.mrf.mxu0
  %v3441 = vadd.f32 %v3376, %v3440
  %3442 = vmatmul.f32.gmra.mxu0 %v3314
  %v3443 = vpop.f32.mrf.mxu0
  %v3444 = vadd.f32 %v3379, %v3443
  %3445 = vmatmul.f32.gmra.mxu0 %v3317
  %v3446 = vpop.f32.mrf.mxu0
  %v3447 = vadd.f32 %v3382, %v3446
  %3448 = vmatmul.f32.gmra.mxu0 %v3320
  %v3449 = vpop.f32.mrf.mxu0
  %v3450 = vadd.f32 %v3385, %v3449
  %3451 = vmatmul.f32.gmra.mxu0 %v3323
  %v3452 = vpop.f32.mrf.mxu0
  %v3453 = vadd.f32 %v3388, %v3452
  %3454 = vmatmul.f32.gmra.mxu0 %v3326
  %v3455 = vpop.f32.mrf.mxu0
  %v3456 = vadd.f32 %v3391, %v3455
  %3457 = vdwg.mxu0
  %v3458 = vadd.f32 %v3139, %v3411
  %v3459 = vadd.f32 %v3140, %v3414
  %v3460 = vadd.f32 %v3141, %v3417
  %v3461 = vadd.f32 %v3142, %v3420
  %v3462 = vadd.f32 %v3143, %v3423
  %v3463 = vadd.f32 %v3144, %v3426
  %v3464 = vadd.f32 %v3145, %v3429
  %v3465 = vadd.f32 %v3146, %v3432
  %v3466 = vadd.f32 %v3147, %v3435
  %v3467 = vadd.f32 %v3148, %v3438
  %v3468 = vadd.f32 %v3149, %v3441
  %v3469 = vadd.f32 %v3150, %v3444
  %v3470 = vadd.f32 %v3151, %v3447
  %v3471 = vadd.f32 %v3152, %v3450
  %v3472 = vadd.f32 %v3153, %v3453
  %v3473 = vadd.f32 %v3154, %v3456
  %s3474 = scalar_lea.vmem %s6, 448
  %v3475 = vld [vmem:[%s3474] sm:$0xff]
  %v3476 = vld [vmem:[%s3474 + $0x8] sm:$0xff]
  %v3477 = vld [vmem:[%s3474 + $0x10] sm:$0xff]
  %v3478 = vld [vmem:[%s3474 + $0x18] sm:$0xff]
  %v3479 = vld [vmem:[%s3474 + $0x20] sm:$0xff]
  %v3480 = vld [vmem:[%s3474 + $0x28] sm:$0xff]
  %v3481 = vld [vmem:[%s3474 + $0x30] sm:$0xff]
  %v3482 = vld [vmem:[%s3474 + $0x38] sm:$0xff]
  %v3483 = vld [vmem:[%s3474 + $0x40] sm:$0xff]
  %v3484 = vld [vmem:[%s3474 + $0x48] sm:$0xff]
  %v3485 = vld [vmem:[%s3474 + $0x50] sm:$0xff]
  %v3486 = vld [vmem:[%s3474 + $0x58] sm:$0xff]
  %v3487 = vld [vmem:[%s3474 + $0x60] sm:$0xff]
  %v3488 = vld [vmem:[%s3474 + $0x68] sm:$0xff]
  %3489 = vmatpush.msra.mxu0 0.0
  %3490 = vmatpush.msra.mxu0 0.0
  %3491 = vmatpush.msra.mxu0 %v3488
  %3492 = vmatpush.msra.mxu0 %v3487
  %3493 = vmatpush.msra.mxu0 %v3486
  %3494 = vmatpush.msra.mxu0 %v3485
  %3495 = vmatpush.msra.mxu0 %v3484
  %3496 = vmatpush.msra.mxu0 %v3483
  %3497 = vmatpush.msra.mxu0 %v3482
  %3498 = vmatpush.msra.mxu0 %v3481
  %3499 = vmatpush.msra.mxu0 %v3480
  %3500 = vmatpush.msra.mxu0 %v3479
  %3501 = vmatpush.msra.mxu0 %v3478
  %3502 = vmatpush.msra.mxu0 %v3477
  %3503 = vmatpush.msra.mxu0 %v3476
  %3504 = vmatpush.msra.mxu0 %v3475
  %3505 = vmatmul.f32.gmra.mxu0 %v2187
  %v3506 = vpop.f32.mrf.mxu0
  %v3507 = vadd.f32 0.0, %v3506
  %3508 = vmatmul.f32.gmra.mxu0 %v2190
  %v3509 = vpop.f32.mrf.mxu0
  %v3510 = vadd.f32 0.0, %v3509
  %3511 = vmatmul.f32.gmra.mxu0 %v2193
  %v3512 = vpop.f32.mrf.mxu0
  %v3513 = vadd.f32 0.0, %v3512
  %3514 = vmatmul.f32.gmra.mxu0 %v2196
  %v3515 = vpop.f32.mrf.mxu0
  %v3516 = vadd.f32 0.0, %v3515
  %3517 = vmatmul.f32.gmra.mxu0 %v2199
  %v3518 = vpop.f32.mrf.mxu0
  %v3519 = vadd.f32 0.0, %v3518
  %3520 = vmatmul.f32.gmra.mxu0 %v2202
  %v3521 = vpop.f32.mrf.mxu0
  %v3522 = vadd.f32 0.0, %v3521
  %3523 = vmatmul.f32.gmra.mxu0 %v2205
  %v3524 = vpop.f32.mrf.mxu0
  %v3525 = vadd.f32 0.0, %v3524
  %3526 = vmatmul.f32.gmra.mxu0 %v2208
  %v3527 = vpop.f32.mrf.mxu0
  %v3528 = vadd.f32 0.0, %v3527
  %3529 = vmatmul.f32.gmra.mxu0 %v2211
  %v3530 = vpop.f32.mrf.mxu0
  %v3531 = vadd.f32 0.0, %v3530
  %3532 = vmatmul.f32.gmra.mxu0 %v2214
  %v3533 = vpop.f32.mrf.mxu0
  %v3534 = vadd.f32 0.0, %v3533
  %3535 = vmatmul.f32.gmra.mxu0 %v2217
  %v3536 = vpop.f32.mrf.mxu0
  %v3537 = vadd.f32 0.0, %v3536
  %3538 = vmatmul.f32.gmra.mxu0 %v2220
  %v3539 = vpop.f32.mrf.mxu0
  %v3540 = vadd.f32 0.0, %v3539
  %3541 = vmatmul.f32.gmra.mxu0 %v2223
  %v3542 = vpop.f32.mrf.mxu0
  %v3543 = vadd.f32 0.0, %v3542
  %3544 = vmatmul.f32.gmra.mxu0 %v2226
  %v3545 = vpop.f32.mrf.mxu0
  %v3546 = vadd.f32 0.0, %v3545
  %3547 = vmatmul.f32.gmra.mxu0 %v2229
  %v3548 = vpop.f32.mrf.mxu0
  %v3549 = vadd.f32 0.0, %v3548
  %3550 = vmatmul.f32.gmra.mxu0 %v2232
  %v3551 = vpop.f32.mrf.mxu0
  %v3552 = vadd.f32 0.0, %v3551
  %3553 = vmatmul.f32.gmra.mxu0 %v2235
  %v3554 = vpop.f32.mrf.mxu0
  %v3555 = vadd.f32 0.0, %v3554
  %3556 = vmatmul.f32.gmra.mxu0 %v2238
  %v3557 = vpop.f32.mrf.mxu0
  %v3558 = vadd.f32 0.0, %v3557
  %3559 = vmatmul.f32.gmra.mxu0 %v2241
  %v3560 = vpop.f32.mrf.mxu0
  %v3561 = vadd.f32 0.0, %v3560
  %3562 = vmatmul.f32.gmra.mxu0 %v2244
  %v3563 = vpop.f32.mrf.mxu0
  %v3564 = vadd.f32 0.0, %v3563
  %3565 = vdwg.mxu0
  %s3566 = scalar_lea.vmem %s7, 1024
  %v3567 = vld [vmem:[%s3566] sm:$0xff]
  %v3568 = vld [vmem:[%s3566 + $0x8] sm:$0xff]
  %v3569 = vld [vmem:[%s3566 + $0x10] sm:$0xff]
  %v3570 = vld [vmem:[%s3566 + $0x18] sm:$0xff]
  %v3571 = vld [vmem:[%s3566 + $0x20] sm:$0xff]
  %v3572 = vld [vmem:[%s3566 + $0x28] sm:$0xff]
  %v3573 = vld [vmem:[%s3566 + $0x30] sm:$0xff]
  %v3574 = vld [vmem:[%s3566 + $0x38] sm:$0xff]
  %v3575 = vld [vmem:[%s3566 + $0x40] sm:$0xff]
  %v3576 = vld [vmem:[%s3566 + $0x48] sm:$0xff]
  %v3577 = vld [vmem:[%s3566 + $0x50] sm:$0xff]
  %v3578 = vld [vmem:[%s3566 + $0x58] sm:$0xff]
  %v3579 = vld [vmem:[%s3566 + $0x60] sm:$0xff]
  %v3580 = vld [vmem:[%s3566 + $0x68] sm:$0xff]
  %v3581 = vld [vmem:[%s3566 + $0x70] sm:$0xff]
  %v3582 = vld [vmem:[%s3566 + $0x78] sm:$0xff]
  %v3583 = vld [vmem:[%s3566 + $0x80] sm:$0xff]
  %v3584 = vld [vmem:[%s3566 + $0x88] sm:$0xff]
  %v3585 = vld [vmem:[%s3566 + $0x90] sm:$0xff]
  %v3586 = vld [vmem:[%s3566 + $0x98] sm:$0xff]
  %v3587 = vld [vmem:[%s3566 + $0xa0] sm:$0xff]
  %v3588 = vld [vmem:[%s3566 + $0xa8] sm:$0xff]
  %v3589 = vld [vmem:[%s3566 + $0xb0] sm:$0xff]
  %v3590 = vld [vmem:[%s3566 + $0xb8] sm:$0xff]
  %v3591 = vld [vmem:[%s3566 + $0xc0] sm:$0xff]
  %v3592 = vld [vmem:[%s3566 + $0xc8] sm:$0xff]
  %v3593 = vld [vmem:[%s3566 + $0xd0] sm:$0xff]
  %v3594 = vld [vmem:[%s3566 + $0xd8] sm:$0xff]
  %v3595 = vld [vmem:[%s3566 + $0xe0] sm:$0xff]
  %v3596 = vld [vmem:[%s3566 + $0xe8] sm:$0xff]
  %v3597 = vld [vmem:[%s3566 + $0xf0] sm:$0xff]
  %v3598 = vld [vmem:[%s3566 + $0xf8] sm:$0xff]
  %v3600 = vsel %vm400, %v3568, 0
  %v3603 = vsel %vm400, %v3570, 0
  %v3606 = vsel %vm400, %v3572, 0
  %v3609 = vsel %vm400, %v3574, 0
  %v3612 = vsel %vm400, %v3576, 0
  %v3615 = vsel %vm400, %v3578, 0
  %v3618 = vsel %vm400, %v3580, 0
  %v3621 = vsel %vm400, %v3582, 0
  %v3624 = vsel %vm400, %v3584, 0
  %v3627 = vsel %vm400, %v3586, 0
  %v3630 = vsel %vm400, %v3588, 0
  %v3633 = vsel %vm400, %v3590, 0
  %v3636 = vsel %vm400, %v3592, 0
  %v3639 = vsel %vm400, %v3594, 0
  %v3642 = vsel %vm400, %v3596, 0
  %v3645 = vsel %vm400, %v3598, 0
  %3647 = vmatpush.msra.mxu0 %v3552
  %3648 = vmatpush.msra.mxu0 %v3549
  %3649 = vmatpush.msra.mxu0 %v3546
  %3650 = vmatpush.msra.mxu0 %v3543
  %3651 = vmatpush.msra.mxu0 %v3540
  %3652 = vmatpush.msra.mxu0 %v3537
  %3653 = vmatpush.msra.mxu0 %v3534
  %3654 = vmatpush.msra.mxu0 %v3531
  %3655 = vmatpush.msra.mxu0 %v3528
  %3656 = vmatpush.msra.mxu0 %v3525
  %3657 = vmatpush.msra.mxu0 %v3522
  %3658 = vmatpush.msra.mxu0 %v3519
  %3659 = vmatpush.msra.mxu0 %v3516
  %3660 = vmatpush.msra.mxu0 %v3513
  %3661 = vmatpush.msra.mxu0 %v3510
  %3662 = vmatpush.msra.mxu0 %v3507
  %3663 = vmatmul.f32.gmra.mxu0 %v3567
  %v3664 = vpop.f32.mrf.mxu0
  %v3665 = vadd.f32 0.0, %v3664
  %3666 = vmatmul.f32.gmra.mxu0 %v3569
  %v3667 = vpop.f32.mrf.mxu0
  %v3668 = vadd.f32 0.0, %v3667
  %3669 = vmatmul.f32.gmra.mxu0 %v3571
  %v3670 = vpop.f32.mrf.mxu0
  %v3671 = vadd.f32 0.0, %v3670
  %3672 = vmatmul.f32.gmra.mxu0 %v3573
  %v3673 = vpop.f32.mrf.mxu0
  %v3674 = vadd.f32 0.0, %v3673
  %3675 = vmatmul.f32.gmra.mxu0 %v3575
  %v3676 = vpop.f32.mrf.mxu0
  %v3677 = vadd.f32 0.0, %v3676
  %3678 = vmatmul.f32.gmra.mxu0 %v3577
  %v3679 = vpop.f32.mrf.mxu0
  %v3680 = vadd.f32 0.0, %v3679
  %3681 = vmatmul.f32.gmra.mxu0 %v3579
  %v3682 = vpop.f32.mrf.mxu0
  %v3683 = vadd.f32 0.0, %v3682
  %3684 = vmatmul.f32.gmra.mxu0 %v3581
  %v3685 = vpop.f32.mrf.mxu0
  %v3686 = vadd.f32 0.0, %v3685
  %3687 = vmatmul.f32.gmra.mxu0 %v3583
  %v3688 = vpop.f32.mrf.mxu0
  %v3689 = vadd.f32 0.0, %v3688
  %3690 = vmatmul.f32.gmra.mxu0 %v3585
  %v3691 = vpop.f32.mrf.mxu0
  %v3692 = vadd.f32 0.0, %v3691
  %3693 = vmatmul.f32.gmra.mxu0 %v3587
  %v3694 = vpop.f32.mrf.mxu0
  %v3695 = vadd.f32 0.0, %v3694
  %3696 = vmatmul.f32.gmra.mxu0 %v3589
  %v3697 = vpop.f32.mrf.mxu0
  %v3698 = vadd.f32 0.0, %v3697
  %3699 = vmatmul.f32.gmra.mxu0 %v3591
  %v3700 = vpop.f32.mrf.mxu0
  %v3701 = vadd.f32 0.0, %v3700
  %3702 = vmatmul.f32.gmra.mxu0 %v3593
  %v3703 = vpop.f32.mrf.mxu0
  %v3704 = vadd.f32 0.0, %v3703
  %3705 = vmatmul.f32.gmra.mxu0 %v3595
  %v3706 = vpop.f32.mrf.mxu0
  %v3707 = vadd.f32 0.0, %v3706
  %3708 = vmatmul.f32.gmra.mxu0 %v3597
  %v3709 = vpop.f32.mrf.mxu0
  %v3710 = vadd.f32 0.0, %v3709
  %3711 = vdwg.mxu0
  %3712 = vmatpush.msra.mxu0 0.0
  %3713 = vmatpush.msra.mxu0 0.0
  %3714 = vmatpush.msra.mxu0 0.0
  %3715 = vmatpush.msra.mxu0 0.0
  %3716 = vmatpush.msra.mxu0 0.0
  %3717 = vmatpush.msra.mxu0 0.0
  %3718 = vmatpush.msra.mxu0 0.0
  %3719 = vmatpush.msra.mxu0 0.0
  %3720 = vmatpush.msra.mxu0 0.0
  %3721 = vmatpush.msra.mxu0 0.0
  %3722 = vmatpush.msra.mxu0 0.0
  %3723 = vmatpush.msra.mxu0 0.0
  %3724 = vmatpush.msra.mxu0 %v3564
  %3725 = vmatpush.msra.mxu0 %v3561
  %3726 = vmatpush.msra.mxu0 %v3558
  %3727 = vmatpush.msra.mxu0 %v3555
  %3728 = vmatmul.f32.gmra.mxu0 %v3600
  %v3729 = vpop.f32.mrf.mxu0
  %v3730 = vadd.f32 %v3665, %v3729
  %3731 = vmatmul.f32.gmra.mxu0 %v3603
  %v3732 = vpop.f32.mrf.mxu0
  %v3733 = vadd.f32 %v3668, %v3732
  %3734 = vmatmul.f32.gmra.mxu0 %v3606
  %v3735 = vpop.f32.mrf.mxu0
  %v3736 = vadd.f32 %v3671, %v3735
  %3737 = vmatmul.f32.gmra.mxu0 %v3609
  %v3738 = vpop.f32.mrf.mxu0
  %v3739 = vadd.f32 %v3674, %v3738
  %3740 = vmatmul.f32.gmra.mxu0 %v3612
  %v3741 = vpop.f32.mrf.mxu0
  %v3742 = vadd.f32 %v3677, %v3741
  %3743 = vmatmul.f32.gmra.mxu0 %v3615
  %v3744 = vpop.f32.mrf.mxu0
  %v3745 = vadd.f32 %v3680, %v3744
  %3746 = vmatmul.f32.gmra.mxu0 %v3618
  %v3747 = vpop.f32.mrf.mxu0
  %v3748 = vadd.f32 %v3683, %v3747
  %3749 = vmatmul.f32.gmra.mxu0 %v3621
  %v3750 = vpop.f32.mrf.mxu0
  %v3751 = vadd.f32 %v3686, %v3750
  %3752 = vmatmul.f32.gmra.mxu0 %v3624
  %v3753 = vpop.f32.mrf.mxu0
  %v3754 = vadd.f32 %v3689, %v3753
  %3755 = vmatmul.f32.gmra.mxu0 %v3627
  %v3756 = vpop.f32.mrf.mxu0
  %v3757 = vadd.f32 %v3692, %v3756
  %3758 = vmatmul.f32.gmra.mxu0 %v3630
  %v3759 = vpop.f32.mrf.mxu0
  %v3760 = vadd.f32 %v3695, %v3759
  %3761 = vmatmul.f32.gmra.mxu0 %v3633
  %v3762 = vpop.f32.mrf.mxu0
  %v3763 = vadd.f32 %v3698, %v3762
  %3764 = vmatmul.f32.gmra.mxu0 %v3636
  %v3765 = vpop.f32.mrf.mxu0
  %v3766 = vadd.f32 %v3701, %v3765
  %3767 = vmatmul.f32.gmra.mxu0 %v3639
  %v3768 = vpop.f32.mrf.mxu0
  %v3769 = vadd.f32 %v3704, %v3768
  %3770 = vmatmul.f32.gmra.mxu0 %v3642
  %v3771 = vpop.f32.mrf.mxu0
  %v3772 = vadd.f32 %v3707, %v3771
  %3773 = vmatmul.f32.gmra.mxu0 %v3645
  %v3774 = vpop.f32.mrf.mxu0
  %v3775 = vadd.f32 %v3710, %v3774
  %3776 = vdwg.mxu0
  %v3777 = vadd.f32 %v3458, %v3730
  %v3778 = vadd.f32 %v3459, %v3733
  %v3779 = vadd.f32 %v3460, %v3736
  %v3780 = vadd.f32 %v3461, %v3739
  %v3781 = vadd.f32 %v3462, %v3742
  %v3782 = vadd.f32 %v3463, %v3745
  %v3783 = vadd.f32 %v3464, %v3748
  %v3784 = vadd.f32 %v3465, %v3751
  %v3785 = vadd.f32 %v3466, %v3754
  %v3786 = vadd.f32 %v3467, %v3757
  %v3787 = vadd.f32 %v3468, %v3760
  %v3788 = vadd.f32 %v3469, %v3763
  %v3789 = vadd.f32 %v3470, %v3766
  %v3790 = vadd.f32 %v3471, %v3769
  %v3791 = vadd.f32 %v3472, %v3772
  %v3792 = vadd.f32 %v3473, %v3775
  %v3793 = vld [vmem:[%s8] sm:$0xff]
  %v3794 = vld [vmem:[%s8 + $0x8] sm:$0xff]
  %v3795 = vld [vmem:[%s8 + $0x10] sm:$0xff]
  %v3796 = vld [vmem:[%s8 + $0x18] sm:$0xff]
  %v3797 = vld [vmem:[%s8 + $0x20] sm:$0xff]
  %v3798 = vld [vmem:[%s8 + $0x28] sm:$0xff]
  %v3799 = vld [vmem:[%s8 + $0x30] sm:$0xff]
  %v3800 = vld [vmem:[%s8 + $0x38] sm:$0xff]
  %v3801 = vld [vmem:[%s8 + $0x40] sm:$0xff]
  %v3802 = vld [vmem:[%s8 + $0x48] sm:$0xff]
  %v3803 = vld [vmem:[%s8 + $0x50] sm:$0xff]
  %v3804 = vld [vmem:[%s8 + $0x58] sm:$0xff]
  %v3805 = vld [vmem:[%s8 + $0x60] sm:$0xff]
  %v3806 = vld [vmem:[%s8 + $0x68] sm:$0xff]
  %v3807 = vld [vmem:[%s8 + $0x70] sm:$0xff]
  %v3808 = vld [vmem:[%s8 + $0x78] sm:$0xff]
  %3810 = vset.pattern.permute.xlu0 0
  %3811 = vperm.xlu0 %3810, %v3793
  %v3812 = vpop.permute.xlu0 %3811
  %3815 = vset.pattern.permute.xlu0 0
  %3816 = vperm.xlu0 %3815, %v3794
  %v3817 = vpop.permute.xlu0 %3816
  %3820 = vset.pattern.permute.xlu0 0
  %3821 = vperm.xlu0 %3820, %v3795
  %v3822 = vpop.permute.xlu0 %3821
  %3825 = vset.pattern.permute.xlu0 0
  %3826 = vperm.xlu0 %3825, %v3796
  %v3827 = vpop.permute.xlu0 %3826
  %3830 = vset.pattern.permute.xlu0 0
  %3831 = vperm.xlu0 %3830, %v3797
  %v3832 = vpop.permute.xlu0 %3831
  %3835 = vset.pattern.permute.xlu0 0
  %3836 = vperm.xlu0 %3835, %v3798
  %v3837 = vpop.permute.xlu0 %3836
  %3840 = vset.pattern.permute.xlu0 0
  %3841 = vperm.xlu0 %3840, %v3799
  %v3842 = vpop.permute.xlu0 %3841
  %3845 = vset.pattern.permute.xlu0 0
  %3846 = vperm.xlu0 %3845, %v3800
  %v3847 = vpop.permute.xlu0 %3846
  %3850 = vset.pattern.permute.xlu0 0
  %3851 = vperm.xlu0 %3850, %v3801
  %v3852 = vpop.permute.xlu0 %3851
  %3855 = vset.pattern.permute.xlu0 0
  %3856 = vperm.xlu0 %3855, %v3802
  %v3857 = vpop.permute.xlu0 %3856
  %3860 = vset.pattern.permute.xlu0 0
  %3861 = vperm.xlu0 %3860, %v3803
  %v3862 = vpop.permute.xlu0 %3861
  %3865 = vset.pattern.permute.xlu0 0
  %3866 = vperm.xlu0 %3865, %v3804
  %v3867 = vpop.permute.xlu0 %3866
  %3870 = vset.pattern.permute.xlu0 0
  %3871 = vperm.xlu0 %3870, %v3805
  %v3872 = vpop.permute.xlu0 %3871
  %3875 = vset.pattern.permute.xlu0 0
  %3876 = vperm.xlu0 %3875, %v3806
  %v3877 = vpop.permute.xlu0 %3876
  %3880 = vset.pattern.permute.xlu0 0
  %3881 = vperm.xlu0 %3880, %v3807
  %v3882 = vpop.permute.xlu0 %3881
  %3885 = vset.pattern.permute.xlu0 0
  %3886 = vperm.xlu0 %3885, %v3808
  %v3887 = vpop.permute.xlu0 %3886
  %v3889 = vadd.f32 %v3777, %v3812
  %v3890 = vadd.f32 %v3778, %v3817
  %v3891 = vadd.f32 %v3779, %v3822
  %v3892 = vadd.f32 %v3780, %v3827
  %v3893 = vadd.f32 %v3781, %v3832
  %v3894 = vadd.f32 %v3782, %v3837
  %v3895 = vadd.f32 %v3783, %v3842
  %v3896 = vadd.f32 %v3784, %v3847
  %v3897 = vadd.f32 %v3785, %v3852
  %v3898 = vadd.f32 %v3786, %v3857
  %v3899 = vadd.f32 %v3787, %v3862
  %v3900 = vadd.f32 %v3788, %v3867
  %v3901 = vadd.f32 %v3789, %v3872
  %v3902 = vadd.f32 %v3790, %v3877
  %v3903 = vadd.f32 %v3791, %v3882
  %v3904 = vadd.f32 %v3792, %v3887
  %v3905 = vmax.f32 %v3889, 0.0
  %v3906 = vmax.f32 %v3890, 0.0
  %v3907 = vmax.f32 %v3891, 0.0
  %v3908 = vmax.f32 %v3892, 0.0
  %v3909 = vmax.f32 %v3893, 0.0
  %v3910 = vmax.f32 %v3894, 0.0
  %v3911 = vmax.f32 %v3895, 0.0
  %v3912 = vmax.f32 %v3896, 0.0
  %v3913 = vmax.f32 %v3897, 0.0
  %v3914 = vmax.f32 %v3898, 0.0
  %v3915 = vmax.f32 %v3899, 0.0
  %v3916 = vmax.f32 %v3900, 0.0
  %v3917 = vmax.f32 %v3901, 0.0
  %v3918 = vmax.f32 %v3902, 0.0
  %v3919 = vmax.f32 %v3903, 0.0
  %v3920 = vmax.f32 %v3904, 0.0
  %3921 = vxpose.xlu0.b32.start [1/16] %v3905, 128
  %3922 = vxpose.xlu0.b32.cont [2/16] %v3906, 128
  %3923 = vxpose.xlu0.b32.cont [3/16] %v3907, 128
  %3924 = vxpose.xlu0.b32.cont [4/16] %v3908, 128
  %3925 = vxpose.xlu0.b32.cont [5/16] %v3909, 128
  %3926 = vxpose.xlu0.b32.cont [6/16] %v3910, 128
  %3927 = vxpose.xlu0.b32.cont [7/16] %v3911, 128
  %3928 = vxpose.xlu0.b32.cont [8/16] %v3912, 128
  %3929 = vxpose.xlu0.b32.cont [9/16] %v3913, 128
  %3930 = vxpose.xlu0.b32.cont [10/16] %v3914, 128
  %3931 = vxpose.xlu0.b32.cont [11/16] %v3915, 128
  %3932 = vxpose.xlu0.b32.cont [12/16] %v3916, 128
  %3933 = vxpose.xlu0.b32.cont [13/16] %v3917, 128
  %3934 = vxpose.xlu0.b32.cont [14/16] %v3918, 128
  %3935 = vxpose.xlu0.b32.cont [15/16] %v3919, 128
  %3936 = vxpose.xlu0.b32.end [16/16] %v3920, 128
  %v3937 = vpop.trf.xlu0
  %v3938 = vpop.trf.xlu0
  %v3939 = vpop.trf.xlu0
  %v3940 = vpop.trf.xlu0
  %v3941 = vpop.trf.xlu0
  %v3942 = vpop.trf.xlu0
  %v3943 = vpop.trf.xlu0
  %v3944 = vpop.trf.xlu0
  %v3945 = vpop.trf.xlu0
  %v3946 = vpop.trf.xlu0
  %v3947 = vpop.trf.xlu0
  %v3948 = vpop.trf.xlu0
  %v3949 = vpop.trf.xlu0
  %v3950 = vpop.trf.xlu0
  %v3951 = vpop.trf.xlu0
  %v3952 = vpop.trf.xlu0
  %v3953 = vld [vmem:[%s9] sm:$0xff]
  %v3954 = vld [vmem:[%s9 + $0x8] sm:$0xff]
  %v3955 = vld [vmem:[%s9 + $0x10] sm:$0xff]
  %v3956 = vld [vmem:[%s9 + $0x18] sm:$0xff]
  %v3957 = vld [vmem:[%s9 + $0x20] sm:$0xff]
  %v3958 = vld [vmem:[%s9 + $0x28] sm:$0xff]
  %v3959 = vld [vmem:[%s9 + $0x30] sm:$0xff]
  %v3960 = vld [vmem:[%s9 + $0x38] sm:$0xff]
  %v3961 = vld [vmem:[%s9 + $0x40] sm:$0xff]
  %v3962 = vld [vmem:[%s9 + $0x48] sm:$0xff]
  %v3963 = vld [vmem:[%s9 + $0x50] sm:$0xff]
  %v3964 = vld [vmem:[%s9 + $0x58] sm:$0xff]
  %v3965 = vld [vmem:[%s9 + $0x60] sm:$0xff]
  %v3966 = vld [vmem:[%s9 + $0x68] sm:$0xff]
  %v3967 = vld [vmem:[%s9 + $0x70] sm:$0xff]
  %v3968 = vld [vmem:[%s9 + $0x78] sm:$0xff]
  %v3969 = vld [vmem:[%s10] sm:$0x1]
  %v3971 = vperm.slane %v3969, 0
  %3973 = vmatpush.msra.mxu0 %v3968
  %3974 = vmatpush.msra.mxu0 %v3967
  %3975 = vmatpush.msra.mxu0 %v3966
  %3976 = vmatpush.msra.mxu0 %v3965
  %3977 = vmatpush.msra.mxu0 %v3964
  %3978 = vmatpush.msra.mxu0 %v3963
  %3979 = vmatpush.msra.mxu0 %v3962
  %3980 = vmatpush.msra.mxu0 %v3961
  %3981 = vmatpush.msra.mxu0 %v3960
  %3982 = vmatpush.msra.mxu0 %v3959
  %3983 = vmatpush.msra.mxu0 %v3958
  %3984 = vmatpush.msra.mxu0 %v3957
  %3985 = vmatpush.msra.mxu0 %v3956
  %3986 = vmatpush.msra.mxu0 %v3955
  %3987 = vmatpush.msra.mxu0 %v3954
  %3988 = vmatpush.msra.mxu0 %v3953
  %3989 = vmatmul.f32.gmra.mxu0 %v3937
  %v3990 = vpop.f32.mrf.mxu0
  %v3991 = vadd.f32 %v3971, %v3990
  %3992 = vdwg.mxu0
  %v3993 = vmax.f32 %v3991, 0.0
  %v3994 = vld [vmem:[%s11] sm:$0xff]
  %v3995 = vld [vmem:[%s11 + $0x8] sm:$0xff]
  %v3996 = vld [vmem:[%s11 + $0x10] sm:$0xff]
  %v3997 = vld [vmem:[%s11 + $0x18] sm:$0xff]
  %v3998 = vld [vmem:[%s11 + $0x20] sm:$0xff]
  %v3999 = vld [vmem:[%s11 + $0x28] sm:$0xff]
  %v4000 = vld [vmem:[%s11 + $0x30] sm:$0xff]
  %v4001 = vld [vmem:[%s11 + $0x38] sm:$0xff]
  %v4002 = vld [vmem:[%s11 + $0x40] sm:$0xff]
  %v4003 = vld [vmem:[%s11 + $0x48] sm:$0xff]
  %v4004 = vld [vmem:[%s11 + $0x50] sm:$0xff]
  %v4005 = vld [vmem:[%s11 + $0x58] sm:$0xff]
  %v4006 = vld [vmem:[%s11 + $0x60] sm:$0xff]
  %v4007 = vld [vmem:[%s11 + $0x68] sm:$0xff]
  %v4008 = vld [vmem:[%s11 + $0x70] sm:$0xff]
  %v4009 = vld [vmem:[%s11 + $0x78] sm:$0xff]
  %v4010 = vld [vmem:[%s12] sm:$0x1]
  %v4012 = vperm.slane %v4010, 0
  %4014 = vmatpush.msra.mxu0 %v4009
  %4015 = vmatpush.msra.mxu0 %v4008
  %4016 = vmatpush.msra.mxu0 %v4007
  %4017 = vmatpush.msra.mxu0 %v4006
  %4018 = vmatpush.msra.mxu0 %v4005
  %4019 = vmatpush.msra.mxu0 %v4004
  %4020 = vmatpush.msra.mxu0 %v4003
  %4021 = vmatpush.msra.mxu0 %v4002
  %4022 = vmatpush.msra.mxu0 %v4001
  %4023 = vmatpush.msra.mxu0 %v4000
  %4024 = vmatpush.msra.mxu0 %v3999
  %4025 = vmatpush.msra.mxu0 %v3998
  %4026 = vmatpush.msra.mxu0 %v3997
  %4027 = vmatpush.msra.mxu0 %v3996
  %4028 = vmatpush.msra.mxu0 %v3995
  %4029 = vmatpush.msra.mxu0 %v3994
  %4030 = vmatmul.f32.gmra.mxu0 %v3993
  %v4031 = vpop.f32.mrf.mxu0
  %v4032 = vadd.f32 %v4012, %v4031
  %4033 = vdwg.mxu0
  %4034 = vst [vmem:[%s13] sm:$0xff] %v4032
  // Predicated region
  $region54: #{lenet_forward.1} parent=0 // pred_check
    _
  $region55: #{lenet_forward.1} parent=0 // pred_check_branch
    %4036 = sbr.rel (0) target = $region57
  $region56: #{lenet_forward.1} parent=0 // pred_region
    _
  $region57: #{lenet_forward.1} parent=0 // pred_fallthru
    _
  // Predicated region
  $region58: #{lenet_forward.1} parent=0 // pred_check
    _
  $region59: #{lenet_forward.1} parent=0 // pred_check_branch
    %4038 = sbr.rel (0) target = $region61
  $region60: #{lenet_forward.1} parent=0 // pred_region
    _
  $region61: #{lenet_forward.1} parent=0 // pred_fallthru
    _

</llo_original>
